<compile_context>
chip_gen: v7x
topology: tpu7x:2x2x1
jax: 0.10.0
libtpu: 0.0.40
codegen_flags: <defaults>
</compile_context>

<pallas_src>
import numpy as np
import jax
import jax.numpy as jnp
from jax.experimental import pallas as pl
from jax.experimental.pallas import tpu as pltpu


def gaussian_1d(window_size: int, sigma: float = 1.5) -> np.ndarray:
    """1-D Gaussian, normalized to sum to 1 (the 2-D window is its outer product)."""
    coords = np.arange(window_size, dtype=np.float64) - (window_size - 1) / 2.0
    g = np.exp(-(coords ** 2) / (2.0 * sigma ** 2))
    g = g / g.sum()
    return g.astype(np.float32)


def banded_conv_matrix(g1d: np.ndarray, width: int) -> np.ndarray:
    """(width, width) matrix M such that (x @ M)[j] == zero-padded 'same' 1-D conv."""
    k = g1d.shape[0]
    p = (k - 1) // 2
    m = np.zeros((width, width), dtype=np.float32)
    for j in range(width):
        for t in range(k):
            w_idx = j + t - p
            if 0 <= w_idx < width:
                m[w_idx, j] = g1d[t]
    return m


def make_ssim_level_kernel(g1d: np.ndarray, H: int, W: int, inv_total: float):
    """Kernel computing the per-block partial sum of SSIM / (B*C*H*W)."""
    k = int(g1d.shape[0])
    taps = [float(v) for v in g1d]          # compile-time constants
    C1 = 0.01 ** 2
    C2 = 0.03 ** 2

    def kernel(x1_ref, x2_ref, gw_ref, o_ref):
        x1 = x1_ref[...]                    # (Nt, Hp, W)  H-padded images
        x2 = x2_ref[...]
        gw = gw_ref[...]                    # (W, W)       banded Gaussian (VMEM resident)
        nt = x1.shape[0]

        # All 5 windowed statistics share the same Gaussian conv; concatenate
        # them along the leading image axis so each conv pass is issued once
        # on a 5x-taller operand.
        sig = jnp.concatenate([x1, x2, x1 * x1, x2 * x2, x1 * x2], axis=0)  # (5*Nt, Hp, W)

        # H (sublane) pass: zero-padded "same" conv as a k-tap shifted sum (VPU).
        acc = taps[0] * sig[:, 0:H, :]
        for t in range(1, k):
            acc = acc + taps[t] * sig[:, t:t + H, :]                        # (5*Nt, H, W)

        # W (lane) pass: banded Gaussian matmul on the MXU.  Zero "same"
        # padding is baked into gw; leading dims flatten into one
        # (5*Nt*H, W) x (W, W) matmul.
        conv = jnp.einsum('nhw,wv->nhv', acc, gw,
                          preferred_element_type=jnp.float32)               # (5*Nt, H, W)

        m1 = conv[0 * nt:1 * nt]
        m2 = conv[1 * nt:2 * nt]
        e11 = conv[2 * nt:3 * nt]
        e22 = conv[3 * nt:4 * nt]
        e12 = conv[4 * nt:5 * nt]

        m1_sq = m1 * m1
        m2_sq = m2 * m2
        m12 = m1 * m2
        sigma1_sq = e11 - m1_sq
        sigma2_sq = e22 - m2_sq
        sigma_12 = e12 - m12

        num = (2.0 * m12 + C1) * (2.0 * sigma_12 + C2)
        den = (m1_sq + m2_sq + C1) * (sigma1_sq + sigma2_sq + C2)
        ssim = num * pl.reciprocal(den, approx=True)   # divide on the EUP, not VALU

        partial = jnp.sum(ssim) * inv_total
        # Independent per-block partial (lane-dense (8,128) slab, unmasked store);
        # final cross-block sum + (1 - x) happens in plain JAX.
        o_ref[...] = jnp.full((1, 8, 128), partial, dtype=jnp.float32)

    return kernel


def _choose_block_images(N: int, Hp: int, W: int,
                         budget_bytes: int = 24 * 1024 * 1024,
                         cap: int = 64) -> int:
    """Largest divisor of N whose estimated VMEM footprint fits the budget."""
    per_n = Hp * W * 4
    factor = 40            # 2 double-buffered inputs + ~5x stacked conv temporaries
    nt_max = max(1, budget_bytes // (factor * per_n))
    nt_max = int(min(nt_max, cap, N))
    for nt in range(nt_max, 0, -1):
        if N % nt == 0:
            return nt
    return 1


def ssim_level_loss(img1: jax.Array, img2: jax.Array, g1d: np.ndarray) -> jax.Array:
    """1 - mean(SSIM(img1, img2)) with the separable Gaussian window (dilation=1)."""
    B, C, H, W = img1.shape
    k = int(g1d.shape[0])
    p = (k - 1) // 2
    Hp = H + 2 * p
    N = B * C

    # Zero-pad only the H dim (W "same" padding is baked into the banded matmul),
    # and fold (B, C) into one leading axis (free XLA reshape).
    pad_cfg = ((0, 0), (0, 0), (p, p), (0, 0))
    x1p = jnp.pad(img1.astype(jnp.float32), pad_cfg).reshape(N, Hp, W)
    x2p = jnp.pad(img2.astype(jnp.float32), pad_cfg).reshape(N, Hp, W)
    # TODO(synk): fold the H zero-pad and the next-level 2x2 avg-pool into the kernel
    # (masked edge taps / pooled extra outputs) to remove one HBM round trip per level.

    Nt = _choose_block_images(N, Hp, W)
    nb = N // Nt

    gw = jnp.asarray(banded_conv_matrix(g1d, W))      # (W, W), stays VMEM resident

    kernel = make_ssim_level_kernel(g1d, H, W, inv_total=1.0 / float(B * C * H * W))

    out = pl.pallas_call(
        kernel,
        out_shape=jax.ShapeDtypeStruct((nb, 8, 128), jnp.float32),
        grid=(nb,),
        in_specs=[
            pl.BlockSpec((Nt, Hp, W), lambda b: (b, 0, 0)),
            pl.BlockSpec((Nt, Hp, W), lambda b: (b, 0, 0)),
            pl.BlockSpec((W, W), lambda b: (0, 0)),    # same tiny block every step
        ],
        out_specs=pl.BlockSpec((1, 8, 128), lambda b: (b, 0, 0)),
        compiler_params=pltpu.CompilerParams(
            dimension_semantics=("parallel",),         # independent blocks (2 TCs on v7x)
            vmem_limit_bytes=48 * 1024 * 1024,         # above default scoped limit, < 64MiB phys
        ),
    )(x1p, x2p, gw)

    mean_ssim = jnp.sum(out[:, 0, 0])
    return 1.0 - mean_ssim


def avg_pool_2x2(x: jax.Array) -> jax.Array:
    """F.avg_pool2d(x, (2,2)) equivalent, including floor behavior for odd dims."""
    B, C, H, W = x.shape
    Hf, Wf = (H // 2) * 2, (W // 2) * 2
    x = x[:, :, :Hf, :Wf]
    return x.reshape(B, C, Hf // 2, 2, Wf // 2, 2).mean(axis=(3, 5))


def ms_ssim_loss(img1: jax.Array, img2: jax.Array, fsize=(7, 5, 3)) -> jax.Array:
    """Multi-scale SSIM loss: sum over levels of (1 - mean ssim), 2x2 avg-pool between levels."""
    total = jnp.float32(0.0)
    x1, x2 = img1, img2
    n_levels = len(fsize)
    for i, kk in enumerate(fsize):
        g = gaussian_1d(kk)
        total = total + ssim_level_loss(x1, x2, g)
        if i + 1 < n_levels:          # pooled result after the last level is unused
            x1 = avg_pool_2x2(x1)
            x2 = avg_pool_2x2(x2)
    return total


if __name__ == "__main__":
    B, C, H, W = 2, 4, 16, 16
    fsize = (7, 5, 3)  # window size per pyramid level

    key = jax.random.PRNGKey(0)
    k1, k2 = jax.random.split(key)
    img1 = jax.random.uniform(k1, (B, C, H, W), dtype=jnp.float32)
    img2 = jax.random.uniform(k2, (B, C, H, W), dtype=jnp.float32)

    loss_fn = jax.jit(lambda a, b: ms_ssim_loss(a, b, fsize=fsize))
    loss = loss_fn(img1, img2)
    jax.block_until_ready(loss)
    print("KERNEL_OK")
</pallas_src>

<mosaic_0001>
module attributes {stable_mosaic.version = 11 : i64} {
  func.func @kernel(%arg0: i32, %arg1: memref<8x22x16xf32, #tpu.memory_space<vmem>>, %arg2: memref<8x22x16xf32, #tpu.memory_space<vmem>>, %arg3: memref<16x16xf32, #tpu.memory_space<vmem>>, %arg4: memref<1x8x128xf32, #tpu.memory_space<vmem>>) attributes {dimension_semantics = [#tpu.dimension_semantics<parallel>], iteration_bounds = array<i64: 1>, scalar_prefetch = 0 : i64, scratch_operands = 0 : i64, tpu.core_type = #tpu.core_type<tc>, window_params = [{transform_indices = @transform_0, window_bounds = array<i64: 8, 22, 16>}, {transform_indices = @transform_1, window_bounds = array<i64: 8, 22, 16>}, {pipeline_mode = #tpu.pipeline_mode<synchronous>, transform_indices = @transform_2, window_bounds = array<i64: 16, 16>}, {transform_indices = @transform_3, window_bounds = array<i64: 1, 8, 128>}]} {
    %c0 = arith.constant 0 : index
    %c0_0 = arith.constant 0 : index
    %c0_1 = arith.constant 0 : index
    %0 = vector.load %arg1[%c0, %c0_0, %c0_1] : memref<8x22x16xf32, #tpu.memory_space<vmem>>, vector<8x22x16xf32>
    %c0_2 = arith.constant 0 : index
    %c0_3 = arith.constant 0 : index
    %c0_4 = arith.constant 0 : index
    %1 = vector.load %arg2[%c0_2, %c0_3, %c0_4] : memref<8x22x16xf32, #tpu.memory_space<vmem>>, vector<8x22x16xf32>
    %c0_5 = arith.constant 0 : index
    %c0_6 = arith.constant 0 : index
    %2 = vector.load %arg3[%c0_5, %c0_6] : memref<16x16xf32, #tpu.memory_space<vmem>>, vector<16x16xf32>
    %3 = arith.mulf %0, %0 : vector<8x22x16xf32>
    %4 = arith.mulf %1, %1 : vector<8x22x16xf32>
    %5 = arith.mulf %0, %1 : vector<8x22x16xf32>
    %6 = tpu.concatenate %0, %1, %3, %4, %5 in 0 : vector<8x22x16xf32>, vector<8x22x16xf32>, vector<8x22x16xf32>, vector<8x22x16xf32>, vector<8x22x16xf32> -> vector<40x22x16xf32>
    %7 = vector.extract_strided_slice %6 {offsets = [0, 0, 0], sizes = [40, 16, 16], strides = [1, 1, 1]} : vector<40x22x16xf32> to vector<40x16x16xf32>
    %cst = arith.constant 0.036632847 : f32
    %8 = vector.broadcast %cst : f32 to vector<40x16x16xf32>
    %9 = arith.mulf %8, %7 : vector<40x16x16xf32>
    %10 = vector.extract_strided_slice %6 {offsets = [0, 1, 0], sizes = [40, 16, 16], strides = [1, 1, 1]} : vector<40x22x16xf32> to vector<40x16x16xf32>
    %cst_7 = arith.constant 0.111280762 : f32
    %11 = vector.broadcast %cst_7 : f32 to vector<40x16x16xf32>
    %12 = arith.mulf %11, %10 : vector<40x16x16xf32>
    %13 = arith.addf %9, %12 : vector<40x16x16xf32>
    %14 = vector.extract_strided_slice %6 {offsets = [0, 2, 0], sizes = [40, 16, 16], strides = [1, 1, 1]} : vector<40x22x16xf32> to vector<40x16x16xf32>
    %cst_8 = arith.constant 0.216745317 : f32
    %15 = vector.broadcast %cst_8 : f32 to vector<40x16x16xf32>
    %16 = arith.mulf %15, %14 : vector<40x16x16xf32>
    %17 = arith.addf %13, %16 : vector<40x16x16xf32>
    %18 = vector.extract_strided_slice %6 {offsets = [0, 3, 0], sizes = [40, 16, 16], strides = [1, 1, 1]} : vector<40x22x16xf32> to vector<40x16x16xf32>
    %cst_9 = arith.constant 0.270682156 : f32
    %19 = vector.broadcast %cst_9 : f32 to vector<40x16x16xf32>
    %20 = arith.mulf %19, %18 : vector<40x16x16xf32>
    %21 = arith.addf %17, %20 : vector<40x16x16xf32>
    %22 = vector.extract_strided_slice %6 {offsets = [0, 4, 0], sizes = [40, 16, 16], strides = [1, 1, 1]} : vector<40x22x16xf32> to vector<40x16x16xf32>
    %cst_10 = arith.constant 0.216745317 : f32
    %23 = vector.broadcast %cst_10 : f32 to vector<40x16x16xf32>
    %24 = arith.mulf %23, %22 : vector<40x16x16xf32>
    %25 = arith.addf %21, %24 : vector<40x16x16xf32>
    %26 = vector.extract_strided_slice %6 {offsets = [0, 5, 0], sizes = [40, 16, 16], strides = [1, 1, 1]} : vector<40x22x16xf32> to vector<40x16x16xf32>
    %cst_11 = arith.constant 0.111280762 : f32
    %27 = vector.broadcast %cst_11 : f32 to vector<40x16x16xf32>
    %28 = arith.mulf %27, %26 : vector<40x16x16xf32>
    %29 = arith.addf %25, %28 : vector<40x16x16xf32>
    %30 = vector.extract_strided_slice %6 {offsets = [0, 6, 0], sizes = [40, 16, 16], strides = [1, 1, 1]} : vector<40x22x16xf32> to vector<40x16x16xf32>
    %cst_12 = arith.constant 0.036632847 : f32
    %31 = vector.broadcast %cst_12 : f32 to vector<40x16x16xf32>
    %32 = arith.mulf %31, %30 : vector<40x16x16xf32>
    %33 = arith.addf %29, %32 : vector<40x16x16xf32>
    "tpu.trace_start"() <{level = 10 : i32, message = "nhw,wv->nhv"}> : () -> ()
    %cst_13 = arith.constant dense<0.000000e+00> : vector<40x16x16xf32>
    %34 = tpu.matmul %33, %2, %cst_13 {dimension_numbers = #tpu.dot_dimension_numbers<[2], [0], [0, 1], [1], [0, 0, 0, 1, 1, 1], [], []>} : vector<40x16x16xf32>, vector<16x16xf32>, vector<40x16x16xf32> -> vector<40x16x16xf32>
    "tpu.trace_stop"() : () -> ()
    %35 = vector.extract_strided_slice %34 {offsets = [0, 0, 0], sizes = [8, 16, 16], strides = [1, 1, 1]} : vector<40x16x16xf32> to vector<8x16x16xf32>
    %36 = vector.extract_strided_slice %34 {offsets = [8, 0, 0], sizes = [8, 16, 16], strides = [1, 1, 1]} : vector<40x16x16xf32> to vector<8x16x16xf32>
    %37 = vector.extract_strided_slice %34 {offsets = [16, 0, 0], sizes = [8, 16, 16], strides = [1, 1, 1]} : vector<40x16x16xf32> to vector<8x16x16xf32>
    %38 = vector.extract_strided_slice %34 {offsets = [24, 0, 0], sizes = [8, 16, 16], strides = [1, 1, 1]} : vector<40x16x16xf32> to vector<8x16x16xf32>
    %39 = vector.extract_strided_slice %34 {offsets = [32, 0, 0], sizes = [8, 16, 16], strides = [1, 1, 1]} : vector<40x16x16xf32> to vector<8x16x16xf32>
    %40 = arith.mulf %35, %35 : vector<8x16x16xf32>
    %41 = arith.mulf %36, %36 : vector<8x16x16xf32>
    %42 = arith.mulf %35, %36 : vector<8x16x16xf32>
    %43 = arith.subf %37, %40 : vector<8x16x16xf32>
    %44 = arith.subf %38, %41 : vector<8x16x16xf32>
    %45 = arith.subf %39, %42 : vector<8x16x16xf32>
    %cst_14 = arith.constant 2.000000e+00 : f32
    %46 = vector.broadcast %cst_14 : f32 to vector<8x16x16xf32>
    %47 = arith.mulf %46, %42 : vector<8x16x16xf32>
    %cst_15 = arith.constant 9.99999974E-5 : f32
    %48 = vector.broadcast %cst_15 : f32 to vector<8x16x16xf32>
    %49 = arith.addf %47, %48 : vector<8x16x16xf32>
    %cst_16 = arith.constant 2.000000e+00 : f32
    %50 = vector.broadcast %cst_16 : f32 to vector<8x16x16xf32>
    %51 = arith.mulf %50, %45 : vector<8x16x16xf32>
    %cst_17 = arith.constant 8.99999984E-4 : f32
    %52 = vector.broadcast %cst_17 : f32 to vector<8x16x16xf32>
    %53 = arith.addf %51, %52 : vector<8x16x16xf32>
    %54 = arith.mulf %49, %53 : vector<8x16x16xf32>
    %55 = arith.addf %40, %41 : vector<8x16x16xf32>
    %cst_18 = arith.constant 9.99999974E-5 : f32
    %56 = vector.broadcast %cst_18 : f32 to vector<8x16x16xf32>
    %57 = arith.addf %55, %56 : vector<8x16x16xf32>
    %58 = arith.addf %43, %44 : vector<8x16x16xf32>
    %cst_19 = arith.constant 8.99999984E-4 : f32
    %59 = vector.broadcast %cst_19 : f32 to vector<8x16x16xf32>
    %60 = arith.addf %58, %59 : vector<8x16x16xf32>
    %61 = arith.mulf %57, %60 : vector<8x16x16xf32>
    %62 = tpu.reciprocal %61 {approx = true} : vector<8x16x16xf32> -> vector<8x16x16xf32>
    %63 = arith.mulf %54, %62 : vector<8x16x16xf32>
    %64 = vector.shape_cast %63 : vector<8x16x16xf32> to vector<1x8x16x16xf32>
    %cst_20 = arith.constant dense<0.000000e+00> : vector<1xf32>
    %65 = vector.multi_reduction <add>, %64, %cst_20 [1, 2, 3] : vector<1x8x16x16xf32> to vector<1xf32>
    %66 = vector.shape_cast %65 : vector<1xf32> to vector<1x1x1x1xf32>
    %67 = vector.extract %66[0, 0, 0, 0] : f32 from vector<1x1x1x1xf32>
    %cst_21 = arith.constant 4.8828125E-4 : f32
    %68 = arith.mulf %67, %cst_21 : f32
    %69 = vector.broadcast %68 : f32 to vector<1x8x128xf32>
    %c0_22 = arith.constant 0 : index
    %c0_23 = arith.constant 0 : index
    %c0_24 = arith.constant 0 : index
    %70 = vector.load %arg4[%c0_22, %c0_23, %c0_24] : memref<1x8x128xf32, #tpu.memory_space<vmem>>, vector<1x8x128xf32>
    tpu.vector_store %arg4[%c0_22, %c0_23, %c0_24], %69 {strides = array<i32>} : memref<1x8x128xf32, #tpu.memory_space<vmem>>, vector<1x8x128xf32>,
    return
  }
  func.func @transform_0(%arg0: i32) -> (i32, i32, i32) {
    %c0_i32 = arith.constant 0 : i32
    %c0_i32_0 = arith.constant 0 : i32
    %c0_i32_1 = arith.constant 0 : i32
    return %arg0, %c0_i32, %c0_i32_0 : i32, i32, i32
  }
  func.func @transform_1(%arg0: i32) -> (i32, i32, i32) {
    %c0_i32 = arith.constant 0 : i32
    %c0_i32_0 = arith.constant 0 : i32
    %c0_i32_1 = arith.constant 0 : i32
    return %arg0, %c0_i32, %c0_i32_0 : i32, i32, i32
  }
  func.func @transform_2(%arg0: i32) -> (i32, i32) {
    %c0_i32 = arith.constant 0 : i32
    %c0_i32_0 = arith.constant 0 : i32
    %c0_i32_1 = arith.constant 0 : i32
    return %c0_i32, %c0_i32_0 : i32, i32
  }
  func.func @transform_3(%arg0: i32) -> (i32, i32, i32) {
    %c0_i32 = arith.constant 0 : i32
    %c0_i32_0 = arith.constant 0 : i32
    %c0_i32_1 = arith.constant 0 : i32
    return %arg0, %c0_i32, %c0_i32_0 : i32, i32, i32
  }
}

module attributes {stable_mosaic.version = 11 : i64} {
  func.func @kernel(%arg0: i32, %arg1: memref<8x6x4xf32, #tpu.memory_space<vmem>>, %arg2: memref<8x6x4xf32, #tpu.memory_space<vmem>>, %arg3: memref<4x4xf32, #tpu.memory_space<vmem>>, %arg4: memref<1x8x128xf32, #tpu.memory_space<vmem>>) attributes {dimension_semantics = [#tpu.dimension_semantics<parallel>], iteration_bounds = array<i64: 1>, scalar_prefetch = 0 : i64, scratch_operands = 0 : i64, tpu.core_type = #tpu.core_type<tc>, window_params = [{transform_indices = @transform_0, window_bounds = array<i64: 8, 6, 4>}, {transform_indices = @transform_1, window_bounds = array<i64: 8, 6, 4>}, {pipeline_mode = #tpu.pipeline_mode<synchronous>, transform_indices = @transform_2, window_bounds = array<i64: 4, 4>}, {transform_indices = @transform_3, window_bounds = array<i64: 1, 8, 128>}]} {
    %c0 = arith.constant 0 : index
    %c0_0 = arith.constant 0 : index
    %c0_1 = arith.constant 0 : index
    %0 = vector.load %arg1[%c0, %c0_0, %c0_1] : memref<8x6x4xf32, #tpu.memory_space<vmem>>, vector<8x6x4xf32>
    %c0_2 = arith.constant 0 : index
    %c0_3 = arith.constant 0 : index
    %c0_4 = arith.constant 0 : index
    %1 = vector.load %arg2[%c0_2, %c0_3, %c0_4] : memref<8x6x4xf32, #tpu.memory_space<vmem>>, vector<8x6x4xf32>
    %c0_5 = arith.constant 0 : index
    %c0_6 = arith.constant 0 : index
    %2 = vector.load %arg3[%c0_5, %c0_6] : memref<4x4xf32, #tpu.memory_space<vmem>>, vector<4x4xf32>
    %3 = arith.mulf %0, %0 : vector<8x6x4xf32>
    %4 = arith.mulf %1, %1 : vector<8x6x4xf32>
    %5 = arith.mulf %0, %1 : vector<8x6x4xf32>
    %6 = tpu.concatenate %0, %1, %3, %4, %5 in 0 : vector<8x6x4xf32>, vector<8x6x4xf32>, vector<8x6x4xf32>, vector<8x6x4xf32>, vector<8x6x4xf32> -> vector<40x6x4xf32>
    %7 = vector.extract_strided_slice %6 {offsets = [0, 0, 0], sizes = [40, 4, 4], strides = [1, 1, 1]} : vector<40x6x4xf32> to vector<40x4x4xf32>
    %cst = arith.constant 0.307801336 : f32
    %8 = vector.broadcast %cst : f32 to vector<40x4x4xf32>
    %9 = arith.mulf %8, %7 : vector<40x4x4xf32>
    %10 = vector.extract_strided_slice %6 {offsets = [0, 1, 0], sizes = [40, 4, 4], strides = [1, 1, 1]} : vector<40x6x4xf32> to vector<40x4x4xf32>
    %cst_7 = arith.constant 0.384397328 : f32
    %11 = vector.broadcast %cst_7 : f32 to vector<40x4x4xf32>
    %12 = arith.mulf %11, %10 : vector<40x4x4xf32>
    %13 = arith.addf %9, %12 : vector<40x4x4xf32>
    %14 = vector.extract_strided_slice %6 {offsets = [0, 2, 0], sizes = [40, 4, 4], strides = [1, 1, 1]} : vector<40x6x4xf32> to vector<40x4x4xf32>
    %cst_8 = arith.constant 0.307801336 : f32
    %15 = vector.broadcast %cst_8 : f32 to vector<40x4x4xf32>
    %16 = arith.mulf %15, %14 : vector<40x4x4xf32>
    %17 = arith.addf %13, %16 : vector<40x4x4xf32>
    "tpu.trace_start"() <{level = 10 : i32, message = "nhw,wv->nhv"}> : () -> ()
    %cst_9 = arith.constant dense<0.000000e+00> : vector<40x4x4xf32>
    %18 = tpu.matmul %17, %2, %cst_9 {dimension_numbers = #tpu.dot_dimension_numbers<[2], [0], [0, 1], [1], [0, 0, 0, 1, 1, 1], [], []>} : vector<40x4x4xf32>, vector<4x4xf32>, vector<40x4x4xf32> -> vector<40x4x4xf32>
    "tpu.trace_stop"() : () -> ()
    %19 = vector.extract_strided_slice %18 {offsets = [0, 0, 0], sizes = [8, 4, 4], strides = [1, 1, 1]} : vector<40x4x4xf32> to vector<8x4x4xf32>
    %20 = vector.extract_strided_slice %18 {offsets = [8, 0, 0], sizes = [8, 4, 4], strides = [1, 1, 1]} : vector<40x4x4xf32> to vector<8x4x4xf32>
    %21 = vector.extract_strided_slice %18 {offsets = [16, 0, 0], sizes = [8, 4, 4], strides = [1, 1, 1]} : vector<40x4x4xf32> to vector<8x4x4xf32>
    %22 = vector.extract_strided_slice %18 {offsets = [24, 0, 0], sizes = [8, 4, 4], strides = [1, 1, 1]} : vector<40x4x4xf32> to vector<8x4x4xf32>
    %23 = vector.extract_strided_slice %18 {offsets = [32, 0, 0], sizes = [8, 4, 4], strides = [1, 1, 1]} : vector<40x4x4xf32> to vector<8x4x4xf32>
    %24 = arith.mulf %19, %19 : vector<8x4x4xf32>
    %25 = arith.mulf %20, %20 : vector<8x4x4xf32>
    %26 = arith.mulf %19, %20 : vector<8x4x4xf32>
    %27 = arith.subf %21, %24 : vector<8x4x4xf32>
    %28 = arith.subf %22, %25 : vector<8x4x4xf32>
    %29 = arith.subf %23, %26 : vector<8x4x4xf32>
    %cst_10 = arith.constant 2.000000e+00 : f32
    %30 = vector.broadcast %cst_10 : f32 to vector<8x4x4xf32>
    %31 = arith.mulf %30, %26 : vector<8x4x4xf32>
    %cst_11 = arith.constant 9.99999974E-5 : f32
    %32 = vector.broadcast %cst_11 : f32 to vector<8x4x4xf32>
    %33 = arith.addf %31, %32 : vector<8x4x4xf32>
    %cst_12 = arith.constant 2.000000e+00 : f32
    %34 = vector.broadcast %cst_12 : f32 to vector<8x4x4xf32>
    %35 = arith.mulf %34, %29 : vector<8x4x4xf32>
    %cst_13 = arith.constant 8.99999984E-4 : f32
    %36 = vector.broadcast %cst_13 : f32 to vector<8x4x4xf32>
    %37 = arith.addf %35, %36 : vector<8x4x4xf32>
    %38 = arith.mulf %33, %37 : vector<8x4x4xf32>
    %39 = arith.addf %24, %25 : vector<8x4x4xf32>
    %cst_14 = arith.constant 9.99999974E-5 : f32
    %40 = vector.broadcast %cst_14 : f32 to vector<8x4x4xf32>
    %41 = arith.addf %39, %40 : vector<8x4x4xf32>
    %42 = arith.addf %27, %28 : vector<8x4x4xf32>
    %cst_15 = arith.constant 8.99999984E-4 : f32
    %43 = vector.broadcast %cst_15 : f32 to vector<8x4x4xf32>
    %44 = arith.addf %42, %43 : vector<8x4x4xf32>
    %45 = arith.mulf %41, %44 : vector<8x4x4xf32>
    %46 = tpu.reciprocal %45 {approx = true} : vector<8x4x4xf32> -> vector<8x4x4xf32>
    %47 = arith.mulf %38, %46 : vector<8x4x4xf32>
    %48 = vector.shape_cast %47 : vector<8x4x4xf32> to vector<1x8x4x4xf32>
    %cst_16 = arith.constant dense<0.000000e+00> : vector<1xf32>
    %49 = vector.multi_reduction <add>, %48, %cst_16 [1, 2, 3] : vector<1x8x4x4xf32> to vector<1xf32>
    %50 = vector.shape_cast %49 : vector<1xf32> to vector<1x1x1x1xf32>
    %51 = vector.extract %50[0, 0, 0, 0] : f32 from vector<1x1x1x1xf32>
    %cst_17 = arith.constant 7.812500e-03 : f32
    %52 = arith.mulf %51, %cst_17 : f32
    %53 = vector.broadcast %52 : f32 to vector<1x8x128xf32>
    %c0_18 = arith.constant 0 : index
    %c0_19 = arith.constant 0 : index
    %c0_20 = arith.constant 0 : index
    %54 = vector.load %arg4[%c0_18, %c0_19, %c0_20] : memref<1x8x128xf32, #tpu.memory_space<vmem>>, vector<1x8x128xf32>
    tpu.vector_store %arg4[%c0_18, %c0_19, %c0_20], %53 {strides = array<i32>} : memref<1x8x128xf32, #tpu.memory_space<vmem>>, vector<1x8x128xf32>,
    return
  }
  func.func @transform_0(%arg0: i32) -> (i32, i32, i32) {
    %c0_i32 = arith.constant 0 : i32
    %c0_i32_0 = arith.constant 0 : i32
    %c0_i32_1 = arith.constant 0 : i32
    return %arg0, %c0_i32, %c0_i32_0 : i32, i32, i32
  }
  func.func @transform_1(%arg0: i32) -> (i32, i32, i32) {
    %c0_i32 = arith.constant 0 : i32
    %c0_i32_0 = arith.constant 0 : i32
    %c0_i32_1 = arith.constant 0 : i32
    return %arg0, %c0_i32, %c0_i32_0 : i32, i32, i32
  }
  func.func @transform_2(%arg0: i32) -> (i32, i32) {
    %c0_i32 = arith.constant 0 : i32
    %c0_i32_0 = arith.constant 0 : i32
    %c0_i32_1 = arith.constant 0 : i32
    return %c0_i32, %c0_i32_0 : i32, i32
  }
  func.func @transform_3(%arg0: i32) -> (i32, i32, i32) {
    %c0_i32 = arith.constant 0 : i32
    %c0_i32_0 = arith.constant 0 : i32
    %c0_i32_1 = arith.constant 0 : i32
    return %arg0, %c0_i32, %c0_i32_0 : i32, i32, i32
  }
}

module attributes {stable_mosaic.version = 11 : i64} {
  func.func @kernel(%arg0: i32, %arg1: memref<8x12x8xf32, #tpu.memory_space<vmem>>, %arg2: memref<8x12x8xf32, #tpu.memory_space<vmem>>, %arg3: memref<8x8xf32, #tpu.memory_space<vmem>>, %arg4: memref<1x8x128xf32, #tpu.memory_space<vmem>>) attributes {dimension_semantics = [#tpu.dimension_semantics<parallel>], iteration_bounds = array<i64: 1>, scalar_prefetch = 0 : i64, scratch_operands = 0 : i64, tpu.core_type = #tpu.core_type<tc>, window_params = [{transform_indices = @transform_0, window_bounds = array<i64: 8, 12, 8>}, {transform_indices = @transform_1, window_bounds = array<i64: 8, 12, 8>}, {pipeline_mode = #tpu.pipeline_mode<synchronous>, transform_indices = @transform_2, window_bounds = array<i64: 8, 8>}, {transform_indices = @transform_3, window_bounds = array<i64: 1, 8, 128>}]} {
    %c0 = arith.constant 0 : index
    %c0_0 = arith.constant 0 : index
    %c0_1 = arith.constant 0 : index
    %0 = vector.load %arg1[%c0, %c0_0, %c0_1] : memref<8x12x8xf32, #tpu.memory_space<vmem>>, vector<8x12x8xf32>
    %c0_2 = arith.constant 0 : index
    %c0_3 = arith.constant 0 : index
    %c0_4 = arith.constant 0 : index
    %1 = vector.load %arg2[%c0_2, %c0_3, %c0_4] : memref<8x12x8xf32, #tpu.memory_space<vmem>>, vector<8x12x8xf32>
    %c0_5 = arith.constant 0 : index
    %c0_6 = arith.constant 0 : index
    %2 = vector.load %arg3[%c0_5, %c0_6] : memref<8x8xf32, #tpu.memory_space<vmem>>, vector<8x8xf32>
    %3 = arith.mulf %0, %0 : vector<8x12x8xf32>
    %4 = arith.mulf %1, %1 : vector<8x12x8xf32>
    %5 = arith.mulf %0, %1 : vector<8x12x8xf32>
    %6 = tpu.concatenate %0, %1, %3, %4, %5 in 0 : vector<8x12x8xf32>, vector<8x12x8xf32>, vector<8x12x8xf32>, vector<8x12x8xf32>, vector<8x12x8xf32> -> vector<40x12x8xf32>
    %7 = vector.extract_strided_slice %6 {offsets = [0, 0, 0], sizes = [40, 8, 8], strides = [1, 1, 1]} : vector<40x12x8xf32> to vector<40x8x8xf32>
    %cst = arith.constant 0.120078385 : f32
    %8 = vector.broadcast %cst : f32 to vector<40x8x8xf32>
    %9 = arith.mulf %8, %7 : vector<40x8x8xf32>
    %10 = vector.extract_strided_slice %6 {offsets = [0, 1, 0], sizes = [40, 8, 8], strides = [1, 1, 1]} : vector<40x12x8xf32> to vector<40x8x8xf32>
    %cst_7 = arith.constant 0.233880758 : f32
    %11 = vector.broadcast %cst_7 : f32 to vector<40x8x8xf32>
    %12 = arith.mulf %11, %10 : vector<40x8x8xf32>
    %13 = arith.addf %9, %12 : vector<40x8x8xf32>
    %14 = vector.extract_strided_slice %6 {offsets = [0, 2, 0], sizes = [40, 8, 8], strides = [1, 1, 1]} : vector<40x12x8xf32> to vector<40x8x8xf32>
    %cst_8 = arith.constant 0.292081714 : f32
    %15 = vector.broadcast %cst_8 : f32 to vector<40x8x8xf32>
    %16 = arith.mulf %15, %14 : vector<40x8x8xf32>
    %17 = arith.addf %13, %16 : vector<40x8x8xf32>
    %18 = vector.extract_strided_slice %6 {offsets = [0, 3, 0], sizes = [40, 8, 8], strides = [1, 1, 1]} : vector<40x12x8xf32> to vector<40x8x8xf32>
    %cst_9 = arith.constant 0.233880758 : f32
    %19 = vector.broadcast %cst_9 : f32 to vector<40x8x8xf32>
    %20 = arith.mulf %19, %18 : vector<40x8x8xf32>
    %21 = arith.addf %17, %20 : vector<40x8x8xf32>
    %22 = vector.extract_strided_slice %6 {offsets = [0, 4, 0], sizes = [40, 8, 8], strides = [1, 1, 1]} : vector<40x12x8xf32> to vector<40x8x8xf32>
    %cst_10 = arith.constant 0.120078385 : f32
    %23 = vector.broadcast %cst_10 : f32 to vector<40x8x8xf32>
    %24 = arith.mulf %23, %22 : vector<40x8x8xf32>
    %25 = arith.addf %21, %24 : vector<40x8x8xf32>
    "tpu.trace_start"() <{level = 10 : i32, message = "nhw,wv->nhv"}> : () -> ()
    %cst_11 = arith.constant dense<0.000000e+00> : vector<40x8x8xf32>
    %26 = tpu.matmul %25, %2, %cst_11 {dimension_numbers = #tpu.dot_dimension_numbers<[2], [0], [0, 1], [1], [0, 0, 0, 1, 1, 1], [], []>} : vector<40x8x8xf32>, vector<8x8xf32>, vector<40x8x8xf32> -> vector<40x8x8xf32>
    "tpu.trace_stop"() : () -> ()
    %27 = vector.extract_strided_slice %26 {offsets = [0, 0, 0], sizes = [8, 8, 8], strides = [1, 1, 1]} : vector<40x8x8xf32> to vector<8x8x8xf32>
    %28 = vector.extract_strided_slice %26 {offsets = [8, 0, 0], sizes = [8, 8, 8], strides = [1, 1, 1]} : vector<40x8x8xf32> to vector<8x8x8xf32>
    %29 = vector.extract_strided_slice %26 {offsets = [16, 0, 0], sizes = [8, 8, 8], strides = [1, 1, 1]} : vector<40x8x8xf32> to vector<8x8x8xf32>
    %30 = vector.extract_strided_slice %26 {offsets = [24, 0, 0], sizes = [8, 8, 8], strides = [1, 1, 1]} : vector<40x8x8xf32> to vector<8x8x8xf32>
    %31 = vector.extract_strided_slice %26 {offsets = [32, 0, 0], sizes = [8, 8, 8], strides = [1, 1, 1]} : vector<40x8x8xf32> to vector<8x8x8xf32>
    %32 = arith.mulf %27, %27 : vector<8x8x8xf32>
    %33 = arith.mulf %28, %28 : vector<8x8x8xf32>
    %34 = arith.mulf %27, %28 : vector<8x8x8xf32>
    %35 = arith.subf %29, %32 : vector<8x8x8xf32>
    %36 = arith.subf %30, %33 : vector<8x8x8xf32>
    %37 = arith.subf %31, %34 : vector<8x8x8xf32>
    %cst_12 = arith.constant 2.000000e+00 : f32
    %38 = vector.broadcast %cst_12 : f32 to vector<8x8x8xf32>
    %39 = arith.mulf %38, %34 : vector<8x8x8xf32>
    %cst_13 = arith.constant 9.99999974E-5 : f32
    %40 = vector.broadcast %cst_13 : f32 to vector<8x8x8xf32>
    %41 = arith.addf %39, %40 : vector<8x8x8xf32>
    %cst_14 = arith.constant 2.000000e+00 : f32
    %42 = vector.broadcast %cst_14 : f32 to vector<8x8x8xf32>
    %43 = arith.mulf %42, %37 : vector<8x8x8xf32>
    %cst_15 = arith.constant 8.99999984E-4 : f32
    %44 = vector.broadcast %cst_15 : f32 to vector<8x8x8xf32>
    %45 = arith.addf %43, %44 : vector<8x8x8xf32>
    %46 = arith.mulf %41, %45 : vector<8x8x8xf32>
    %47 = arith.addf %32, %33 : vector<8x8x8xf32>
    %cst_16 = arith.constant 9.99999974E-5 : f32
    %48 = vector.broadcast %cst_16 : f32 to vector<8x8x8xf32>
    %49 = arith.addf %47, %48 : vector<8x8x8xf32>
    %50 = arith.addf %35, %36 : vector<8x8x8xf32>
    %cst_17 = arith.constant 8.99999984E-4 : f32
    %51 = vector.broadcast %cst_17 : f32 to vector<8x8x8xf32>
    %52 = arith.addf %50, %51 : vector<8x8x8xf32>
    %53 = arith.mulf %49, %52 : vector<8x8x8xf32>
    %54 = tpu.reciprocal %53 {approx = true} : vector<8x8x8xf32> -> vector<8x8x8xf32>
    %55 = arith.mulf %46, %54 : vector<8x8x8xf32>
    %56 = vector.shape_cast %55 : vector<8x8x8xf32> to vector<1x8x8x8xf32>
    %cst_18 = arith.constant dense<0.000000e+00> : vector<1xf32>
    %57 = vector.multi_reduction <add>, %56, %cst_18 [1, 2, 3] : vector<1x8x8x8xf32> to vector<1xf32>
    %58 = vector.shape_cast %57 : vector<1xf32> to vector<1x1x1x1xf32>
    %59 = vector.extract %58[0, 0, 0, 0] : f32 from vector<1x1x1x1xf32>
    %cst_19 = arith.constant 0.001953125 : f32
    %60 = arith.mulf %59, %cst_19 : f32
    %61 = vector.broadcast %60 : f32 to vector<1x8x128xf32>
    %c0_20 = arith.constant 0 : index
    %c0_21 = arith.constant 0 : index
    %c0_22 = arith.constant 0 : index
    %62 = vector.load %arg4[%c0_20, %c0_21, %c0_22] : memref<1x8x128xf32, #tpu.memory_space<vmem>>, vector<1x8x128xf32>
    tpu.vector_store %arg4[%c0_20, %c0_21, %c0_22], %61 {strides = array<i32>} : memref<1x8x128xf32, #tpu.memory_space<vmem>>, vector<1x8x128xf32>,
    return
  }
  func.func @transform_0(%arg0: i32) -> (i32, i32, i32) {
    %c0_i32 = arith.constant 0 : i32
    %c0_i32_0 = arith.constant 0 : i32
    %c0_i32_1 = arith.constant 0 : i32
    return %arg0, %c0_i32, %c0_i32_0 : i32, i32, i32
  }
  func.func @transform_1(%arg0: i32) -> (i32, i32, i32) {
    %c0_i32 = arith.constant 0 : i32
    %c0_i32_0 = arith.constant 0 : i32
    %c0_i32_1 = arith.constant 0 : i32
    return %arg0, %c0_i32, %c0_i32_0 : i32, i32, i32
  }
  func.func @transform_2(%arg0: i32) -> (i32, i32) {
    %c0_i32 = arith.constant 0 : i32
    %c0_i32_0 = arith.constant 0 : i32
    %c0_i32_1 = arith.constant 0 : i32
    return %c0_i32, %c0_i32_0 : i32, i32
  }
  func.func @transform_3(%arg0: i32) -> (i32, i32, i32) {
    %c0_i32 = arith.constant 0 : i32
    %c0_i32_0 = arith.constant 0 : i32
    %c0_i32_1 = arith.constant 0 : i32
    return %arg0, %c0_i32, %c0_i32_0 : i32, i32, i32
  }
}

</mosaic_0001>

<llo_original>
// kernel: _lambda_.5
$region0: #{_lambda_.5}
  #allocation0 [shape = 'u32[]', space=smem, size = 0x4, offset = 0x4, fixed_abs, tag = 'smem constant byte address 0x4 - core index']
  #allocation1 [shape = 'u32[144,128]{1,0:T(1,128)}', space=vmem, size = 0x12000, scoped, tag = 'internal scratch']
  %s0 = inlined_call_operand.vmem [shape: f32[8,6,4], index: 0, kind: input, shape index: {}]
  %s1 = inlined_call_operand.vmem [shape: f32[8,6,4], index: 1, kind: input, shape index: {}]
  %s2 = inlined_call_operand.vmem [shape: f32[4,4], index: 2, kind: input, shape index: {}]
  %s3 = inlined_call_operand.vmem [shape: f32[1,8,128], index: 3, kind: output, shape index: {}]
  %s4 = sld [smem:[#allocation0]]
  $region22: #{_lambda_.5} parent=0
    _
  %s6 = ssub.s32 1, %s4
  %s7 = scalar_select 0, %s6, %s4
  // Predicated region
  $region2: #{_lambda_.5} parent=0 // pred_check
    _
  $region3: #{_lambda_.5} parent=0 // pred_check_branch
    %9 = sbr.rel (0) target = $region5
  $region4: #{_lambda_.5} parent=0 // pred_region
    _
  $region5: #{_lambda_.5} parent=0 // pred_fallthru
    _
  // Predicated region
  $region6: #{_lambda_.5} parent=0 // pred_check
    _
  $region7: #{_lambda_.5} parent=0 // pred_check_branch
    %11 = sbr.rel (0) target = $region9
  $region8: #{_lambda_.5} parent=0 // pred_region
    _
  $region9: #{_lambda_.5} parent=0 // pred_fallthru
    _
  // Predicated region
  $region10: #{_lambda_.5} parent=0 // pred_check
    _
  $region11: #{_lambda_.5} parent=0 // pred_check_branch
    %13 = sbr.rel (0) target = $region13
  $region12: #{_lambda_.5} parent=0 // pred_region
    _
  $region13: #{_lambda_.5} parent=0 // pred_fallthru
    _
  %v14 = vld [vmem:[%s0] sm:$0x3f]
  %v15 = vld [vmem:[%s0 + $0x8] sm:$0x3f]
  %v16 = vld [vmem:[%s0 + $0x10] sm:$0x3f]
  %v17 = vld [vmem:[%s0 + $0x18] sm:$0x3f]
  %v18 = vld [vmem:[%s0 + $0x20] sm:$0x3f]
  %v19 = vld [vmem:[%s0 + $0x28] sm:$0x3f]
  %v20 = vld [vmem:[%s0 + $0x30] sm:$0x3f]
  %v21 = vld [vmem:[%s0 + $0x38] sm:$0x3f]
  %v22 = vld [vmem:[%s1] sm:$0x3f]
  %v23 = vld [vmem:[%s1 + $0x8] sm:$0x3f]
  %v24 = vld [vmem:[%s1 + $0x10] sm:$0x3f]
  %v25 = vld [vmem:[%s1 + $0x18] sm:$0x3f]
  %v26 = vld [vmem:[%s1 + $0x20] sm:$0x3f]
  %v27 = vld [vmem:[%s1 + $0x28] sm:$0x3f]
  %v28 = vld [vmem:[%s1 + $0x30] sm:$0x3f]
  %v29 = vld [vmem:[%s1 + $0x38] sm:$0x3f]
  %v30 = vld [vmem:[%s2] sm:$0xf]
  %v31 = vmul.f32 %v14, %v14
  %v32 = vmul.f32 %v15, %v15
  %v33 = vmul.f32 %v16, %v16
  %v34 = vmul.f32 %v17, %v17
  %v35 = vmul.f32 %v18, %v18
  %v36 = vmul.f32 %v19, %v19
  %v37 = vmul.f32 %v20, %v20
  %v38 = vmul.f32 %v21, %v21
  %v39 = vmul.f32 %v22, %v22
  %v40 = vmul.f32 %v23, %v23
  %v41 = vmul.f32 %v24, %v24
  %v42 = vmul.f32 %v25, %v25
  %v43 = vmul.f32 %v26, %v26
  %v44 = vmul.f32 %v27, %v27
  %v45 = vmul.f32 %v28, %v28
  %v46 = vmul.f32 %v29, %v29
  %v47 = vmul.f32 %v14, %v22
  %v48 = vmul.f32 %v15, %v23
  %v49 = vmul.f32 %v16, %v24
  %v50 = vmul.f32 %v17, %v25
  %v51 = vmul.f32 %v18, %v26
  %v52 = vmul.f32 %v19, %v27
  %v53 = vmul.f32 %v20, %v28
  %v54 = vmul.f32 %v21, %v29
  %v55 = vmul.f32 %v14, 0.30780134
  %v56 = vmul.f32 %v15, 0.30780134
  %v57 = vmul.f32 %v16, 0.30780134
  %v58 = vmul.f32 %v17, 0.30780134
  %v59 = vmul.f32 %v18, 0.30780134
  %v60 = vmul.f32 %v19, 0.30780134
  %v61 = vmul.f32 %v20, 0.30780134
  %v62 = vmul.f32 %v21, 0.30780134
  %v63 = vmul.f32 %v22, 0.30780134
  %v64 = vmul.f32 %v23, 0.30780134
  %v65 = vmul.f32 %v24, 0.30780134
  %v66 = vmul.f32 %v25, 0.30780134
  %v67 = vmul.f32 %v26, 0.30780134
  %v68 = vmul.f32 %v27, 0.30780134
  %v69 = vmul.f32 %v28, 0.30780134
  %v70 = vmul.f32 %v29, 0.30780134
  %v71 = vmul.f32 %v31, 0.30780134
  %v72 = vmul.f32 %v32, 0.30780134
  %v73 = vmul.f32 %v33, 0.30780134
  %v74 = vmul.f32 %v34, 0.30780134
  %v75 = vmul.f32 %v35, 0.30780134
  %v76 = vmul.f32 %v36, 0.30780134
  %v77 = vmul.f32 %v37, 0.30780134
  %v78 = vmul.f32 %v38, 0.30780134
  %v79 = vmul.f32 %v39, 0.30780134
  %v80 = vmul.f32 %v40, 0.30780134
  %v81 = vmul.f32 %v41, 0.30780134
  %v82 = vmul.f32 %v42, 0.30780134
  %v83 = vmul.f32 %v43, 0.30780134
  %v84 = vmul.f32 %v44, 0.30780134
  %v85 = vmul.f32 %v45, 0.30780134
  %v86 = vmul.f32 %v46, 0.30780134
  %v87 = vmul.f32 %v47, 0.30780134
  %v88 = vmul.f32 %v48, 0.30780134
  %v89 = vmul.f32 %v49, 0.30780134
  %v90 = vmul.f32 %v50, 0.30780134
  %v91 = vmul.f32 %v51, 0.30780134
  %v92 = vmul.f32 %v52, 0.30780134
  %v93 = vmul.f32 %v53, 0.30780134
  %v94 = vmul.f32 %v54, 0.30780134
  %v95 = vmul.f32 %v14, 0.38439733
  %v96 = vmul.f32 %v15, 0.38439733
  %v97 = vmul.f32 %v16, 0.38439733
  %v98 = vmul.f32 %v17, 0.38439733
  %v99 = vmul.f32 %v18, 0.38439733
  %v100 = vmul.f32 %v19, 0.38439733
  %v101 = vmul.f32 %v20, 0.38439733
  %v102 = vmul.f32 %v21, 0.38439733
  %v103 = vmul.f32 %v22, 0.38439733
  %v104 = vmul.f32 %v23, 0.38439733
  %v105 = vmul.f32 %v24, 0.38439733
  %v106 = vmul.f32 %v25, 0.38439733
  %v107 = vmul.f32 %v26, 0.38439733
  %v108 = vmul.f32 %v27, 0.38439733
  %v109 = vmul.f32 %v28, 0.38439733
  %v110 = vmul.f32 %v29, 0.38439733
  %v111 = vmul.f32 %v31, 0.38439733
  %v112 = vmul.f32 %v32, 0.38439733
  %v113 = vmul.f32 %v33, 0.38439733
  %v114 = vmul.f32 %v34, 0.38439733
  %v115 = vmul.f32 %v35, 0.38439733
  %v116 = vmul.f32 %v36, 0.38439733
  %v117 = vmul.f32 %v37, 0.38439733
  %v118 = vmul.f32 %v38, 0.38439733
  %v119 = vmul.f32 %v39, 0.38439733
  %v120 = vmul.f32 %v40, 0.38439733
  %v121 = vmul.f32 %v41, 0.38439733
  %v122 = vmul.f32 %v42, 0.38439733
  %v123 = vmul.f32 %v43, 0.38439733
  %v124 = vmul.f32 %v44, 0.38439733
  %v125 = vmul.f32 %v45, 0.38439733
  %v126 = vmul.f32 %v46, 0.38439733
  %v127 = vmul.f32 %v47, 0.38439733
  %v128 = vmul.f32 %v48, 0.38439733
  %v129 = vmul.f32 %v49, 0.38439733
  %v130 = vmul.f32 %v50, 0.38439733
  %v131 = vmul.f32 %v51, 0.38439733
  %v132 = vmul.f32 %v52, 0.38439733
  %v133 = vmul.f32 %v53, 0.38439733
  %v134 = vmul.f32 %v54, 0.38439733
  %v175 = vrot.slane %v95, 1
  %v176 = vrot.slane %v96, 1
  %v177 = vrot.slane %v97, 1
  %v178 = vrot.slane %v98, 1
  %v179 = vrot.slane %v99, 1
  %v180 = vrot.slane %v100, 1
  %v181 = vrot.slane %v101, 1
  %v182 = vrot.slane %v102, 1
  %v183 = vrot.slane %v103, 1
  %v184 = vrot.slane %v104, 1
  %v185 = vrot.slane %v105, 1
  %v186 = vrot.slane %v106, 1
  %v187 = vrot.slane %v107, 1
  %v188 = vrot.slane %v108, 1
  %v189 = vrot.slane %v109, 1
  %v190 = vrot.slane %v110, 1
  %v191 = vrot.slane %v111, 1
  %v192 = vrot.slane %v112, 1
  %v193 = vrot.slane %v113, 1
  %v194 = vrot.slane %v114, 1
  %v195 = vrot.slane %v115, 1
  %v196 = vrot.slane %v116, 1
  %v197 = vrot.slane %v117, 1
  %v198 = vrot.slane %v118, 1
  %v199 = vrot.slane %v119, 1
  %v200 = vrot.slane %v120, 1
  %v201 = vrot.slane %v121, 1
  %v202 = vrot.slane %v122, 1
  %v203 = vrot.slane %v123, 1
  %v204 = vrot.slane %v124, 1
  %v205 = vrot.slane %v125, 1
  %v206 = vrot.slane %v126, 1
  %v207 = vrot.slane %v127, 1
  %v208 = vrot.slane %v128, 1
  %v209 = vrot.slane %v129, 1
  %v210 = vrot.slane %v130, 1
  %v211 = vrot.slane %v131, 1
  %v212 = vrot.slane %v132, 1
  %v213 = vrot.slane %v133, 1
  %v214 = vrot.slane %v134, 1
  %v255 = vadd.f32 %v55, %v175
  %v256 = vadd.f32 %v56, %v176
  %v257 = vadd.f32 %v57, %v177
  %v258 = vadd.f32 %v58, %v178
  %v259 = vadd.f32 %v59, %v179
  %v260 = vadd.f32 %v60, %v180
  %v261 = vadd.f32 %v61, %v181
  %v262 = vadd.f32 %v62, %v182
  %v263 = vadd.f32 %v63, %v183
  %v264 = vadd.f32 %v64, %v184
  %v265 = vadd.f32 %v65, %v185
  %v266 = vadd.f32 %v66, %v186
  %v267 = vadd.f32 %v67, %v187
  %v268 = vadd.f32 %v68, %v188
  %v269 = vadd.f32 %v69, %v189
  %v270 = vadd.f32 %v70, %v190
  %v271 = vadd.f32 %v71, %v191
  %v272 = vadd.f32 %v72, %v192
  %v273 = vadd.f32 %v73, %v193
  %v274 = vadd.f32 %v74, %v194
  %v275 = vadd.f32 %v75, %v195
  %v276 = vadd.f32 %v76, %v196
  %v277 = vadd.f32 %v77, %v197
  %v278 = vadd.f32 %v78, %v198
  %v279 = vadd.f32 %v79, %v199
  %v280 = vadd.f32 %v80, %v200
  %v281 = vadd.f32 %v81, %v201
  %v282 = vadd.f32 %v82, %v202
  %v283 = vadd.f32 %v83, %v203
  %v284 = vadd.f32 %v84, %v204
  %v285 = vadd.f32 %v85, %v205
  %v286 = vadd.f32 %v86, %v206
  %v287 = vadd.f32 %v87, %v207
  %v288 = vadd.f32 %v88, %v208
  %v289 = vadd.f32 %v89, %v209
  %v290 = vadd.f32 %v90, %v210
  %v291 = vadd.f32 %v91, %v211
  %v292 = vadd.f32 %v92, %v212
  %v293 = vadd.f32 %v93, %v213
  %v294 = vadd.f32 %v94, %v214
  %v335 = vrot.slane %v55, 2
  %v336 = vrot.slane %v56, 2
  %v337 = vrot.slane %v57, 2
  %v338 = vrot.slane %v58, 2
  %v339 = vrot.slane %v59, 2
  %v340 = vrot.slane %v60, 2
  %v341 = vrot.slane %v61, 2
  %v342 = vrot.slane %v62, 2
  %v343 = vrot.slane %v63, 2
  %v344 = vrot.slane %v64, 2
  %v345 = vrot.slane %v65, 2
  %v346 = vrot.slane %v66, 2
  %v347 = vrot.slane %v67, 2
  %v348 = vrot.slane %v68, 2
  %v349 = vrot.slane %v69, 2
  %v350 = vrot.slane %v70, 2
  %v351 = vrot.slane %v71, 2
  %v352 = vrot.slane %v72, 2
  %v353 = vrot.slane %v73, 2
  %v354 = vrot.slane %v74, 2
  %v355 = vrot.slane %v75, 2
  %v356 = vrot.slane %v76, 2
  %v357 = vrot.slane %v77, 2
  %v358 = vrot.slane %v78, 2
  %v359 = vrot.slane %v79, 2
  %v360 = vrot.slane %v80, 2
  %v361 = vrot.slane %v81, 2
  %v362 = vrot.slane %v82, 2
  %v363 = vrot.slane %v83, 2
  %v364 = vrot.slane %v84, 2
  %v365 = vrot.slane %v85, 2
  %v366 = vrot.slane %v86, 2
  %v367 = vrot.slane %v87, 2
  %v368 = vrot.slane %v88, 2
  %v369 = vrot.slane %v89, 2
  %v370 = vrot.slane %v90, 2
  %v371 = vrot.slane %v91, 2
  %v372 = vrot.slane %v92, 2
  %v373 = vrot.slane %v93, 2
  %v374 = vrot.slane %v94, 2
  %v415 = vadd.f32 %v255, %v335
  %v416 = vadd.f32 %v256, %v336
  %v417 = vadd.f32 %v257, %v337
  %v418 = vadd.f32 %v258, %v338
  %v419 = vadd.f32 %v259, %v339
  %v420 = vadd.f32 %v260, %v340
  %v421 = vadd.f32 %v261, %v341
  %v422 = vadd.f32 %v262, %v342
  %v423 = vadd.f32 %v263, %v343
  %v424 = vadd.f32 %v264, %v344
  %v425 = vadd.f32 %v265, %v345
  %v426 = vadd.f32 %v266, %v346
  %v427 = vadd.f32 %v267, %v347
  %v428 = vadd.f32 %v268, %v348
  %v429 = vadd.f32 %v269, %v349
  %v430 = vadd.f32 %v270, %v350
  %v431 = vadd.f32 %v271, %v351
  %v432 = vadd.f32 %v272, %v352
  %v433 = vadd.f32 %v273, %v353
  %v434 = vadd.f32 %v274, %v354
  %v435 = vadd.f32 %v275, %v355
  %v436 = vadd.f32 %v276, %v356
  %v437 = vadd.f32 %v277, %v357
  %v438 = vadd.f32 %v278, %v358
  %v439 = vadd.f32 %v279, %v359
  %v440 = vadd.f32 %v280, %v360
  %v441 = vadd.f32 %v281, %v361
  %v442 = vadd.f32 %v282, %v362
  %v443 = vadd.f32 %v283, %v363
  %v444 = vadd.f32 %v284, %v364
  %v445 = vadd.f32 %v285, %v365
  %v446 = vadd.f32 %v286, %v366
  %v447 = vadd.f32 %v287, %v367
  %v448 = vadd.f32 %v288, %v368
  %v449 = vadd.f32 %v289, %v369
  %v450 = vadd.f32 %v290, %v370
  %v451 = vadd.f32 %v291, %v371
  %v452 = vadd.f32 %v292, %v372
  %v453 = vadd.f32 %v293, %v373
  %v454 = vadd.f32 %v294, %v374
  %v495 = vcombine.low %v415, %v416
  %v496 = vcombine.low %v417, %v418
  %v497 = vcombine.low %v419, %v420
  %v498 = vcombine.low %v421, %v422
  %v499 = vcombine.low %v423, %v424
  %v500 = vcombine.low %v425, %v426
  %v501 = vcombine.low %v427, %v428
  %v502 = vcombine.low %v429, %v430
  %v503 = vcombine.low %v431, %v432
  %v504 = vcombine.low %v433, %v434
  %v505 = vcombine.low %v435, %v436
  %v506 = vcombine.low %v437, %v438
  %v507 = vcombine.low %v439, %v440
  %v508 = vcombine.low %v441, %v442
  %v509 = vcombine.low %v443, %v444
  %v510 = vcombine.low %v445, %v446
  %v511 = vcombine.low %v447, %v448
  %v512 = vcombine.low %v449, %v450
  %v513 = vcombine.low %v451, %v452
  %v514 = vcombine.low %v453, %v454
  %vm515 = vcmask 31744
  %v516 = vsel %vm515, %v495, 0
  %v518 = vsel %vm515, %v496, 0
  %v520 = vsel %vm515, %v497, 0
  %v522 = vsel %vm515, %v498, 0
  %v524 = vsel %vm515, %v499, 0
  %v526 = vsel %vm515, %v500, 0
  %v528 = vsel %vm515, %v501, 0
  %v530 = vsel %vm515, %v502, 0
  %v532 = vsel %vm515, %v503, 0
  %v534 = vsel %vm515, %v504, 0
  %v536 = vsel %vm515, %v505, 0
  %v538 = vsel %vm515, %v506, 0
  %v540 = vsel %vm515, %v507, 0
  %v542 = vsel %vm515, %v508, 0
  %v544 = vsel %vm515, %v509, 0
  %v546 = vsel %vm515, %v510, 0
  %v548 = vsel %vm515, %v511, 0
  %v550 = vsel %vm515, %v512, 0
  %v552 = vsel %vm515, %v513, 0
  %v554 = vsel %vm515, %v514, 0
  %vm556 = vcmask 1043456
  %v558 = vsel %vm556, %v30, 0
  %560 = vmatprep.subr.mxu0 0.0
  %561 = vmatpush1.msra.mxu0 %v558
  %562 = vmatprep.subr.mxu0 0.0
  %563 = vmatpush1.msra.mxu0 0.0
  %564 = vmatprep.subr.mxu0 0.0
  %565 = vmatpush1.msra.mxu0 0.0
  %566 = vmatprep.subr.mxu0 0.0
  %567 = vmatpush1.msra.mxu0 0.0
  %568 = vmatprep.subr.mxu0 0.0
  %569 = vmatpush1.msra.mxu0 0.0
  %570 = vmatprep.subr.mxu0 0.0
  %571 = vmatpush1.msra.mxu0 0.0
  %572 = vmatprep.subr.mxu0 0.0
  %573 = vmatpush1.msra.mxu0 0.0
  %574 = vmatprep.subr.mxu0 0.0
  %575 = vmatpush1.msra.mxu0 0.0
  %576 = vmatprep.subr.mxu0 0.0
  %577 = vmatpush1.msra.mxu0 0.0
  %578 = vmatprep.subr.mxu0 0.0
  %579 = vmatpush1.msra.mxu0 0.0
  %580 = vmatprep.subr.mxu0 0.0
  %581 = vmatpush1.msra.mxu0 0.0
  %582 = vmatprep.subr.mxu0 0.0
  %583 = vmatpush1.msra.mxu0 0.0
  %584 = vmatprep.subr.mxu0 0.0
  %585 = vmatpush1.msra.mxu0 0.0
  %586 = vmatprep.subr.mxu0 0.0
  %587 = vmatpush1.msra.mxu0 0.0
  %588 = vmatprep.subr.mxu0 0.0
  %589 = vmatpush1.msra.mxu0 0.0
  %590 = vmatprep.subr.mxu0 0.0
  %591 = vmatpush1.msra.mxu0 0.0
  %592 = vmatprep.subr.mxu0 0.0
  %593 = vmatpush1.msra.mxu0 0.0
  %594 = vmatprep.subr.mxu0 0.0
  %595 = vmatpush1.msra.mxu0 0.0
  %596 = vmatprep.subr.mxu0 0.0
  %597 = vmatpush1.msra.mxu0 0.0
  %598 = vmatprep.subr.mxu0 0.0
  %599 = vmatpush1.msra.mxu0 0.0
  %600 = vmatprep.subr.mxu0 0.0
  %601 = vmatpush1.msra.mxu0 0.0
  %602 = vmatprep.subr.mxu0 0.0
  %603 = vmatpush1.msra.mxu0 0.0
  %604 = vmatprep.subr.mxu0 0.0
  %605 = vmatpush1.msra.mxu0 0.0
  %606 = vmatprep.subr.mxu0 0.0
  %607 = vmatpush1.msra.mxu0 0.0
  %608 = vmatprep.subr.mxu0 0.0
  %609 = vmatpush1.msra.mxu0 0.0
  %610 = vmatprep.subr.mxu0 0.0
  %611 = vmatpush1.msra.mxu0 0.0
  %612 = vmatprep.subr.mxu0 0.0
  %613 = vmatpush1.msra.mxu0 0.0
  %614 = vmatprep.subr.mxu0 0.0
  %615 = vmatpush1.msra.mxu0 0.0
  %616 = vmatprep.subr.mxu0 0.0
  %617 = vmatpush1.msra.mxu0 0.0
  %618 = vmatprep.subr.mxu0 0.0
  %619 = vmatpush1.msra.mxu0 0.0
  %620 = vmatprep.subr.mxu0 0.0
  %621 = vmatpush1.msra.mxu0 0.0
  %622 = vmatprep.subr.mxu0 0.0
  %623 = vmatpush1.msra.mxu0 0.0
  %624 = vmatprep.mubr.f32.mxu0 0.0
  %625 = vmatmul.mubr.f32.gmra.mrb[0].mxu0 %v516
  %v626 = vpop.f32.mrb[0].mxu0
  %v627 = vadd.f32 0.0, %v626
  %v628 = vpop.f32.mrb[0].mxu0
  %629 = vmatprep.mubr.f32.mxu0 0.0
  %630 = vmatmul.mubr.f32.gmra.mrb[0].mxu0 %v518
  %v631 = vpop.f32.mrb[0].mxu0
  %v632 = vadd.f32 0.0, %v631
  %v633 = vpop.f32.mrb[0].mxu0
  %634 = vmatprep.mubr.f32.mxu0 0.0
  %635 = vmatmul.mubr.f32.gmra.mrb[0].mxu0 %v520
  %v636 = vpop.f32.mrb[0].mxu0
  %v637 = vadd.f32 0.0, %v636
  %v638 = vpop.f32.mrb[0].mxu0
  %639 = vmatprep.mubr.f32.mxu0 0.0
  %640 = vmatmul.mubr.f32.gmra.mrb[0].mxu0 %v522
  %v641 = vpop.f32.mrb[0].mxu0
  %v642 = vadd.f32 0.0, %v641
  %v643 = vpop.f32.mrb[0].mxu0
  %644 = vmatprep.mubr.f32.mxu0 0.0
  %645 = vmatmul.mubr.f32.gmra.mrb[0].mxu0 %v524
  %v646 = vpop.f32.mrb[0].mxu0
  %v647 = vadd.f32 0.0, %v646
  %v648 = vpop.f32.mrb[0].mxu0
  %649 = vmatprep.mubr.f32.mxu0 0.0
  %650 = vmatmul.mubr.f32.gmra.mrb[0].mxu0 %v526
  %v651 = vpop.f32.mrb[0].mxu0
  %v652 = vadd.f32 0.0, %v651
  %v653 = vpop.f32.mrb[0].mxu0
  %654 = vmatprep.mubr.f32.mxu0 0.0
  %655 = vmatmul.mubr.f32.gmra.mrb[0].mxu0 %v528
  %v656 = vpop.f32.mrb[0].mxu0
  %v657 = vadd.f32 0.0, %v656
  %v658 = vpop.f32.mrb[0].mxu0
  %659 = vmatprep.mubr.f32.mxu0 0.0
  %660 = vmatmul.mubr.f32.gmra.mrb[0].mxu0 %v530
  %v661 = vpop.f32.mrb[0].mxu0
  %v662 = vadd.f32 0.0, %v661
  %v663 = vpop.f32.mrb[0].mxu0
  %664 = vmatprep.mubr.f32.mxu0 0.0
  %665 = vmatmul.mubr.f32.gmra.mrb[0].mxu0 %v532
  %v666 = vpop.f32.mrb[0].mxu0
  %v667 = vadd.f32 0.0, %v666
  %v668 = vpop.f32.mrb[0].mxu0
  %669 = vmatprep.mubr.f32.mxu0 0.0
  %670 = vmatmul.mubr.f32.gmra.mrb[0].mxu0 %v534
  %v671 = vpop.f32.mrb[0].mxu0
  %v672 = vadd.f32 0.0, %v671
  %v673 = vpop.f32.mrb[0].mxu0
  %674 = vmatprep.mubr.f32.mxu0 0.0
  %675 = vmatmul.mubr.f32.gmra.mrb[0].mxu0 %v536
  %v676 = vpop.f32.mrb[0].mxu0
  %v677 = vadd.f32 0.0, %v676
  %v678 = vpop.f32.mrb[0].mxu0
  %679 = vmatprep.mubr.f32.mxu0 0.0
  %680 = vmatmul.mubr.f32.gmra.mrb[0].mxu0 %v538
  %v681 = vpop.f32.mrb[0].mxu0
  %v682 = vadd.f32 0.0, %v681
  %v683 = vpop.f32.mrb[0].mxu0
  %684 = vmatprep.mubr.f32.mxu0 0.0
  %685 = vmatmul.mubr.f32.gmra.mrb[0].mxu0 %v540
  %v686 = vpop.f32.mrb[0].mxu0
  %v687 = vadd.f32 0.0, %v686
  %v688 = vpop.f32.mrb[0].mxu0
  %689 = vmatprep.mubr.f32.mxu0 0.0
  %690 = vmatmul.mubr.f32.gmra.mrb[0].mxu0 %v542
  %v691 = vpop.f32.mrb[0].mxu0
  %v692 = vadd.f32 0.0, %v691
  %v693 = vpop.f32.mrb[0].mxu0
  %694 = vmatprep.mubr.f32.mxu0 0.0
  %695 = vmatmul.mubr.f32.gmra.mrb[0].mxu0 %v544
  %v696 = vpop.f32.mrb[0].mxu0
  %v697 = vadd.f32 0.0, %v696
  %v698 = vpop.f32.mrb[0].mxu0
  %699 = vmatprep.mubr.f32.mxu0 0.0
  %700 = vmatmul.mubr.f32.gmra.mrb[0].mxu0 %v546
  %v701 = vpop.f32.mrb[0].mxu0
  %v702 = vadd.f32 0.0, %v701
  %v703 = vpop.f32.mrb[0].mxu0
  %704 = vmatprep.mubr.f32.mxu0 0.0
  %705 = vmatmul.mubr.f32.gmra.mrb[0].mxu0 %v548
  %v706 = vpop.f32.mrb[0].mxu0
  %v707 = vadd.f32 0.0, %v706
  %v708 = vpop.f32.mrb[0].mxu0
  %709 = vmatprep.mubr.f32.mxu0 0.0
  %710 = vmatmul.mubr.f32.gmra.mrb[0].mxu0 %v550
  %v711 = vpop.f32.mrb[0].mxu0
  %v712 = vadd.f32 0.0, %v711
  %v713 = vpop.f32.mrb[0].mxu0
  %714 = vmatprep.mubr.f32.mxu0 0.0
  %715 = vmatmul.mubr.f32.gmra.mrb[0].mxu0 %v552
  %v716 = vpop.f32.mrb[0].mxu0
  %v717 = vadd.f32 0.0, %v716
  %v718 = vpop.f32.mrb[0].mxu0
  %719 = vmatprep.mubr.f32.mxu0 0.0
  %720 = vmatmul.mubr.f32.gmra.mrb[0].mxu0 %v554
  %v721 = vpop.f32.mrb[0].mxu0
  %v722 = vadd.f32 0.0, %v721
  %v723 = vpop.f32.mrb[0].mxu0
  %724 = vdwg.mxu0
  %v745 = vcombine.high %v627, %v627
  %v746 = vcombine.high %v632, %v632
  %v747 = vcombine.high %v637, %v637
  %v748 = vcombine.high %v642, %v642
  %v749 = vcombine.high %v647, %v647
  %v750 = vcombine.high %v652, %v652
  %v751 = vcombine.high %v657, %v657
  %v752 = vcombine.high %v662, %v662
  %v753 = vcombine.high %v667, %v667
  %v754 = vcombine.high %v672, %v672
  %v755 = vcombine.high %v677, %v677
  %v756 = vcombine.high %v682, %v682
  %v757 = vcombine.high %v687, %v687
  %v758 = vcombine.high %v692, %v692
  %v759 = vcombine.high %v697, %v697
  %v760 = vcombine.high %v702, %v702
  %v761 = vcombine.high %v707, %v707
  %v762 = vcombine.high %v712, %v712
  %v763 = vcombine.high %v717, %v717
  %v764 = vcombine.high %v722, %v722
  %v785 = vmul.f32 %v627, %v627
  %v786 = vmul.f32 %v745, %v745
  %v787 = vmul.f32 %v632, %v632
  %v788 = vmul.f32 %v746, %v746
  %v789 = vmul.f32 %v637, %v637
  %v790 = vmul.f32 %v747, %v747
  %v791 = vmul.f32 %v642, %v642
  %v792 = vmul.f32 %v748, %v748
  %v793 = vmul.f32 %v647, %v647
  %v794 = vmul.f32 %v749, %v749
  %v795 = vmul.f32 %v652, %v652
  %v796 = vmul.f32 %v750, %v750
  %v797 = vmul.f32 %v657, %v657
  %v798 = vmul.f32 %v751, %v751
  %v799 = vmul.f32 %v662, %v662
  %v800 = vmul.f32 %v752, %v752
  %v801 = vmul.f32 %v627, %v647
  %v802 = vmul.f32 %v745, %v749
  %v803 = vmul.f32 %v632, %v652
  %v804 = vmul.f32 %v746, %v750
  %v805 = vmul.f32 %v637, %v657
  %v806 = vmul.f32 %v747, %v751
  %v807 = vmul.f32 %v642, %v662
  %v808 = vmul.f32 %v748, %v752
  %v809 = vsub.f32 %v667, %v785
  %v810 = vsub.f32 %v753, %v786
  %v811 = vsub.f32 %v672, %v787
  %v812 = vsub.f32 %v754, %v788
  %v813 = vsub.f32 %v677, %v789
  %v814 = vsub.f32 %v755, %v790
  %v815 = vsub.f32 %v682, %v791
  %v816 = vsub.f32 %v756, %v792
  %v817 = vsub.f32 %v687, %v793
  %v818 = vsub.f32 %v757, %v794
  %v819 = vsub.f32 %v692, %v795
  %v820 = vsub.f32 %v758, %v796
  %v821 = vsub.f32 %v697, %v797
  %v822 = vsub.f32 %v759, %v798
  %v823 = vsub.f32 %v702, %v799
  %v824 = vsub.f32 %v760, %v800
  %v825 = vsub.f32 %v707, %v801
  %v826 = vsub.f32 %v761, %v802
  %v827 = vsub.f32 %v712, %v803
  %v828 = vsub.f32 %v762, %v804
  %v829 = vsub.f32 %v717, %v805
  %v830 = vsub.f32 %v763, %v806
  %v831 = vsub.f32 %v722, %v807
  %v832 = vsub.f32 %v764, %v808
  %v833 = vmul.f32 %v801, 2.0
  %v834 = vmul.f32 %v802, 2.0
  %v835 = vmul.f32 %v803, 2.0
  %v836 = vmul.f32 %v804, 2.0
  %v837 = vmul.f32 %v805, 2.0
  %v838 = vmul.f32 %v806, 2.0
  %v839 = vmul.f32 %v807, 2.0
  %v840 = vmul.f32 %v808, 2.0
  %v841 = vadd.f32 %v833, 0.0001
  %v842 = vadd.f32 %v834, 0.0001
  %v843 = vadd.f32 %v835, 0.0001
  %v844 = vadd.f32 %v836, 0.0001
  %v845 = vadd.f32 %v837, 0.0001
  %v846 = vadd.f32 %v838, 0.0001
  %v847 = vadd.f32 %v839, 0.0001
  %v848 = vadd.f32 %v840, 0.0001
  %v849 = vmul.f32 %v825, 2.0
  %v850 = vmul.f32 %v826, 2.0
  %v851 = vmul.f32 %v827, 2.0
  %v852 = vmul.f32 %v828, 2.0
  %v853 = vmul.f32 %v829, 2.0
  %v854 = vmul.f32 %v830, 2.0
  %v855 = vmul.f32 %v831, 2.0
  %v856 = vmul.f32 %v832, 2.0
  %v857 = vadd.f32 %v849, 0.0009
  %v858 = vadd.f32 %v850, 0.0009
  %v859 = vadd.f32 %v851, 0.0009
  %v860 = vadd.f32 %v852, 0.0009
  %v861 = vadd.f32 %v853, 0.0009
  %v862 = vadd.f32 %v854, 0.0009
  %v863 = vadd.f32 %v855, 0.0009
  %v864 = vadd.f32 %v856, 0.0009
  %v865 = vmul.f32 %v841, %v857
  %v866 = vmul.f32 %v842, %v858
  %v867 = vmul.f32 %v843, %v859
  %v868 = vmul.f32 %v844, %v860
  %v869 = vmul.f32 %v845, %v861
  %v870 = vmul.f32 %v846, %v862
  %v871 = vmul.f32 %v847, %v863
  %v872 = vmul.f32 %v848, %v864
  %v873 = vadd.f32 %v785, %v793
  %v874 = vadd.f32 %v786, %v794
  %v875 = vadd.f32 %v787, %v795
  %v876 = vadd.f32 %v788, %v796
  %v877 = vadd.f32 %v789, %v797
  %v878 = vadd.f32 %v790, %v798
  %v879 = vadd.f32 %v791, %v799
  %v880 = vadd.f32 %v792, %v800
  %v881 = vadd.f32 %v873, 0.0001
  %v882 = vadd.f32 %v874, 0.0001
  %v883 = vadd.f32 %v875, 0.0001
  %v884 = vadd.f32 %v876, 0.0001
  %v885 = vadd.f32 %v877, 0.0001
  %v886 = vadd.f32 %v878, 0.0001
  %v887 = vadd.f32 %v879, 0.0001
  %v888 = vadd.f32 %v880, 0.0001
  %v889 = vadd.f32 %v809, %v817
  %v890 = vadd.f32 %v810, %v818
  %v891 = vadd.f32 %v811, %v819
  %v892 = vadd.f32 %v812, %v820
  %v893 = vadd.f32 %v813, %v821
  %v894 = vadd.f32 %v814, %v822
  %v895 = vadd.f32 %v815, %v823
  %v896 = vadd.f32 %v816, %v824
  %v897 = vadd.f32 %v889, 0.0009
  %v898 = vadd.f32 %v890, 0.0009
  %v899 = vadd.f32 %v891, 0.0009
  %v900 = vadd.f32 %v892, 0.0009
  %v901 = vadd.f32 %v893, 0.0009
  %v902 = vadd.f32 %v894, 0.0009
  %v903 = vadd.f32 %v895, 0.0009
  %v904 = vadd.f32 %v896, 0.0009
  %v905 = vmul.f32 %v881, %v897
  %v906 = vmul.f32 %v882, %v898
  %v907 = vmul.f32 %v883, %v899
  %v908 = vmul.f32 %v884, %v900
  %v909 = vmul.f32 %v885, %v901
  %v910 = vmul.f32 %v886, %v902
  %v911 = vmul.f32 %v887, %v903
  %v912 = vmul.f32 %v888, %v904
  %v913 = vrcp.pop %v905
  %v914 = vrcp.pop %v906
  %v915 = vrcp.pop %v907
  %v916 = vrcp.pop %v908
  %v917 = vrcp.pop %v909
  %v918 = vrcp.pop %v910
  %v919 = vrcp.pop %v911
  %v920 = vrcp.pop %v912
  %v921 = vmul.f32 %v865, %v913
  %v922 = vmul.f32 %v866, %v914
  %v923 = vmul.f32 %v867, %v915
  %v924 = vmul.f32 %v868, %v916
  %v925 = vmul.f32 %v869, %v917
  %v926 = vmul.f32 %v870, %v918
  %v927 = vmul.f32 %v871, %v919
  %v928 = vmul.f32 %v872, %v920
  %vm929 = vcmask 27648
  %v930 = vsel %vm929, %v921, 0.0
  %v931 = vsel %vm929, %v922, 0.0
  %v932 = vadd.f32 %v930, %v931
  %v933 = vsel %vm929, %v923, 0.0
  %v934 = vadd.f32 %v932, %v933
  %v935 = vsel %vm929, %v924, 0.0
  %v936 = vadd.f32 %v934, %v935
  %v937 = vsel %vm929, %v925, 0.0
  %v938 = vadd.f32 %v936, %v937
  %v939 = vsel %vm929, %v926, 0.0
  %v940 = vadd.f32 %v938, %v939
  %v941 = vsel %vm929, %v927, 0.0
  %v942 = vadd.f32 %v940, %v941
  %v943 = vsel %vm929, %v928, 0.0
  %v944 = vadd.f32 %v942, %v943
  %945 = vadd.xlane.f32.xlu0 %v944
  %v946 = vpop.xlane.xlu0 %945
  %v947 = vrot.slane %v946, 4
  %v948 = vadd.f32 %v946, %v947
  %v949 = vrot.slane %v948, 2
  %v950 = vadd.f32 %v948, %v949
  %v951 = vrot.slane %v950, 1
  %v952 = vadd.f32 %v950, %v951
  %s953 = vtos %v952
  %s954 = smul.f32 %s953, 0.0078125
  %v955 = vstv %s954
  %956 = vst [vmem:[%s3] sm:$0xff] %v955
  // Predicated region
  $region14: #{_lambda_.5} parent=0 // pred_check
    _
  $region15: #{_lambda_.5} parent=0 // pred_check_branch
    %958 = sbr.rel (0) target = $region17
  $region16: #{_lambda_.5} parent=0 // pred_region
    _
  $region17: #{_lambda_.5} parent=0 // pred_fallthru
    _
  // Predicated region
  $region18: #{_lambda_.5} parent=0 // pred_check
    _
  $region19: #{_lambda_.5} parent=0 // pred_check_branch
    %960 = sbr.rel (0) target = $region21
  $region20: #{_lambda_.5} parent=0 // pred_region
    _
  $region21: #{_lambda_.5} parent=0 // pred_fallthru
    _

// kernel: _lambda_.4
$region0: #{_lambda_.4}
  #allocation0 [shape = 'u32[]', space=smem, size = 0x4, offset = 0x4, fixed_abs, tag = 'smem constant byte address 0x4 - core index']
  #allocation1 [shape = 'u32[144,128]{1,0:T(1,128)}', space=vmem, size = 0x12000, scoped, tag = 'internal scratch']
  %s0 = inlined_call_operand.vmem [shape: f32[8,12,8], index: 0, kind: input, shape index: {}]
  %s1 = inlined_call_operand.vmem [shape: f32[8,12,8], index: 1, kind: input, shape index: {}]
  %s2 = inlined_call_operand.vmem [shape: f32[8,8], index: 2, kind: input, shape index: {}]
  %s3 = inlined_call_operand.vmem [shape: f32[1,8,128], index: 3, kind: output, shape index: {}]
  %s4 = sld [smem:[#allocation0]]
  $region22: #{_lambda_.4} parent=0
    _
  %s6 = ssub.s32 1, %s4
  %s7 = scalar_select 0, %s6, %s4
  // Predicated region
  $region2: #{_lambda_.4} parent=0 // pred_check
    _
  $region3: #{_lambda_.4} parent=0 // pred_check_branch
    %9 = sbr.rel (0) target = $region5
  $region4: #{_lambda_.4} parent=0 // pred_region
    _
  $region5: #{_lambda_.4} parent=0 // pred_fallthru
    _
  // Predicated region
  $region6: #{_lambda_.4} parent=0 // pred_check
    _
  $region7: #{_lambda_.4} parent=0 // pred_check_branch
    %11 = sbr.rel (0) target = $region9
  $region8: #{_lambda_.4} parent=0 // pred_region
    _
  $region9: #{_lambda_.4} parent=0 // pred_fallthru
    _
  // Predicated region
  $region10: #{_lambda_.4} parent=0 // pred_check
    _
  $region11: #{_lambda_.4} parent=0 // pred_check_branch
    %13 = sbr.rel (0) target = $region13
  $region12: #{_lambda_.4} parent=0 // pred_region
    _
  $region13: #{_lambda_.4} parent=0 // pred_fallthru
    _
  %v14 = vld [vmem:[%s0] sm:$0xff]
  %v15 = vld [vmem:[%s0 + $0x8] sm:$0xf]
  %v16 = vld [vmem:[%s0 + $0x10] sm:$0xff]
  %v17 = vld [vmem:[%s0 + $0x18] sm:$0xf]
  %v18 = vld [vmem:[%s0 + $0x20] sm:$0xff]
  %v19 = vld [vmem:[%s0 + $0x28] sm:$0xf]
  %v20 = vld [vmem:[%s0 + $0x30] sm:$0xff]
  %v21 = vld [vmem:[%s0 + $0x38] sm:$0xf]
  %v22 = vld [vmem:[%s0 + $0x40] sm:$0xff]
  %v23 = vld [vmem:[%s0 + $0x48] sm:$0xf]
  %v24 = vld [vmem:[%s0 + $0x50] sm:$0xff]
  %v25 = vld [vmem:[%s0 + $0x58] sm:$0xf]
  %v26 = vld [vmem:[%s0 + $0x60] sm:$0xff]
  %v27 = vld [vmem:[%s0 + $0x68] sm:$0xf]
  %v28 = vld [vmem:[%s0 + $0x70] sm:$0xff]
  %v29 = vld [vmem:[%s0 + $0x78] sm:$0xf]
  %v30 = vld [vmem:[%s1] sm:$0xff]
  %v31 = vld [vmem:[%s1 + $0x8] sm:$0xf]
  %v32 = vld [vmem:[%s1 + $0x10] sm:$0xff]
  %v33 = vld [vmem:[%s1 + $0x18] sm:$0xf]
  %v34 = vld [vmem:[%s1 + $0x20] sm:$0xff]
  %v35 = vld [vmem:[%s1 + $0x28] sm:$0xf]
  %v36 = vld [vmem:[%s1 + $0x30] sm:$0xff]
  %v37 = vld [vmem:[%s1 + $0x38] sm:$0xf]
  %v38 = vld [vmem:[%s1 + $0x40] sm:$0xff]
  %v39 = vld [vmem:[%s1 + $0x48] sm:$0xf]
  %v40 = vld [vmem:[%s1 + $0x50] sm:$0xff]
  %v41 = vld [vmem:[%s1 + $0x58] sm:$0xf]
  %v42 = vld [vmem:[%s1 + $0x60] sm:$0xff]
  %v43 = vld [vmem:[%s1 + $0x68] sm:$0xf]
  %v44 = vld [vmem:[%s1 + $0x70] sm:$0xff]
  %v45 = vld [vmem:[%s1 + $0x78] sm:$0xf]
  %v46 = vld [vmem:[%s2] sm:$0xff]
  %v47 = vmul.f32 %v14, %v14
  %v48 = vmul.f32 %v15, %v15
  %v49 = vmul.f32 %v16, %v16
  %v50 = vmul.f32 %v17, %v17
  %v51 = vmul.f32 %v18, %v18
  %v52 = vmul.f32 %v19, %v19
  %v53 = vmul.f32 %v20, %v20
  %v54 = vmul.f32 %v21, %v21
  %v55 = vmul.f32 %v22, %v22
  %v56 = vmul.f32 %v23, %v23
  %v57 = vmul.f32 %v24, %v24
  %v58 = vmul.f32 %v25, %v25
  %v59 = vmul.f32 %v26, %v26
  %v60 = vmul.f32 %v27, %v27
  %v61 = vmul.f32 %v28, %v28
  %v62 = vmul.f32 %v29, %v29
  %v63 = vmul.f32 %v30, %v30
  %v64 = vmul.f32 %v31, %v31
  %v65 = vmul.f32 %v32, %v32
  %v66 = vmul.f32 %v33, %v33
  %v67 = vmul.f32 %v34, %v34
  %v68 = vmul.f32 %v35, %v35
  %v69 = vmul.f32 %v36, %v36
  %v70 = vmul.f32 %v37, %v37
  %v71 = vmul.f32 %v38, %v38
  %v72 = vmul.f32 %v39, %v39
  %v73 = vmul.f32 %v40, %v40
  %v74 = vmul.f32 %v41, %v41
  %v75 = vmul.f32 %v42, %v42
  %v76 = vmul.f32 %v43, %v43
  %v77 = vmul.f32 %v44, %v44
  %v78 = vmul.f32 %v45, %v45
  %v79 = vmul.f32 %v14, %v30
  %v80 = vmul.f32 %v15, %v31
  %v81 = vmul.f32 %v16, %v32
  %v82 = vmul.f32 %v17, %v33
  %v83 = vmul.f32 %v18, %v34
  %v84 = vmul.f32 %v19, %v35
  %v85 = vmul.f32 %v20, %v36
  %v86 = vmul.f32 %v21, %v37
  %v87 = vmul.f32 %v22, %v38
  %v88 = vmul.f32 %v23, %v39
  %v89 = vmul.f32 %v24, %v40
  %v90 = vmul.f32 %v25, %v41
  %v91 = vmul.f32 %v26, %v42
  %v92 = vmul.f32 %v27, %v43
  %v93 = vmul.f32 %v28, %v44
  %v94 = vmul.f32 %v29, %v45
  %v95 = vmul.f32 %v14, 0.120078385
  %v96 = vmul.f32 %v16, 0.120078385
  %v97 = vmul.f32 %v18, 0.120078385
  %v98 = vmul.f32 %v20, 0.120078385
  %v99 = vmul.f32 %v22, 0.120078385
  %v100 = vmul.f32 %v24, 0.120078385
  %v101 = vmul.f32 %v26, 0.120078385
  %v102 = vmul.f32 %v28, 0.120078385
  %v103 = vmul.f32 %v30, 0.120078385
  %v104 = vmul.f32 %v32, 0.120078385
  %v105 = vmul.f32 %v34, 0.120078385
  %v106 = vmul.f32 %v36, 0.120078385
  %v107 = vmul.f32 %v38, 0.120078385
  %v108 = vmul.f32 %v40, 0.120078385
  %v109 = vmul.f32 %v42, 0.120078385
  %v110 = vmul.f32 %v44, 0.120078385
  %v111 = vmul.f32 %v47, 0.120078385
  %v112 = vmul.f32 %v49, 0.120078385
  %v113 = vmul.f32 %v51, 0.120078385
  %v114 = vmul.f32 %v53, 0.120078385
  %v115 = vmul.f32 %v55, 0.120078385
  %v116 = vmul.f32 %v57, 0.120078385
  %v117 = vmul.f32 %v59, 0.120078385
  %v118 = vmul.f32 %v61, 0.120078385
  %v119 = vmul.f32 %v63, 0.120078385
  %v120 = vmul.f32 %v65, 0.120078385
  %v121 = vmul.f32 %v67, 0.120078385
  %v122 = vmul.f32 %v69, 0.120078385
  %v123 = vmul.f32 %v71, 0.120078385
  %v124 = vmul.f32 %v73, 0.120078385
  %v125 = vmul.f32 %v75, 0.120078385
  %v126 = vmul.f32 %v77, 0.120078385
  %v127 = vmul.f32 %v79, 0.120078385
  %v128 = vmul.f32 %v81, 0.120078385
  %v129 = vmul.f32 %v83, 0.120078385
  %v130 = vmul.f32 %v85, 0.120078385
  %v131 = vmul.f32 %v87, 0.120078385
  %v132 = vmul.f32 %v89, 0.120078385
  %v133 = vmul.f32 %v91, 0.120078385
  %v134 = vmul.f32 %v93, 0.120078385
  %v135 = vmul.f32 %v14, 0.23388076
  %v136 = vmul.f32 %v15, 0.23388076
  %v137 = vmul.f32 %v16, 0.23388076
  %v138 = vmul.f32 %v17, 0.23388076
  %v139 = vmul.f32 %v18, 0.23388076
  %v140 = vmul.f32 %v19, 0.23388076
  %v141 = vmul.f32 %v20, 0.23388076
  %v142 = vmul.f32 %v21, 0.23388076
  %v143 = vmul.f32 %v22, 0.23388076
  %v144 = vmul.f32 %v23, 0.23388076
  %v145 = vmul.f32 %v24, 0.23388076
  %v146 = vmul.f32 %v25, 0.23388076
  %v147 = vmul.f32 %v26, 0.23388076
  %v148 = vmul.f32 %v27, 0.23388076
  %v149 = vmul.f32 %v28, 0.23388076
  %v150 = vmul.f32 %v29, 0.23388076
  %v151 = vmul.f32 %v30, 0.23388076
  %v152 = vmul.f32 %v31, 0.23388076
  %v153 = vmul.f32 %v32, 0.23388076
  %v154 = vmul.f32 %v33, 0.23388076
  %v155 = vmul.f32 %v34, 0.23388076
  %v156 = vmul.f32 %v35, 0.23388076
  %v157 = vmul.f32 %v36, 0.23388076
  %v158 = vmul.f32 %v37, 0.23388076
  %v159 = vmul.f32 %v38, 0.23388076
  %v160 = vmul.f32 %v39, 0.23388076
  %v161 = vmul.f32 %v40, 0.23388076
  %v162 = vmul.f32 %v41, 0.23388076
  %v163 = vmul.f32 %v42, 0.23388076
  %v164 = vmul.f32 %v43, 0.23388076
  %v165 = vmul.f32 %v44, 0.23388076
  %v166 = vmul.f32 %v45, 0.23388076
  %v167 = vmul.f32 %v47, 0.23388076
  %v168 = vmul.f32 %v48, 0.23388076
  %v169 = vmul.f32 %v49, 0.23388076
  %v170 = vmul.f32 %v50, 0.23388076
  %v171 = vmul.f32 %v51, 0.23388076
  %v172 = vmul.f32 %v52, 0.23388076
  %v173 = vmul.f32 %v53, 0.23388076
  %v174 = vmul.f32 %v54, 0.23388076
  %v175 = vmul.f32 %v55, 0.23388076
  %v176 = vmul.f32 %v56, 0.23388076
  %v177 = vmul.f32 %v57, 0.23388076
  %v178 = vmul.f32 %v58, 0.23388076
  %v179 = vmul.f32 %v59, 0.23388076
  %v180 = vmul.f32 %v60, 0.23388076
  %v181 = vmul.f32 %v61, 0.23388076
  %v182 = vmul.f32 %v62, 0.23388076
  %v183 = vmul.f32 %v63, 0.23388076
  %v184 = vmul.f32 %v64, 0.23388076
  %v185 = vmul.f32 %v65, 0.23388076
  %v186 = vmul.f32 %v66, 0.23388076
  %v187 = vmul.f32 %v67, 0.23388076
  %v188 = vmul.f32 %v68, 0.23388076
  %v189 = vmul.f32 %v69, 0.23388076
  %v190 = vmul.f32 %v70, 0.23388076
  %v191 = vmul.f32 %v71, 0.23388076
  %v192 = vmul.f32 %v72, 0.23388076
  %v193 = vmul.f32 %v73, 0.23388076
  %v194 = vmul.f32 %v74, 0.23388076
  %v195 = vmul.f32 %v75, 0.23388076
  %v196 = vmul.f32 %v76, 0.23388076
  %v197 = vmul.f32 %v77, 0.23388076
  %v198 = vmul.f32 %v78, 0.23388076
  %v199 = vmul.f32 %v79, 0.23388076
  %v200 = vmul.f32 %v80, 0.23388076
  %v201 = vmul.f32 %v81, 0.23388076
  %v202 = vmul.f32 %v82, 0.23388076
  %v203 = vmul.f32 %v83, 0.23388076
  %v204 = vmul.f32 %v84, 0.23388076
  %v205 = vmul.f32 %v85, 0.23388076
  %v206 = vmul.f32 %v86, 0.23388076
  %v207 = vmul.f32 %v87, 0.23388076
  %v208 = vmul.f32 %v88, 0.23388076
  %v209 = vmul.f32 %v89, 0.23388076
  %v210 = vmul.f32 %v90, 0.23388076
  %v211 = vmul.f32 %v91, 0.23388076
  %v212 = vmul.f32 %v92, 0.23388076
  %v213 = vmul.f32 %v93, 0.23388076
  %v214 = vmul.f32 %v94, 0.23388076
  %vm295 = vcmask 1046528
  %v296 = vrot.slane %v135, 1
  %v297 = vrot.slane %v136, 1
  %v298 = vsel %vm295, %v296, %v297
  %v299 = vrot.slane %v137, 1
  %v300 = vrot.slane %v138, 1
  %v301 = vsel %vm295, %v299, %v300
  %v302 = vrot.slane %v139, 1
  %v303 = vrot.slane %v140, 1
  %v304 = vsel %vm295, %v302, %v303
  %v305 = vrot.slane %v141, 1
  %v306 = vrot.slane %v142, 1
  %v307 = vsel %vm295, %v305, %v306
  %v308 = vrot.slane %v143, 1
  %v309 = vrot.slane %v144, 1
  %v310 = vsel %vm295, %v308, %v309
  %v311 = vrot.slane %v145, 1
  %v312 = vrot.slane %v146, 1
  %v313 = vsel %vm295, %v311, %v312
  %v314 = vrot.slane %v147, 1
  %v315 = vrot.slane %v148, 1
  %v316 = vsel %vm295, %v314, %v315
  %v317 = vrot.slane %v149, 1
  %v318 = vrot.slane %v150, 1
  %v319 = vsel %vm295, %v317, %v318
  %v320 = vrot.slane %v151, 1
  %v321 = vrot.slane %v152, 1
  %v322 = vsel %vm295, %v320, %v321
  %v323 = vrot.slane %v153, 1
  %v324 = vrot.slane %v154, 1
  %v325 = vsel %vm295, %v323, %v324
  %v326 = vrot.slane %v155, 1
  %v327 = vrot.slane %v156, 1
  %v328 = vsel %vm295, %v326, %v327
  %v329 = vrot.slane %v157, 1
  %v330 = vrot.slane %v158, 1
  %v331 = vsel %vm295, %v329, %v330
  %v332 = vrot.slane %v159, 1
  %v333 = vrot.slane %v160, 1
  %v334 = vsel %vm295, %v332, %v333
  %v335 = vrot.slane %v161, 1
  %v336 = vrot.slane %v162, 1
  %v337 = vsel %vm295, %v335, %v336
  %v338 = vrot.slane %v163, 1
  %v339 = vrot.slane %v164, 1
  %v340 = vsel %vm295, %v338, %v339
  %v341 = vrot.slane %v165, 1
  %v342 = vrot.slane %v166, 1
  %v343 = vsel %vm295, %v341, %v342
  %v344 = vrot.slane %v167, 1
  %v345 = vrot.slane %v168, 1
  %v346 = vsel %vm295, %v344, %v345
  %v347 = vrot.slane %v169, 1
  %v348 = vrot.slane %v170, 1
  %v349 = vsel %vm295, %v347, %v348
  %v350 = vrot.slane %v171, 1
  %v351 = vrot.slane %v172, 1
  %v352 = vsel %vm295, %v350, %v351
  %v353 = vrot.slane %v173, 1
  %v354 = vrot.slane %v174, 1
  %v355 = vsel %vm295, %v353, %v354
  %v356 = vrot.slane %v175, 1
  %v357 = vrot.slane %v176, 1
  %v358 = vsel %vm295, %v356, %v357
  %v359 = vrot.slane %v177, 1
  %v360 = vrot.slane %v178, 1
  %v361 = vsel %vm295, %v359, %v360
  %v362 = vrot.slane %v179, 1
  %v363 = vrot.slane %v180, 1
  %v364 = vsel %vm295, %v362, %v363
  %v365 = vrot.slane %v181, 1
  %v366 = vrot.slane %v182, 1
  %v367 = vsel %vm295, %v365, %v366
  %v368 = vrot.slane %v183, 1
  %v369 = vrot.slane %v184, 1
  %v370 = vsel %vm295, %v368, %v369
  %v371 = vrot.slane %v185, 1
  %v372 = vrot.slane %v186, 1
  %v373 = vsel %vm295, %v371, %v372
  %v374 = vrot.slane %v187, 1
  %v375 = vrot.slane %v188, 1
  %v376 = vsel %vm295, %v374, %v375
  %v377 = vrot.slane %v189, 1
  %v378 = vrot.slane %v190, 1
  %v379 = vsel %vm295, %v377, %v378
  %v380 = vrot.slane %v191, 1
  %v381 = vrot.slane %v192, 1
  %v382 = vsel %vm295, %v380, %v381
  %v383 = vrot.slane %v193, 1
  %v384 = vrot.slane %v194, 1
  %v385 = vsel %vm295, %v383, %v384
  %v386 = vrot.slane %v195, 1
  %v387 = vrot.slane %v196, 1
  %v388 = vsel %vm295, %v386, %v387
  %v389 = vrot.slane %v197, 1
  %v390 = vrot.slane %v198, 1
  %v391 = vsel %vm295, %v389, %v390
  %v392 = vrot.slane %v199, 1
  %v393 = vrot.slane %v200, 1
  %v394 = vsel %vm295, %v392, %v393
  %v395 = vrot.slane %v201, 1
  %v396 = vrot.slane %v202, 1
  %v397 = vsel %vm295, %v395, %v396
  %v398 = vrot.slane %v203, 1
  %v399 = vrot.slane %v204, 1
  %v400 = vsel %vm295, %v398, %v399
  %v401 = vrot.slane %v205, 1
  %v402 = vrot.slane %v206, 1
  %v403 = vsel %vm295, %v401, %v402
  %v404 = vrot.slane %v207, 1
  %v405 = vrot.slane %v208, 1
  %v406 = vsel %vm295, %v404, %v405
  %v407 = vrot.slane %v209, 1
  %v408 = vrot.slane %v210, 1
  %v409 = vsel %vm295, %v407, %v408
  %v410 = vrot.slane %v211, 1
  %v411 = vrot.slane %v212, 1
  %v412 = vsel %vm295, %v410, %v411
  %v413 = vrot.slane %v213, 1
  %v414 = vrot.slane %v214, 1
  %v415 = vsel %vm295, %v413, %v414
  %v456 = vadd.f32 %v95, %v298
  %v457 = vadd.f32 %v96, %v301
  %v458 = vadd.f32 %v97, %v304
  %v459 = vadd.f32 %v98, %v307
  %v460 = vadd.f32 %v99, %v310
  %v461 = vadd.f32 %v100, %v313
  %v462 = vadd.f32 %v101, %v316
  %v463 = vadd.f32 %v102, %v319
  %v464 = vadd.f32 %v103, %v322
  %v465 = vadd.f32 %v104, %v325
  %v466 = vadd.f32 %v105, %v328
  %v467 = vadd.f32 %v106, %v331
  %v468 = vadd.f32 %v107, %v334
  %v469 = vadd.f32 %v108, %v337
  %v470 = vadd.f32 %v109, %v340
  %v471 = vadd.f32 %v110, %v343
  %v472 = vadd.f32 %v111, %v346
  %v473 = vadd.f32 %v112, %v349
  %v474 = vadd.f32 %v113, %v352
  %v475 = vadd.f32 %v114, %v355
  %v476 = vadd.f32 %v115, %v358
  %v477 = vadd.f32 %v116, %v361
  %v478 = vadd.f32 %v117, %v364
  %v479 = vadd.f32 %v118, %v367
  %v480 = vadd.f32 %v119, %v370
  %v481 = vadd.f32 %v120, %v373
  %v482 = vadd.f32 %v121, %v376
  %v483 = vadd.f32 %v122, %v379
  %v484 = vadd.f32 %v123, %v382
  %v485 = vadd.f32 %v124, %v385
  %v486 = vadd.f32 %v125, %v388
  %v487 = vadd.f32 %v126, %v391
  %v488 = vadd.f32 %v127, %v394
  %v489 = vadd.f32 %v128, %v397
  %v490 = vadd.f32 %v129, %v400
  %v491 = vadd.f32 %v130, %v403
  %v492 = vadd.f32 %v131, %v406
  %v493 = vadd.f32 %v132, %v409
  %v494 = vadd.f32 %v133, %v412
  %v495 = vadd.f32 %v134, %v415
  %v496 = vmul.f32 %v14, 0.2920817
  %v497 = vmul.f32 %v15, 0.2920817
  %v498 = vmul.f32 %v16, 0.2920817
  %v499 = vmul.f32 %v17, 0.2920817
  %v500 = vmul.f32 %v18, 0.2920817
  %v501 = vmul.f32 %v19, 0.2920817
  %v502 = vmul.f32 %v20, 0.2920817
  %v503 = vmul.f32 %v21, 0.2920817
  %v504 = vmul.f32 %v22, 0.2920817
  %v505 = vmul.f32 %v23, 0.2920817
  %v506 = vmul.f32 %v24, 0.2920817
  %v507 = vmul.f32 %v25, 0.2920817
  %v508 = vmul.f32 %v26, 0.2920817
  %v509 = vmul.f32 %v27, 0.2920817
  %v510 = vmul.f32 %v28, 0.2920817
  %v511 = vmul.f32 %v29, 0.2920817
  %v512 = vmul.f32 %v30, 0.2920817
  %v513 = vmul.f32 %v31, 0.2920817
  %v514 = vmul.f32 %v32, 0.2920817
  %v515 = vmul.f32 %v33, 0.2920817
  %v516 = vmul.f32 %v34, 0.2920817
  %v517 = vmul.f32 %v35, 0.2920817
  %v518 = vmul.f32 %v36, 0.2920817
  %v519 = vmul.f32 %v37, 0.2920817
  %v520 = vmul.f32 %v38, 0.2920817
  %v521 = vmul.f32 %v39, 0.2920817
  %v522 = vmul.f32 %v40, 0.2920817
  %v523 = vmul.f32 %v41, 0.2920817
  %v524 = vmul.f32 %v42, 0.2920817
  %v525 = vmul.f32 %v43, 0.2920817
  %v526 = vmul.f32 %v44, 0.2920817
  %v527 = vmul.f32 %v45, 0.2920817
  %v528 = vmul.f32 %v47, 0.2920817
  %v529 = vmul.f32 %v48, 0.2920817
  %v530 = vmul.f32 %v49, 0.2920817
  %v531 = vmul.f32 %v50, 0.2920817
  %v532 = vmul.f32 %v51, 0.2920817
  %v533 = vmul.f32 %v52, 0.2920817
  %v534 = vmul.f32 %v53, 0.2920817
  %v535 = vmul.f32 %v54, 0.2920817
  %v536 = vmul.f32 %v55, 0.2920817
  %v537 = vmul.f32 %v56, 0.2920817
  %v538 = vmul.f32 %v57, 0.2920817
  %v539 = vmul.f32 %v58, 0.2920817
  %v540 = vmul.f32 %v59, 0.2920817
  %v541 = vmul.f32 %v60, 0.2920817
  %v542 = vmul.f32 %v61, 0.2920817
  %v543 = vmul.f32 %v62, 0.2920817
  %v544 = vmul.f32 %v63, 0.2920817
  %v545 = vmul.f32 %v64, 0.2920817
  %v546 = vmul.f32 %v65, 0.2920817
  %v547 = vmul.f32 %v66, 0.2920817
  %v548 = vmul.f32 %v67, 0.2920817
  %v549 = vmul.f32 %v68, 0.2920817
  %v550 = vmul.f32 %v69, 0.2920817
  %v551 = vmul.f32 %v70, 0.2920817
  %v552 = vmul.f32 %v71, 0.2920817
  %v553 = vmul.f32 %v72, 0.2920817
  %v554 = vmul.f32 %v73, 0.2920817
  %v555 = vmul.f32 %v74, 0.2920817
  %v556 = vmul.f32 %v75, 0.2920817
  %v557 = vmul.f32 %v76, 0.2920817
  %v558 = vmul.f32 %v77, 0.2920817
  %v559 = vmul.f32 %v78, 0.2920817
  %v560 = vmul.f32 %v79, 0.2920817
  %v561 = vmul.f32 %v80, 0.2920817
  %v562 = vmul.f32 %v81, 0.2920817
  %v563 = vmul.f32 %v82, 0.2920817
  %v564 = vmul.f32 %v83, 0.2920817
  %v565 = vmul.f32 %v84, 0.2920817
  %v566 = vmul.f32 %v85, 0.2920817
  %v567 = vmul.f32 %v86, 0.2920817
  %v568 = vmul.f32 %v87, 0.2920817
  %v569 = vmul.f32 %v88, 0.2920817
  %v570 = vmul.f32 %v89, 0.2920817
  %v571 = vmul.f32 %v90, 0.2920817
  %v572 = vmul.f32 %v91, 0.2920817
  %v573 = vmul.f32 %v92, 0.2920817
  %v574 = vmul.f32 %v93, 0.2920817
  %v575 = vmul.f32 %v94, 0.2920817
  %vm656 = vcmask 1045504
  %v657 = vrot.slane %v496, 2
  %v658 = vrot.slane %v497, 2
  %v659 = vsel %vm656, %v657, %v658
  %v660 = vrot.slane %v498, 2
  %v661 = vrot.slane %v499, 2
  %v662 = vsel %vm656, %v660, %v661
  %v663 = vrot.slane %v500, 2
  %v664 = vrot.slane %v501, 2
  %v665 = vsel %vm656, %v663, %v664
  %v666 = vrot.slane %v502, 2
  %v667 = vrot.slane %v503, 2
  %v668 = vsel %vm656, %v666, %v667
  %v669 = vrot.slane %v504, 2
  %v670 = vrot.slane %v505, 2
  %v671 = vsel %vm656, %v669, %v670
  %v672 = vrot.slane %v506, 2
  %v673 = vrot.slane %v507, 2
  %v674 = vsel %vm656, %v672, %v673
  %v675 = vrot.slane %v508, 2
  %v676 = vrot.slane %v509, 2
  %v677 = vsel %vm656, %v675, %v676
  %v678 = vrot.slane %v510, 2
  %v679 = vrot.slane %v511, 2
  %v680 = vsel %vm656, %v678, %v679
  %v681 = vrot.slane %v512, 2
  %v682 = vrot.slane %v513, 2
  %v683 = vsel %vm656, %v681, %v682
  %v684 = vrot.slane %v514, 2
  %v685 = vrot.slane %v515, 2
  %v686 = vsel %vm656, %v684, %v685
  %v687 = vrot.slane %v516, 2
  %v688 = vrot.slane %v517, 2
  %v689 = vsel %vm656, %v687, %v688
  %v690 = vrot.slane %v518, 2
  %v691 = vrot.slane %v519, 2
  %v692 = vsel %vm656, %v690, %v691
  %v693 = vrot.slane %v520, 2
  %v694 = vrot.slane %v521, 2
  %v695 = vsel %vm656, %v693, %v694
  %v696 = vrot.slane %v522, 2
  %v697 = vrot.slane %v523, 2
  %v698 = vsel %vm656, %v696, %v697
  %v699 = vrot.slane %v524, 2
  %v700 = vrot.slane %v525, 2
  %v701 = vsel %vm656, %v699, %v700
  %v702 = vrot.slane %v526, 2
  %v703 = vrot.slane %v527, 2
  %v704 = vsel %vm656, %v702, %v703
  %v705 = vrot.slane %v528, 2
  %v706 = vrot.slane %v529, 2
  %v707 = vsel %vm656, %v705, %v706
  %v708 = vrot.slane %v530, 2
  %v709 = vrot.slane %v531, 2
  %v710 = vsel %vm656, %v708, %v709
  %v711 = vrot.slane %v532, 2
  %v712 = vrot.slane %v533, 2
  %v713 = vsel %vm656, %v711, %v712
  %v714 = vrot.slane %v534, 2
  %v715 = vrot.slane %v535, 2
  %v716 = vsel %vm656, %v714, %v715
  %v717 = vrot.slane %v536, 2
  %v718 = vrot.slane %v537, 2
  %v719 = vsel %vm656, %v717, %v718
  %v720 = vrot.slane %v538, 2
  %v721 = vrot.slane %v539, 2
  %v722 = vsel %vm656, %v720, %v721
  %v723 = vrot.slane %v540, 2
  %v724 = vrot.slane %v541, 2
  %v725 = vsel %vm656, %v723, %v724
  %v726 = vrot.slane %v542, 2
  %v727 = vrot.slane %v543, 2
  %v728 = vsel %vm656, %v726, %v727
  %v729 = vrot.slane %v544, 2
  %v730 = vrot.slane %v545, 2
  %v731 = vsel %vm656, %v729, %v730
  %v732 = vrot.slane %v546, 2
  %v733 = vrot.slane %v547, 2
  %v734 = vsel %vm656, %v732, %v733
  %v735 = vrot.slane %v548, 2
  %v736 = vrot.slane %v549, 2
  %v737 = vsel %vm656, %v735, %v736
  %v738 = vrot.slane %v550, 2
  %v739 = vrot.slane %v551, 2
  %v740 = vsel %vm656, %v738, %v739
  %v741 = vrot.slane %v552, 2
  %v742 = vrot.slane %v553, 2
  %v743 = vsel %vm656, %v741, %v742
  %v744 = vrot.slane %v554, 2
  %v745 = vrot.slane %v555, 2
  %v746 = vsel %vm656, %v744, %v745
  %v747 = vrot.slane %v556, 2
  %v748 = vrot.slane %v557, 2
  %v749 = vsel %vm656, %v747, %v748
  %v750 = vrot.slane %v558, 2
  %v751 = vrot.slane %v559, 2
  %v752 = vsel %vm656, %v750, %v751
  %v753 = vrot.slane %v560, 2
  %v754 = vrot.slane %v561, 2
  %v755 = vsel %vm656, %v753, %v754
  %v756 = vrot.slane %v562, 2
  %v757 = vrot.slane %v563, 2
  %v758 = vsel %vm656, %v756, %v757
  %v759 = vrot.slane %v564, 2
  %v760 = vrot.slane %v565, 2
  %v761 = vsel %vm656, %v759, %v760
  %v762 = vrot.slane %v566, 2
  %v763 = vrot.slane %v567, 2
  %v764 = vsel %vm656, %v762, %v763
  %v765 = vrot.slane %v568, 2
  %v766 = vrot.slane %v569, 2
  %v767 = vsel %vm656, %v765, %v766
  %v768 = vrot.slane %v570, 2
  %v769 = vrot.slane %v571, 2
  %v770 = vsel %vm656, %v768, %v769
  %v771 = vrot.slane %v572, 2
  %v772 = vrot.slane %v573, 2
  %v773 = vsel %vm656, %v771, %v772
  %v774 = vrot.slane %v574, 2
  %v775 = vrot.slane %v575, 2
  %v776 = vsel %vm656, %v774, %v775
  %v817 = vadd.f32 %v456, %v659
  %v818 = vadd.f32 %v457, %v662
  %v819 = vadd.f32 %v458, %v665
  %v820 = vadd.f32 %v459, %v668
  %v821 = vadd.f32 %v460, %v671
  %v822 = vadd.f32 %v461, %v674
  %v823 = vadd.f32 %v462, %v677
  %v824 = vadd.f32 %v463, %v680
  %v825 = vadd.f32 %v464, %v683
  %v826 = vadd.f32 %v465, %v686
  %v827 = vadd.f32 %v466, %v689
  %v828 = vadd.f32 %v467, %v692
  %v829 = vadd.f32 %v468, %v695
  %v830 = vadd.f32 %v469, %v698
  %v831 = vadd.f32 %v470, %v701
  %v832 = vadd.f32 %v471, %v704
  %v833 = vadd.f32 %v472, %v707
  %v834 = vadd.f32 %v473, %v710
  %v835 = vadd.f32 %v474, %v713
  %v836 = vadd.f32 %v475, %v716
  %v837 = vadd.f32 %v476, %v719
  %v838 = vadd.f32 %v477, %v722
  %v839 = vadd.f32 %v478, %v725
  %v840 = vadd.f32 %v479, %v728
  %v841 = vadd.f32 %v480, %v731
  %v842 = vadd.f32 %v481, %v734
  %v843 = vadd.f32 %v482, %v737
  %v844 = vadd.f32 %v483, %v740
  %v845 = vadd.f32 %v484, %v743
  %v846 = vadd.f32 %v485, %v746
  %v847 = vadd.f32 %v486, %v749
  %v848 = vadd.f32 %v487, %v752
  %v849 = vadd.f32 %v488, %v755
  %v850 = vadd.f32 %v489, %v758
  %v851 = vadd.f32 %v490, %v761
  %v852 = vadd.f32 %v491, %v764
  %v853 = vadd.f32 %v492, %v767
  %v854 = vadd.f32 %v493, %v770
  %v855 = vadd.f32 %v494, %v773
  %v856 = vadd.f32 %v495, %v776
  %vm857 = vcmask 1044480
  %v858 = vrot.slane %v135, 3
  %v859 = vrot.slane %v136, 3
  %v860 = vsel %vm857, %v858, %v859
  %v861 = vrot.slane %v137, 3
  %v862 = vrot.slane %v138, 3
  %v863 = vsel %vm857, %v861, %v862
  %v864 = vrot.slane %v139, 3
  %v865 = vrot.slane %v140, 3
  %v866 = vsel %vm857, %v864, %v865
  %v867 = vrot.slane %v141, 3
  %v868 = vrot.slane %v142, 3
  %v869 = vsel %vm857, %v867, %v868
  %v870 = vrot.slane %v143, 3
  %v871 = vrot.slane %v144, 3
  %v872 = vsel %vm857, %v870, %v871
  %v873 = vrot.slane %v145, 3
  %v874 = vrot.slane %v146, 3
  %v875 = vsel %vm857, %v873, %v874
  %v876 = vrot.slane %v147, 3
  %v877 = vrot.slane %v148, 3
  %v878 = vsel %vm857, %v876, %v877
  %v879 = vrot.slane %v149, 3
  %v880 = vrot.slane %v150, 3
  %v881 = vsel %vm857, %v879, %v880
  %v882 = vrot.slane %v151, 3
  %v883 = vrot.slane %v152, 3
  %v884 = vsel %vm857, %v882, %v883
  %v885 = vrot.slane %v153, 3
  %v886 = vrot.slane %v154, 3
  %v887 = vsel %vm857, %v885, %v886
  %v888 = vrot.slane %v155, 3
  %v889 = vrot.slane %v156, 3
  %v890 = vsel %vm857, %v888, %v889
  %v891 = vrot.slane %v157, 3
  %v892 = vrot.slane %v158, 3
  %v893 = vsel %vm857, %v891, %v892
  %v894 = vrot.slane %v159, 3
  %v895 = vrot.slane %v160, 3
  %v896 = vsel %vm857, %v894, %v895
  %v897 = vrot.slane %v161, 3
  %v898 = vrot.slane %v162, 3
  %v899 = vsel %vm857, %v897, %v898
  %v900 = vrot.slane %v163, 3
  %v901 = vrot.slane %v164, 3
  %v902 = vsel %vm857, %v900, %v901
  %v903 = vrot.slane %v165, 3
  %v904 = vrot.slane %v166, 3
  %v905 = vsel %vm857, %v903, %v904
  %v906 = vrot.slane %v167, 3
  %v907 = vrot.slane %v168, 3
  %v908 = vsel %vm857, %v906, %v907
  %v909 = vrot.slane %v169, 3
  %v910 = vrot.slane %v170, 3
  %v911 = vsel %vm857, %v909, %v910
  %v912 = vrot.slane %v171, 3
  %v913 = vrot.slane %v172, 3
  %v914 = vsel %vm857, %v912, %v913
  %v915 = vrot.slane %v173, 3
  %v916 = vrot.slane %v174, 3
  %v917 = vsel %vm857, %v915, %v916
  %v918 = vrot.slane %v175, 3
  %v919 = vrot.slane %v176, 3
  %v920 = vsel %vm857, %v918, %v919
  %v921 = vrot.slane %v177, 3
  %v922 = vrot.slane %v178, 3
  %v923 = vsel %vm857, %v921, %v922
  %v924 = vrot.slane %v179, 3
  %v925 = vrot.slane %v180, 3
  %v926 = vsel %vm857, %v924, %v925
  %v927 = vrot.slane %v181, 3
  %v928 = vrot.slane %v182, 3
  %v929 = vsel %vm857, %v927, %v928
  %v930 = vrot.slane %v183, 3
  %v931 = vrot.slane %v184, 3
  %v932 = vsel %vm857, %v930, %v931
  %v933 = vrot.slane %v185, 3
  %v934 = vrot.slane %v186, 3
  %v935 = vsel %vm857, %v933, %v934
  %v936 = vrot.slane %v187, 3
  %v937 = vrot.slane %v188, 3
  %v938 = vsel %vm857, %v936, %v937
  %v939 = vrot.slane %v189, 3
  %v940 = vrot.slane %v190, 3
  %v941 = vsel %vm857, %v939, %v940
  %v942 = vrot.slane %v191, 3
  %v943 = vrot.slane %v192, 3
  %v944 = vsel %vm857, %v942, %v943
  %v945 = vrot.slane %v193, 3
  %v946 = vrot.slane %v194, 3
  %v947 = vsel %vm857, %v945, %v946
  %v948 = vrot.slane %v195, 3
  %v949 = vrot.slane %v196, 3
  %v950 = vsel %vm857, %v948, %v949
  %v951 = vrot.slane %v197, 3
  %v952 = vrot.slane %v198, 3
  %v953 = vsel %vm857, %v951, %v952
  %v954 = vrot.slane %v199, 3
  %v955 = vrot.slane %v200, 3
  %v956 = vsel %vm857, %v954, %v955
  %v957 = vrot.slane %v201, 3
  %v958 = vrot.slane %v202, 3
  %v959 = vsel %vm857, %v957, %v958
  %v960 = vrot.slane %v203, 3
  %v961 = vrot.slane %v204, 3
  %v962 = vsel %vm857, %v960, %v961
  %v963 = vrot.slane %v205, 3
  %v964 = vrot.slane %v206, 3
  %v965 = vsel %vm857, %v963, %v964
  %v966 = vrot.slane %v207, 3
  %v967 = vrot.slane %v208, 3
  %v968 = vsel %vm857, %v966, %v967
  %v969 = vrot.slane %v209, 3
  %v970 = vrot.slane %v210, 3
  %v971 = vsel %vm857, %v969, %v970
  %v972 = vrot.slane %v211, 3
  %v973 = vrot.slane %v212, 3
  %v974 = vsel %vm857, %v972, %v973
  %v975 = vrot.slane %v213, 3
  %v976 = vrot.slane %v214, 3
  %v977 = vsel %vm857, %v975, %v976
  %v1018 = vadd.f32 %v817, %v860
  %v1019 = vadd.f32 %v818, %v863
  %v1020 = vadd.f32 %v819, %v866
  %v1021 = vadd.f32 %v820, %v869
  %v1022 = vadd.f32 %v821, %v872
  %v1023 = vadd.f32 %v822, %v875
  %v1024 = vadd.f32 %v823, %v878
  %v1025 = vadd.f32 %v824, %v881
  %v1026 = vadd.f32 %v825, %v884
  %v1027 = vadd.f32 %v826, %v887
  %v1028 = vadd.f32 %v827, %v890
  %v1029 = vadd.f32 %v828, %v893
  %v1030 = vadd.f32 %v829, %v896
  %v1031 = vadd.f32 %v830, %v899
  %v1032 = vadd.f32 %v831, %v902
  %v1033 = vadd.f32 %v832, %v905
  %v1034 = vadd.f32 %v833, %v908
  %v1035 = vadd.f32 %v834, %v911
  %v1036 = vadd.f32 %v835, %v914
  %v1037 = vadd.f32 %v836, %v917
  %v1038 = vadd.f32 %v837, %v920
  %v1039 = vadd.f32 %v838, %v923
  %v1040 = vadd.f32 %v839, %v926
  %v1041 = vadd.f32 %v840, %v929
  %v1042 = vadd.f32 %v841, %v932
  %v1043 = vadd.f32 %v842, %v935
  %v1044 = vadd.f32 %v843, %v938
  %v1045 = vadd.f32 %v844, %v941
  %v1046 = vadd.f32 %v845, %v944
  %v1047 = vadd.f32 %v846, %v947
  %v1048 = vadd.f32 %v847, %v950
  %v1049 = vadd.f32 %v848, %v953
  %v1050 = vadd.f32 %v849, %v956
  %v1051 = vadd.f32 %v850, %v959
  %v1052 = vadd.f32 %v851, %v962
  %v1053 = vadd.f32 %v852, %v965
  %v1054 = vadd.f32 %v853, %v968
  %v1055 = vadd.f32 %v854, %v971
  %v1056 = vadd.f32 %v855, %v974
  %v1057 = vadd.f32 %v856, %v977
  %v1058 = vmul.f32 %v15, 0.120078385
  %v1059 = vmul.f32 %v17, 0.120078385
  %v1060 = vmul.f32 %v19, 0.120078385
  %v1061 = vmul.f32 %v21, 0.120078385
  %v1062 = vmul.f32 %v23, 0.120078385
  %v1063 = vmul.f32 %v25, 0.120078385
  %v1064 = vmul.f32 %v27, 0.120078385
  %v1065 = vmul.f32 %v29, 0.120078385
  %v1066 = vmul.f32 %v31, 0.120078385
  %v1067 = vmul.f32 %v33, 0.120078385
  %v1068 = vmul.f32 %v35, 0.120078385
  %v1069 = vmul.f32 %v37, 0.120078385
  %v1070 = vmul.f32 %v39, 0.120078385
  %v1071 = vmul.f32 %v41, 0.120078385
  %v1072 = vmul.f32 %v43, 0.120078385
  %v1073 = vmul.f32 %v45, 0.120078385
  %v1074 = vmul.f32 %v48, 0.120078385
  %v1075 = vmul.f32 %v50, 0.120078385
  %v1076 = vmul.f32 %v52, 0.120078385
  %v1077 = vmul.f32 %v54, 0.120078385
  %v1078 = vmul.f32 %v56, 0.120078385
  %v1079 = vmul.f32 %v58, 0.120078385
  %v1080 = vmul.f32 %v60, 0.120078385
  %v1081 = vmul.f32 %v62, 0.120078385
  %v1082 = vmul.f32 %v64, 0.120078385
  %v1083 = vmul.f32 %v66, 0.120078385
  %v1084 = vmul.f32 %v68, 0.120078385
  %v1085 = vmul.f32 %v70, 0.120078385
  %v1086 = vmul.f32 %v72, 0.120078385
  %v1087 = vmul.f32 %v74, 0.120078385
  %v1088 = vmul.f32 %v76, 0.120078385
  %v1089 = vmul.f32 %v78, 0.120078385
  %v1090 = vmul.f32 %v80, 0.120078385
  %v1091 = vmul.f32 %v82, 0.120078385
  %v1092 = vmul.f32 %v84, 0.120078385
  %v1093 = vmul.f32 %v86, 0.120078385
  %v1094 = vmul.f32 %v88, 0.120078385
  %v1095 = vmul.f32 %v90, 0.120078385
  %v1096 = vmul.f32 %v92, 0.120078385
  %v1097 = vmul.f32 %v94, 0.120078385
  %vm1178 = vcmask 1043456
  %v1179 = vrot.slane %v95, 4
  %v1180 = vrot.slane %v1058, 4
  %v1181 = vsel %vm1178, %v1179, %v1180
  %v1182 = vrot.slane %v96, 4
  %v1183 = vrot.slane %v1059, 4
  %v1184 = vsel %vm1178, %v1182, %v1183
  %v1185 = vrot.slane %v97, 4
  %v1186 = vrot.slane %v1060, 4
  %v1187 = vsel %vm1178, %v1185, %v1186
  %v1188 = vrot.slane %v98, 4
  %v1189 = vrot.slane %v1061, 4
  %v1190 = vsel %vm1178, %v1188, %v1189
  %v1191 = vrot.slane %v99, 4
  %v1192 = vrot.slane %v1062, 4
  %v1193 = vsel %vm1178, %v1191, %v1192
  %v1194 = vrot.slane %v100, 4
  %v1195 = vrot.slane %v1063, 4
  %v1196 = vsel %vm1178, %v1194, %v1195
  %v1197 = vrot.slane %v101, 4
  %v1198 = vrot.slane %v1064, 4
  %v1199 = vsel %vm1178, %v1197, %v1198
  %v1200 = vrot.slane %v102, 4
  %v1201 = vrot.slane %v1065, 4
  %v1202 = vsel %vm1178, %v1200, %v1201
  %v1203 = vrot.slane %v103, 4
  %v1204 = vrot.slane %v1066, 4
  %v1205 = vsel %vm1178, %v1203, %v1204
  %v1206 = vrot.slane %v104, 4
  %v1207 = vrot.slane %v1067, 4
  %v1208 = vsel %vm1178, %v1206, %v1207
  %v1209 = vrot.slane %v105, 4
  %v1210 = vrot.slane %v1068, 4
  %v1211 = vsel %vm1178, %v1209, %v1210
  %v1212 = vrot.slane %v106, 4
  %v1213 = vrot.slane %v1069, 4
  %v1214 = vsel %vm1178, %v1212, %v1213
  %v1215 = vrot.slane %v107, 4
  %v1216 = vrot.slane %v1070, 4
  %v1217 = vsel %vm1178, %v1215, %v1216
  %v1218 = vrot.slane %v108, 4
  %v1219 = vrot.slane %v1071, 4
  %v1220 = vsel %vm1178, %v1218, %v1219
  %v1221 = vrot.slane %v109, 4
  %v1222 = vrot.slane %v1072, 4
  %v1223 = vsel %vm1178, %v1221, %v1222
  %v1224 = vrot.slane %v110, 4
  %v1225 = vrot.slane %v1073, 4
  %v1226 = vsel %vm1178, %v1224, %v1225
  %v1227 = vrot.slane %v111, 4
  %v1228 = vrot.slane %v1074, 4
  %v1229 = vsel %vm1178, %v1227, %v1228
  %v1230 = vrot.slane %v112, 4
  %v1231 = vrot.slane %v1075, 4
  %v1232 = vsel %vm1178, %v1230, %v1231
  %v1233 = vrot.slane %v113, 4
  %v1234 = vrot.slane %v1076, 4
  %v1235 = vsel %vm1178, %v1233, %v1234
  %v1236 = vrot.slane %v114, 4
  %v1237 = vrot.slane %v1077, 4
  %v1238 = vsel %vm1178, %v1236, %v1237
  %v1239 = vrot.slane %v115, 4
  %v1240 = vrot.slane %v1078, 4
  %v1241 = vsel %vm1178, %v1239, %v1240
  %v1242 = vrot.slane %v116, 4
  %v1243 = vrot.slane %v1079, 4
  %v1244 = vsel %vm1178, %v1242, %v1243
  %v1245 = vrot.slane %v117, 4
  %v1246 = vrot.slane %v1080, 4
  %v1247 = vsel %vm1178, %v1245, %v1246
  %v1248 = vrot.slane %v118, 4
  %v1249 = vrot.slane %v1081, 4
  %v1250 = vsel %vm1178, %v1248, %v1249
  %v1251 = vrot.slane %v119, 4
  %v1252 = vrot.slane %v1082, 4
  %v1253 = vsel %vm1178, %v1251, %v1252
  %v1254 = vrot.slane %v120, 4
  %v1255 = vrot.slane %v1083, 4
  %v1256 = vsel %vm1178, %v1254, %v1255
  %v1257 = vrot.slane %v121, 4
  %v1258 = vrot.slane %v1084, 4
  %v1259 = vsel %vm1178, %v1257, %v1258
  %v1260 = vrot.slane %v122, 4
  %v1261 = vrot.slane %v1085, 4
  %v1262 = vsel %vm1178, %v1260, %v1261
  %v1263 = vrot.slane %v123, 4
  %v1264 = vrot.slane %v1086, 4
  %v1265 = vsel %vm1178, %v1263, %v1264
  %v1266 = vrot.slane %v124, 4
  %v1267 = vrot.slane %v1087, 4
  %v1268 = vsel %vm1178, %v1266, %v1267
  %v1269 = vrot.slane %v125, 4
  %v1270 = vrot.slane %v1088, 4
  %v1271 = vsel %vm1178, %v1269, %v1270
  %v1272 = vrot.slane %v126, 4
  %v1273 = vrot.slane %v1089, 4
  %v1274 = vsel %vm1178, %v1272, %v1273
  %v1275 = vrot.slane %v127, 4
  %v1276 = vrot.slane %v1090, 4
  %v1277 = vsel %vm1178, %v1275, %v1276
  %v1278 = vrot.slane %v128, 4
  %v1279 = vrot.slane %v1091, 4
  %v1280 = vsel %vm1178, %v1278, %v1279
  %v1281 = vrot.slane %v129, 4
  %v1282 = vrot.slane %v1092, 4
  %v1283 = vsel %vm1178, %v1281, %v1282
  %v1284 = vrot.slane %v130, 4
  %v1285 = vrot.slane %v1093, 4
  %v1286 = vsel %vm1178, %v1284, %v1285
  %v1287 = vrot.slane %v131, 4
  %v1288 = vrot.slane %v1094, 4
  %v1289 = vsel %vm1178, %v1287, %v1288
  %v1290 = vrot.slane %v132, 4
  %v1291 = vrot.slane %v1095, 4
  %v1292 = vsel %vm1178, %v1290, %v1291
  %v1293 = vrot.slane %v133, 4
  %v1294 = vrot.slane %v1096, 4
  %v1295 = vsel %vm1178, %v1293, %v1294
  %v1296 = vrot.slane %v134, 4
  %v1297 = vrot.slane %v1097, 4
  %v1298 = vsel %vm1178, %v1296, %v1297
  %v1339 = vadd.f32 %v1018, %v1181
  %v1340 = vadd.f32 %v1019, %v1184
  %v1341 = vadd.f32 %v1020, %v1187
  %v1342 = vadd.f32 %v1021, %v1190
  %v1343 = vadd.f32 %v1022, %v1193
  %v1344 = vadd.f32 %v1023, %v1196
  %v1345 = vadd.f32 %v1024, %v1199
  %v1346 = vadd.f32 %v1025, %v1202
  %v1347 = vadd.f32 %v1026, %v1205
  %v1348 = vadd.f32 %v1027, %v1208
  %v1349 = vadd.f32 %v1028, %v1211
  %v1350 = vadd.f32 %v1029, %v1214
  %v1351 = vadd.f32 %v1030, %v1217
  %v1352 = vadd.f32 %v1031, %v1220
  %v1353 = vadd.f32 %v1032, %v1223
  %v1354 = vadd.f32 %v1033, %v1226
  %v1355 = vadd.f32 %v1034, %v1229
  %v1356 = vadd.f32 %v1035, %v1232
  %v1357 = vadd.f32 %v1036, %v1235
  %v1358 = vadd.f32 %v1037, %v1238
  %v1359 = vadd.f32 %v1038, %v1241
  %v1360 = vadd.f32 %v1039, %v1244
  %v1361 = vadd.f32 %v1040, %v1247
  %v1362 = vadd.f32 %v1041, %v1250
  %v1363 = vadd.f32 %v1042, %v1253
  %v1364 = vadd.f32 %v1043, %v1256
  %v1365 = vadd.f32 %v1044, %v1259
  %v1366 = vadd.f32 %v1045, %v1262
  %v1367 = vadd.f32 %v1046, %v1265
  %v1368 = vadd.f32 %v1047, %v1268
  %v1369 = vadd.f32 %v1048, %v1271
  %v1370 = vadd.f32 %v1049, %v1274
  %v1371 = vadd.f32 %v1050, %v1277
  %v1372 = vadd.f32 %v1051, %v1280
  %v1373 = vadd.f32 %v1052, %v1283
  %v1374 = vadd.f32 %v1053, %v1286
  %v1375 = vadd.f32 %v1054, %v1289
  %v1376 = vadd.f32 %v1055, %v1292
  %v1377 = vadd.f32 %v1056, %v1295
  %v1378 = vadd.f32 %v1057, %v1298
  %vm1379 = vcmask 64512
  %v1381 = vsel %vm1379, %v1339, 0
  %v1384 = vsel %vm1379, %v1340, 0
  %v1387 = vsel %vm1379, %v1341, 0
  %v1390 = vsel %vm1379, %v1342, 0
  %v1393 = vsel %vm1379, %v1343, 0
  %v1396 = vsel %vm1379, %v1344, 0
  %v1399 = vsel %vm1379, %v1345, 0
  %v1402 = vsel %vm1379, %v1346, 0
  %v1405 = vsel %vm1379, %v1347, 0
  %v1408 = vsel %vm1379, %v1348, 0
  %v1411 = vsel %vm1379, %v1349, 0
  %v1414 = vsel %vm1379, %v1350, 0
  %v1417 = vsel %vm1379, %v1351, 0
  %v1420 = vsel %vm1379, %v1352, 0
  %v1423 = vsel %vm1379, %v1353, 0
  %v1426 = vsel %vm1379, %v1354, 0
  %v1429 = vsel %vm1379, %v1355, 0
  %v1432 = vsel %vm1379, %v1356, 0
  %v1435 = vsel %vm1379, %v1357, 0
  %v1438 = vsel %vm1379, %v1358, 0
  %v1441 = vsel %vm1379, %v1359, 0
  %v1444 = vsel %vm1379, %v1360, 0
  %v1447 = vsel %vm1379, %v1361, 0
  %v1450 = vsel %vm1379, %v1362, 0
  %v1453 = vsel %vm1379, %v1363, 0
  %v1456 = vsel %vm1379, %v1364, 0
  %v1459 = vsel %vm1379, %v1365, 0
  %v1462 = vsel %vm1379, %v1366, 0
  %v1465 = vsel %vm1379, %v1367, 0
  %v1468 = vsel %vm1379, %v1368, 0
  %v1471 = vsel %vm1379, %v1369, 0
  %v1474 = vsel %vm1379, %v1370, 0
  %v1477 = vsel %vm1379, %v1371, 0
  %v1480 = vsel %vm1379, %v1372, 0
  %v1483 = vsel %vm1379, %v1373, 0
  %v1486 = vsel %vm1379, %v1374, 0
  %v1489 = vsel %vm1379, %v1375, 0
  %v1492 = vsel %vm1379, %v1376, 0
  %v1495 = vsel %vm1379, %v1377, 0
  %v1498 = vsel %vm1379, %v1378, 0
  %1500 = vmatprep.subr.mxu0 0.0
  %1501 = vmatpush1.msra.mxu0 %v46
  %1502 = vmatprep.subr.mxu0 0.0
  %1503 = vmatpush1.msra.mxu0 0.0
  %1504 = vmatprep.subr.mxu0 0.0
  %1505 = vmatpush1.msra.mxu0 0.0
  %1506 = vmatprep.subr.mxu0 0.0
  %1507 = vmatpush1.msra.mxu0 0.0
  %1508 = vmatprep.subr.mxu0 0.0
  %1509 = vmatpush1.msra.mxu0 0.0
  %1510 = vmatprep.subr.mxu0 0.0
  %1511 = vmatpush1.msra.mxu0 0.0
  %1512 = vmatprep.subr.mxu0 0.0
  %1513 = vmatpush1.msra.mxu0 0.0
  %1514 = vmatprep.subr.mxu0 0.0
  %1515 = vmatpush1.msra.mxu0 0.0
  %1516 = vmatprep.subr.mxu0 0.0
  %1517 = vmatpush1.msra.mxu0 0.0
  %1518 = vmatprep.subr.mxu0 0.0
  %1519 = vmatpush1.msra.mxu0 0.0
  %1520 = vmatprep.subr.mxu0 0.0
  %1521 = vmatpush1.msra.mxu0 0.0
  %1522 = vmatprep.subr.mxu0 0.0
  %1523 = vmatpush1.msra.mxu0 0.0
  %1524 = vmatprep.subr.mxu0 0.0
  %1525 = vmatpush1.msra.mxu0 0.0
  %1526 = vmatprep.subr.mxu0 0.0
  %1527 = vmatpush1.msra.mxu0 0.0
  %1528 = vmatprep.subr.mxu0 0.0
  %1529 = vmatpush1.msra.mxu0 0.0
  %1530 = vmatprep.subr.mxu0 0.0
  %1531 = vmatpush1.msra.mxu0 0.0
  %1532 = vmatprep.subr.mxu0 0.0
  %1533 = vmatpush1.msra.mxu0 0.0
  %1534 = vmatprep.subr.mxu0 0.0
  %1535 = vmatpush1.msra.mxu0 0.0
  %1536 = vmatprep.subr.mxu0 0.0
  %1537 = vmatpush1.msra.mxu0 0.0
  %1538 = vmatprep.subr.mxu0 0.0
  %1539 = vmatpush1.msra.mxu0 0.0
  %1540 = vmatprep.subr.mxu0 0.0
  %1541 = vmatpush1.msra.mxu0 0.0
  %1542 = vmatprep.subr.mxu0 0.0
  %1543 = vmatpush1.msra.mxu0 0.0
  %1544 = vmatprep.subr.mxu0 0.0
  %1545 = vmatpush1.msra.mxu0 0.0
  %1546 = vmatprep.subr.mxu0 0.0
  %1547 = vmatpush1.msra.mxu0 0.0
  %1548 = vmatprep.subr.mxu0 0.0
  %1549 = vmatpush1.msra.mxu0 0.0
  %1550 = vmatprep.subr.mxu0 0.0
  %1551 = vmatpush1.msra.mxu0 0.0
  %1552 = vmatprep.subr.mxu0 0.0
  %1553 = vmatpush1.msra.mxu0 0.0
  %1554 = vmatprep.subr.mxu0 0.0
  %1555 = vmatpush1.msra.mxu0 0.0
  %1556 = vmatprep.subr.mxu0 0.0
  %1557 = vmatpush1.msra.mxu0 0.0
  %1558 = vmatprep.subr.mxu0 0.0
  %1559 = vmatpush1.msra.mxu0 0.0
  %1560 = vmatprep.subr.mxu0 0.0
  %1561 = vmatpush1.msra.mxu0 0.0
  %1562 = vmatprep.subr.mxu0 0.0
  %1563 = vmatpush1.msra.mxu0 0.0
  %1564 = vmatprep.mubr.f32.mxu0 0.0
  %1565 = vmatmul.mubr.f32.gmra.mrb[0].mxu0 %v1381
  %v1566 = vpop.f32.mrb[0].mxu0
  %v1567 = vadd.f32 0.0, %v1566
  %v1568 = vpop.f32.mrb[0].mxu0
  %1569 = vmatprep.mubr.f32.mxu0 0.0
  %1570 = vmatmul.mubr.f32.gmra.mrb[0].mxu0 %v1384
  %v1571 = vpop.f32.mrb[0].mxu0
  %v1572 = vadd.f32 0.0, %v1571
  %v1573 = vpop.f32.mrb[0].mxu0
  %1574 = vmatprep.mubr.f32.mxu0 0.0
  %1575 = vmatmul.mubr.f32.gmra.mrb[0].mxu0 %v1387
  %v1576 = vpop.f32.mrb[0].mxu0
  %v1577 = vadd.f32 0.0, %v1576
  %v1578 = vpop.f32.mrb[0].mxu0
  %1579 = vmatprep.mubr.f32.mxu0 0.0
  %1580 = vmatmul.mubr.f32.gmra.mrb[0].mxu0 %v1390
  %v1581 = vpop.f32.mrb[0].mxu0
  %v1582 = vadd.f32 0.0, %v1581
  %v1583 = vpop.f32.mrb[0].mxu0
  %1584 = vmatprep.mubr.f32.mxu0 0.0
  %1585 = vmatmul.mubr.f32.gmra.mrb[0].mxu0 %v1393
  %v1586 = vpop.f32.mrb[0].mxu0
  %v1587 = vadd.f32 0.0, %v1586
  %v1588 = vpop.f32.mrb[0].mxu0
  %1589 = vmatprep.mubr.f32.mxu0 0.0
  %1590 = vmatmul.mubr.f32.gmra.mrb[0].mxu0 %v1396
  %v1591 = vpop.f32.mrb[0].mxu0
  %v1592 = vadd.f32 0.0, %v1591
  %v1593 = vpop.f32.mrb[0].mxu0
  %1594 = vmatprep.mubr.f32.mxu0 0.0
  %1595 = vmatmul.mubr.f32.gmra.mrb[0].mxu0 %v1399
  %v1596 = vpop.f32.mrb[0].mxu0
  %v1597 = vadd.f32 0.0, %v1596
  %v1598 = vpop.f32.mrb[0].mxu0
  %1599 = vmatprep.mubr.f32.mxu0 0.0
  %1600 = vmatmul.mubr.f32.gmra.mrb[0].mxu0 %v1402
  %v1601 = vpop.f32.mrb[0].mxu0
  %v1602 = vadd.f32 0.0, %v1601
  %v1603 = vpop.f32.mrb[0].mxu0
  %1604 = vmatprep.mubr.f32.mxu0 0.0
  %1605 = vmatmul.mubr.f32.gmra.mrb[0].mxu0 %v1405
  %v1606 = vpop.f32.mrb[0].mxu0
  %v1607 = vadd.f32 0.0, %v1606
  %v1608 = vpop.f32.mrb[0].mxu0
  %1609 = vmatprep.mubr.f32.mxu0 0.0
  %1610 = vmatmul.mubr.f32.gmra.mrb[0].mxu0 %v1408
  %v1611 = vpop.f32.mrb[0].mxu0
  %v1612 = vadd.f32 0.0, %v1611
  %v1613 = vpop.f32.mrb[0].mxu0
  %1614 = vmatprep.mubr.f32.mxu0 0.0
  %1615 = vmatmul.mubr.f32.gmra.mrb[0].mxu0 %v1411
  %v1616 = vpop.f32.mrb[0].mxu0
  %v1617 = vadd.f32 0.0, %v1616
  %v1618 = vpop.f32.mrb[0].mxu0
  %1619 = vmatprep.mubr.f32.mxu0 0.0
  %1620 = vmatmul.mubr.f32.gmra.mrb[0].mxu0 %v1414
  %v1621 = vpop.f32.mrb[0].mxu0
  %v1622 = vadd.f32 0.0, %v1621
  %v1623 = vpop.f32.mrb[0].mxu0
  %1624 = vmatprep.mubr.f32.mxu0 0.0
  %1625 = vmatmul.mubr.f32.gmra.mrb[0].mxu0 %v1417
  %v1626 = vpop.f32.mrb[0].mxu0
  %v1627 = vadd.f32 0.0, %v1626
  %v1628 = vpop.f32.mrb[0].mxu0
  %1629 = vmatprep.mubr.f32.mxu0 0.0
  %1630 = vmatmul.mubr.f32.gmra.mrb[0].mxu0 %v1420
  %v1631 = vpop.f32.mrb[0].mxu0
  %v1632 = vadd.f32 0.0, %v1631
  %v1633 = vpop.f32.mrb[0].mxu0
  %1634 = vmatprep.mubr.f32.mxu0 0.0
  %1635 = vmatmul.mubr.f32.gmra.mrb[0].mxu0 %v1423
  %v1636 = vpop.f32.mrb[0].mxu0
  %v1637 = vadd.f32 0.0, %v1636
  %v1638 = vpop.f32.mrb[0].mxu0
  %1639 = vmatprep.mubr.f32.mxu0 0.0
  %1640 = vmatmul.mubr.f32.gmra.mrb[0].mxu0 %v1426
  %v1641 = vpop.f32.mrb[0].mxu0
  %v1642 = vadd.f32 0.0, %v1641
  %v1643 = vpop.f32.mrb[0].mxu0
  %1644 = vmatprep.mubr.f32.mxu0 0.0
  %1645 = vmatmul.mubr.f32.gmra.mrb[0].mxu0 %v1429
  %v1646 = vpop.f32.mrb[0].mxu0
  %v1647 = vadd.f32 0.0, %v1646
  %v1648 = vpop.f32.mrb[0].mxu0
  %1649 = vmatprep.mubr.f32.mxu0 0.0
  %1650 = vmatmul.mubr.f32.gmra.mrb[0].mxu0 %v1432
  %v1651 = vpop.f32.mrb[0].mxu0
  %v1652 = vadd.f32 0.0, %v1651
  %v1653 = vpop.f32.mrb[0].mxu0
  %1654 = vmatprep.mubr.f32.mxu0 0.0
  %1655 = vmatmul.mubr.f32.gmra.mrb[0].mxu0 %v1435
  %v1656 = vpop.f32.mrb[0].mxu0
  %v1657 = vadd.f32 0.0, %v1656
  %v1658 = vpop.f32.mrb[0].mxu0
  %1659 = vmatprep.mubr.f32.mxu0 0.0
  %1660 = vmatmul.mubr.f32.gmra.mrb[0].mxu0 %v1438
  %v1661 = vpop.f32.mrb[0].mxu0
  %v1662 = vadd.f32 0.0, %v1661
  %v1663 = vpop.f32.mrb[0].mxu0
  %1664 = vmatprep.mubr.f32.mxu0 0.0
  %1665 = vmatmul.mubr.f32.gmra.mrb[0].mxu0 %v1441
  %v1666 = vpop.f32.mrb[0].mxu0
  %v1667 = vadd.f32 0.0, %v1666
  %v1668 = vpop.f32.mrb[0].mxu0
  %1669 = vmatprep.mubr.f32.mxu0 0.0
  %1670 = vmatmul.mubr.f32.gmra.mrb[0].mxu0 %v1444
  %v1671 = vpop.f32.mrb[0].mxu0
  %v1672 = vadd.f32 0.0, %v1671
  %v1673 = vpop.f32.mrb[0].mxu0
  %1674 = vmatprep.mubr.f32.mxu0 0.0
  %1675 = vmatmul.mubr.f32.gmra.mrb[0].mxu0 %v1447
  %v1676 = vpop.f32.mrb[0].mxu0
  %v1677 = vadd.f32 0.0, %v1676
  %v1678 = vpop.f32.mrb[0].mxu0
  %1679 = vmatprep.mubr.f32.mxu0 0.0
  %1680 = vmatmul.mubr.f32.gmra.mrb[0].mxu0 %v1450
  %v1681 = vpop.f32.mrb[0].mxu0
  %v1682 = vadd.f32 0.0, %v1681
  %v1683 = vpop.f32.mrb[0].mxu0
  %1684 = vmatprep.mubr.f32.mxu0 0.0
  %1685 = vmatmul.mubr.f32.gmra.mrb[0].mxu0 %v1453
  %v1686 = vpop.f32.mrb[0].mxu0
  %v1687 = vadd.f32 0.0, %v1686
  %v1688 = vpop.f32.mrb[0].mxu0
  %1689 = vmatprep.mubr.f32.mxu0 0.0
  %1690 = vmatmul.mubr.f32.gmra.mrb[0].mxu0 %v1456
  %v1691 = vpop.f32.mrb[0].mxu0
  %v1692 = vadd.f32 0.0, %v1691
  %v1693 = vpop.f32.mrb[0].mxu0
  %1694 = vmatprep.mubr.f32.mxu0 0.0
  %1695 = vmatmul.mubr.f32.gmra.mrb[0].mxu0 %v1459
  %v1696 = vpop.f32.mrb[0].mxu0
  %v1697 = vadd.f32 0.0, %v1696
  %v1698 = vpop.f32.mrb[0].mxu0
  %1699 = vmatprep.mubr.f32.mxu0 0.0
  %1700 = vmatmul.mubr.f32.gmra.mrb[0].mxu0 %v1462
  %v1701 = vpop.f32.mrb[0].mxu0
  %v1702 = vadd.f32 0.0, %v1701
  %v1703 = vpop.f32.mrb[0].mxu0
  %1704 = vmatprep.mubr.f32.mxu0 0.0
  %1705 = vmatmul.mubr.f32.gmra.mrb[0].mxu0 %v1465
  %v1706 = vpop.f32.mrb[0].mxu0
  %v1707 = vadd.f32 0.0, %v1706
  %v1708 = vpop.f32.mrb[0].mxu0
  %1709 = vmatprep.mubr.f32.mxu0 0.0
  %1710 = vmatmul.mubr.f32.gmra.mrb[0].mxu0 %v1468
  %v1711 = vpop.f32.mrb[0].mxu0
  %v1712 = vadd.f32 0.0, %v1711
  %v1713 = vpop.f32.mrb[0].mxu0
  %1714 = vmatprep.mubr.f32.mxu0 0.0
  %1715 = vmatmul.mubr.f32.gmra.mrb[0].mxu0 %v1471
  %v1716 = vpop.f32.mrb[0].mxu0
  %v1717 = vadd.f32 0.0, %v1716
  %v1718 = vpop.f32.mrb[0].mxu0
  %1719 = vmatprep.mubr.f32.mxu0 0.0
  %1720 = vmatmul.mubr.f32.gmra.mrb[0].mxu0 %v1474
  %v1721 = vpop.f32.mrb[0].mxu0
  %v1722 = vadd.f32 0.0, %v1721
  %v1723 = vpop.f32.mrb[0].mxu0
  %1724 = vmatprep.mubr.f32.mxu0 0.0
  %1725 = vmatmul.mubr.f32.gmra.mrb[0].mxu0 %v1477
  %v1726 = vpop.f32.mrb[0].mxu0
  %v1727 = vadd.f32 0.0, %v1726
  %v1728 = vpop.f32.mrb[0].mxu0
  %1729 = vmatprep.mubr.f32.mxu0 0.0
  %1730 = vmatmul.mubr.f32.gmra.mrb[0].mxu0 %v1480
  %v1731 = vpop.f32.mrb[0].mxu0
  %v1732 = vadd.f32 0.0, %v1731
  %v1733 = vpop.f32.mrb[0].mxu0
  %1734 = vmatprep.mubr.f32.mxu0 0.0
  %1735 = vmatmul.mubr.f32.gmra.mrb[0].mxu0 %v1483
  %v1736 = vpop.f32.mrb[0].mxu0
  %v1737 = vadd.f32 0.0, %v1736
  %v1738 = vpop.f32.mrb[0].mxu0
  %1739 = vmatprep.mubr.f32.mxu0 0.0
  %1740 = vmatmul.mubr.f32.gmra.mrb[0].mxu0 %v1486
  %v1741 = vpop.f32.mrb[0].mxu0
  %v1742 = vadd.f32 0.0, %v1741
  %v1743 = vpop.f32.mrb[0].mxu0
  %1744 = vmatprep.mubr.f32.mxu0 0.0
  %1745 = vmatmul.mubr.f32.gmra.mrb[0].mxu0 %v1489
  %v1746 = vpop.f32.mrb[0].mxu0
  %v1747 = vadd.f32 0.0, %v1746
  %v1748 = vpop.f32.mrb[0].mxu0
  %1749 = vmatprep.mubr.f32.mxu0 0.0
  %1750 = vmatmul.mubr.f32.gmra.mrb[0].mxu0 %v1492
  %v1751 = vpop.f32.mrb[0].mxu0
  %v1752 = vadd.f32 0.0, %v1751
  %v1753 = vpop.f32.mrb[0].mxu0
  %1754 = vmatprep.mubr.f32.mxu0 0.0
  %1755 = vmatmul.mubr.f32.gmra.mrb[0].mxu0 %v1495
  %v1756 = vpop.f32.mrb[0].mxu0
  %v1757 = vadd.f32 0.0, %v1756
  %v1758 = vpop.f32.mrb[0].mxu0
  %1759 = vmatprep.mubr.f32.mxu0 0.0
  %1760 = vmatmul.mubr.f32.gmra.mrb[0].mxu0 %v1498
  %v1761 = vpop.f32.mrb[0].mxu0
  %v1762 = vadd.f32 0.0, %v1761
  %v1763 = vpop.f32.mrb[0].mxu0
  %1764 = vdwg.mxu0
  %v1765 = vmul.f32 %v1567, %v1567
  %v1766 = vmul.f32 %v1572, %v1572
  %v1767 = vmul.f32 %v1577, %v1577
  %v1768 = vmul.f32 %v1582, %v1582
  %v1769 = vmul.f32 %v1587, %v1587
  %v1770 = vmul.f32 %v1592, %v1592
  %v1771 = vmul.f32 %v1597, %v1597
  %v1772 = vmul.f32 %v1602, %v1602
  %v1773 = vmul.f32 %v1607, %v1607
  %v1774 = vmul.f32 %v1612, %v1612
  %v1775 = vmul.f32 %v1617, %v1617
  %v1776 = vmul.f32 %v1622, %v1622
  %v1777 = vmul.f32 %v1627, %v1627
  %v1778 = vmul.f32 %v1632, %v1632
  %v1779 = vmul.f32 %v1637, %v1637
  %v1780 = vmul.f32 %v1642, %v1642
  %v1781 = vmul.f32 %v1567, %v1607
  %v1782 = vmul.f32 %v1572, %v1612
  %v1783 = vmul.f32 %v1577, %v1617
  %v1784 = vmul.f32 %v1582, %v1622
  %v1785 = vmul.f32 %v1587, %v1627
  %v1786 = vmul.f32 %v1592, %v1632
  %v1787 = vmul.f32 %v1597, %v1637
  %v1788 = vmul.f32 %v1602, %v1642
  %v1789 = vsub.f32 %v1647, %v1765
  %v1790 = vsub.f32 %v1652, %v1766
  %v1791 = vsub.f32 %v1657, %v1767
  %v1792 = vsub.f32 %v1662, %v1768
  %v1793 = vsub.f32 %v1667, %v1769
  %v1794 = vsub.f32 %v1672, %v1770
  %v1795 = vsub.f32 %v1677, %v1771
  %v1796 = vsub.f32 %v1682, %v1772
  %v1797 = vsub.f32 %v1687, %v1773
  %v1798 = vsub.f32 %v1692, %v1774
  %v1799 = vsub.f32 %v1697, %v1775
  %v1800 = vsub.f32 %v1702, %v1776
  %v1801 = vsub.f32 %v1707, %v1777
  %v1802 = vsub.f32 %v1712, %v1778
  %v1803 = vsub.f32 %v1717, %v1779
  %v1804 = vsub.f32 %v1722, %v1780
  %v1805 = vsub.f32 %v1727, %v1781
  %v1806 = vsub.f32 %v1732, %v1782
  %v1807 = vsub.f32 %v1737, %v1783
  %v1808 = vsub.f32 %v1742, %v1784
  %v1809 = vsub.f32 %v1747, %v1785
  %v1810 = vsub.f32 %v1752, %v1786
  %v1811 = vsub.f32 %v1757, %v1787
  %v1812 = vsub.f32 %v1762, %v1788
  %v1813 = vmul.f32 %v1781, 2.0
  %v1814 = vmul.f32 %v1782, 2.0
  %v1815 = vmul.f32 %v1783, 2.0
  %v1816 = vmul.f32 %v1784, 2.0
  %v1817 = vmul.f32 %v1785, 2.0
  %v1818 = vmul.f32 %v1786, 2.0
  %v1819 = vmul.f32 %v1787, 2.0
  %v1820 = vmul.f32 %v1788, 2.0
  %v1821 = vadd.f32 %v1813, 0.0001
  %v1822 = vadd.f32 %v1814, 0.0001
  %v1823 = vadd.f32 %v1815, 0.0001
  %v1824 = vadd.f32 %v1816, 0.0001
  %v1825 = vadd.f32 %v1817, 0.0001
  %v1826 = vadd.f32 %v1818, 0.0001
  %v1827 = vadd.f32 %v1819, 0.0001
  %v1828 = vadd.f32 %v1820, 0.0001
  %v1829 = vmul.f32 %v1805, 2.0
  %v1830 = vmul.f32 %v1806, 2.0
  %v1831 = vmul.f32 %v1807, 2.0
  %v1832 = vmul.f32 %v1808, 2.0
  %v1833 = vmul.f32 %v1809, 2.0
  %v1834 = vmul.f32 %v1810, 2.0
  %v1835 = vmul.f32 %v1811, 2.0
  %v1836 = vmul.f32 %v1812, 2.0
  %v1837 = vadd.f32 %v1829, 0.0009
  %v1838 = vadd.f32 %v1830, 0.0009
  %v1839 = vadd.f32 %v1831, 0.0009
  %v1840 = vadd.f32 %v1832, 0.0009
  %v1841 = vadd.f32 %v1833, 0.0009
  %v1842 = vadd.f32 %v1834, 0.0009
  %v1843 = vadd.f32 %v1835, 0.0009
  %v1844 = vadd.f32 %v1836, 0.0009
  %v1845 = vmul.f32 %v1821, %v1837
  %v1846 = vmul.f32 %v1822, %v1838
  %v1847 = vmul.f32 %v1823, %v1839
  %v1848 = vmul.f32 %v1824, %v1840
  %v1849 = vmul.f32 %v1825, %v1841
  %v1850 = vmul.f32 %v1826, %v1842
  %v1851 = vmul.f32 %v1827, %v1843
  %v1852 = vmul.f32 %v1828, %v1844
  %v1853 = vadd.f32 %v1765, %v1773
  %v1854 = vadd.f32 %v1766, %v1774
  %v1855 = vadd.f32 %v1767, %v1775
  %v1856 = vadd.f32 %v1768, %v1776
  %v1857 = vadd.f32 %v1769, %v1777
  %v1858 = vadd.f32 %v1770, %v1778
  %v1859 = vadd.f32 %v1771, %v1779
  %v1860 = vadd.f32 %v1772, %v1780
  %v1861 = vadd.f32 %v1853, 0.0001
  %v1862 = vadd.f32 %v1854, 0.0001
  %v1863 = vadd.f32 %v1855, 0.0001
  %v1864 = vadd.f32 %v1856, 0.0001
  %v1865 = vadd.f32 %v1857, 0.0001
  %v1866 = vadd.f32 %v1858, 0.0001
  %v1867 = vadd.f32 %v1859, 0.0001
  %v1868 = vadd.f32 %v1860, 0.0001
  %v1869 = vadd.f32 %v1789, %v1797
  %v1870 = vadd.f32 %v1790, %v1798
  %v1871 = vadd.f32 %v1791, %v1799
  %v1872 = vadd.f32 %v1792, %v1800
  %v1873 = vadd.f32 %v1793, %v1801
  %v1874 = vadd.f32 %v1794, %v1802
  %v1875 = vadd.f32 %v1795, %v1803
  %v1876 = vadd.f32 %v1796, %v1804
  %v1877 = vadd.f32 %v1869, 0.0009
  %v1878 = vadd.f32 %v1870, 0.0009
  %v1879 = vadd.f32 %v1871, 0.0009
  %v1880 = vadd.f32 %v1872, 0.0009
  %v1881 = vadd.f32 %v1873, 0.0009
  %v1882 = vadd.f32 %v1874, 0.0009
  %v1883 = vadd.f32 %v1875, 0.0009
  %v1884 = vadd.f32 %v1876, 0.0009
  %v1885 = vmul.f32 %v1861, %v1877
  %v1886 = vmul.f32 %v1862, %v1878
  %v1887 = vmul.f32 %v1863, %v1879
  %v1888 = vmul.f32 %v1864, %v1880
  %v1889 = vmul.f32 %v1865, %v1881
  %v1890 = vmul.f32 %v1866, %v1882
  %v1891 = vmul.f32 %v1867, %v1883
  %v1892 = vmul.f32 %v1868, %v1884
  %v1893 = vrcp.pop %v1885
  %v1894 = vrcp.pop %v1886
  %v1895 = vrcp.pop %v1887
  %v1896 = vrcp.pop %v1888
  %v1897 = vrcp.pop %v1889
  %v1898 = vrcp.pop %v1890
  %v1899 = vrcp.pop %v1891
  %v1900 = vrcp.pop %v1892
  %v1901 = vmul.f32 %v1845, %v1893
  %v1902 = vmul.f32 %v1846, %v1894
  %v1903 = vmul.f32 %v1847, %v1895
  %v1904 = vmul.f32 %v1848, %v1896
  %v1905 = vmul.f32 %v1849, %v1897
  %v1906 = vmul.f32 %v1850, %v1898
  %v1907 = vmul.f32 %v1851, %v1899
  %v1908 = vmul.f32 %v1852, %v1900
  %v1909 = vsel %vm1379, %v1901, 0.0
  %v1910 = vsel %vm1379, %v1902, 0.0
  %v1911 = vadd.f32 %v1909, %v1910
  %v1912 = vsel %vm1379, %v1903, 0.0
  %v1913 = vadd.f32 %v1911, %v1912
  %v1914 = vsel %vm1379, %v1904, 0.0
  %v1915 = vadd.f32 %v1913, %v1914
  %v1916 = vsel %vm1379, %v1905, 0.0
  %v1917 = vadd.f32 %v1915, %v1916
  %v1918 = vsel %vm1379, %v1906, 0.0
  %v1919 = vadd.f32 %v1917, %v1918
  %v1920 = vsel %vm1379, %v1907, 0.0
  %v1921 = vadd.f32 %v1919, %v1920
  %v1922 = vsel %vm1379, %v1908, 0.0
  %v1923 = vadd.f32 %v1921, %v1922
  %1924 = vadd.xlane.f32.xlu0 %v1923
  %v1925 = vpop.xlane.xlu0 %1924
  %v1926 = vrot.slane %v1925, 4
  %v1927 = vadd.f32 %v1925, %v1926
  %v1928 = vrot.slane %v1927, 2
  %v1929 = vadd.f32 %v1927, %v1928
  %v1930 = vrot.slane %v1929, 1
  %v1931 = vadd.f32 %v1929, %v1930
  %s1932 = vtos %v1931
  %s1933 = smul.f32 %s1932, 0.001953125
  %v1934 = vstv %s1933
  %1935 = vst [vmem:[%s3] sm:$0xff] %v1934
  // Predicated region
  $region14: #{_lambda_.4} parent=0 // pred_check
    _
  $region15: #{_lambda_.4} parent=0 // pred_check_branch
    %1937 = sbr.rel (0) target = $region17
  $region16: #{_lambda_.4} parent=0 // pred_region
    _
  $region17: #{_lambda_.4} parent=0 // pred_fallthru
    _
  // Predicated region
  $region18: #{_lambda_.4} parent=0 // pred_check
    _
  $region19: #{_lambda_.4} parent=0 // pred_check_branch
    %1939 = sbr.rel (0) target = $region21
  $region20: #{_lambda_.4} parent=0 // pred_region
    _
  $region21: #{_lambda_.4} parent=0 // pred_fallthru
    _

// kernel: _lambda_.3
$region0: #{_lambda_.3}
  #allocation0 [shape = 'u32[]', space=smem, size = 0x4, offset = 0x4, fixed_abs, tag = 'smem constant byte address 0x4 - core index']
  #allocation1 [shape = 'u32[144,128]{1,0:T(1,128)}', space=vmem, size = 0x12000, scoped, tag = 'internal scratch']
  %s0 = inlined_call_operand.vmem [shape: f32[8,22,16], index: 0, kind: input, shape index: {}]
  %s1 = inlined_call_operand.vmem [shape: f32[8,22,16], index: 1, kind: input, shape index: {}]
  %s2 = inlined_call_operand.vmem [shape: f32[16,16], index: 2, kind: input, shape index: {}]
  %s3 = inlined_call_operand.vmem [shape: f32[1,8,128], index: 3, kind: output, shape index: {}]
  %s4 = sld [smem:[#allocation0]]
  $region22: #{_lambda_.3} parent=0
    _
  %s6 = ssub.s32 1, %s4
  %s7 = scalar_select 0, %s6, %s4
  // Predicated region
  $region2: #{_lambda_.3} parent=0 // pred_check
    _
  $region3: #{_lambda_.3} parent=0 // pred_check_branch
    %9 = sbr.rel (0) target = $region5
  $region4: #{_lambda_.3} parent=0 // pred_region
    _
  $region5: #{_lambda_.3} parent=0 // pred_fallthru
    _
  // Predicated region
  $region6: #{_lambda_.3} parent=0 // pred_check
    _
  $region7: #{_lambda_.3} parent=0 // pred_check_branch
    %11 = sbr.rel (0) target = $region9
  $region8: #{_lambda_.3} parent=0 // pred_region
    _
  $region9: #{_lambda_.3} parent=0 // pred_fallthru
    _
  // Predicated region
  $region10: #{_lambda_.3} parent=0 // pred_check
    _
  $region11: #{_lambda_.3} parent=0 // pred_check_branch
    %13 = sbr.rel (0) target = $region13
  $region12: #{_lambda_.3} parent=0 // pred_region
    _
  $region13: #{_lambda_.3} parent=0 // pred_fallthru
    _
  %v14 = vld [vmem:[%s0] sm:$0xff]
  %v15 = vld [vmem:[%s0 + $0x8] sm:$0xff]
  %v16 = vld [vmem:[%s0 + $0x10] sm:$0x3f]
  %v17 = vld [vmem:[%s0 + $0x18] sm:$0xff]
  %v18 = vld [vmem:[%s0 + $0x20] sm:$0xff]
  %v19 = vld [vmem:[%s0 + $0x28] sm:$0x3f]
  %v20 = vld [vmem:[%s0 + $0x30] sm:$0xff]
  %v21 = vld [vmem:[%s0 + $0x38] sm:$0xff]
  %v22 = vld [vmem:[%s0 + $0x40] sm:$0x3f]
  %v23 = vld [vmem:[%s0 + $0x48] sm:$0xff]
  %v24 = vld [vmem:[%s0 + $0x50] sm:$0xff]
  %v25 = vld [vmem:[%s0 + $0x58] sm:$0x3f]
  %v26 = vld [vmem:[%s0 + $0x60] sm:$0xff]
  %v27 = vld [vmem:[%s0 + $0x68] sm:$0xff]
  %v28 = vld [vmem:[%s0 + $0x70] sm:$0x3f]
  %v29 = vld [vmem:[%s0 + $0x78] sm:$0xff]
  %v30 = vld [vmem:[%s0 + $0x80] sm:$0xff]
  %v31 = vld [vmem:[%s0 + $0x88] sm:$0x3f]
  %v32 = vld [vmem:[%s0 + $0x90] sm:$0xff]
  %v33 = vld [vmem:[%s0 + $0x98] sm:$0xff]
  %v34 = vld [vmem:[%s0 + $0xa0] sm:$0x3f]
  %v35 = vld [vmem:[%s0 + $0xa8] sm:$0xff]
  %v36 = vld [vmem:[%s0 + $0xb0] sm:$0xff]
  %v37 = vld [vmem:[%s0 + $0xb8] sm:$0x3f]
  %v38 = vld [vmem:[%s1] sm:$0xff]
  %v39 = vld [vmem:[%s1 + $0x8] sm:$0xff]
  %v40 = vld [vmem:[%s1 + $0x10] sm:$0x3f]
  %v41 = vld [vmem:[%s1 + $0x18] sm:$0xff]
  %v42 = vld [vmem:[%s1 + $0x20] sm:$0xff]
  %v43 = vld [vmem:[%s1 + $0x28] sm:$0x3f]
  %v44 = vld [vmem:[%s1 + $0x30] sm:$0xff]
  %v45 = vld [vmem:[%s1 + $0x38] sm:$0xff]
  %v46 = vld [vmem:[%s1 + $0x40] sm:$0x3f]
  %v47 = vld [vmem:[%s1 + $0x48] sm:$0xff]
  %v48 = vld [vmem:[%s1 + $0x50] sm:$0xff]
  %v49 = vld [vmem:[%s1 + $0x58] sm:$0x3f]
  %v50 = vld [vmem:[%s1 + $0x60] sm:$0xff]
  %v51 = vld [vmem:[%s1 + $0x68] sm:$0xff]
  %v52 = vld [vmem:[%s1 + $0x70] sm:$0x3f]
  %v53 = vld [vmem:[%s1 + $0x78] sm:$0xff]
  %v54 = vld [vmem:[%s1 + $0x80] sm:$0xff]
  %v55 = vld [vmem:[%s1 + $0x88] sm:$0x3f]
  %v56 = vld [vmem:[%s1 + $0x90] sm:$0xff]
  %v57 = vld [vmem:[%s1 + $0x98] sm:$0xff]
  %v58 = vld [vmem:[%s1 + $0xa0] sm:$0x3f]
  %v59 = vld [vmem:[%s1 + $0xa8] sm:$0xff]
  %v60 = vld [vmem:[%s1 + $0xb0] sm:$0xff]
  %v61 = vld [vmem:[%s1 + $0xb8] sm:$0x3f]
  %v62 = vld [vmem:[%s2] sm:$0xff]
  %v63 = vld [vmem:[%s2 + $0x8] sm:$0xff]
  %v64 = vmul.f32 %v14, %v14
  %v65 = vmul.f32 %v15, %v15
  %v66 = vmul.f32 %v16, %v16
  %v67 = vmul.f32 %v17, %v17
  %v68 = vmul.f32 %v18, %v18
  %v69 = vmul.f32 %v19, %v19
  %v70 = vmul.f32 %v20, %v20
  %v71 = vmul.f32 %v21, %v21
  %v72 = vmul.f32 %v22, %v22
  %v73 = vmul.f32 %v23, %v23
  %v74 = vmul.f32 %v24, %v24
  %v75 = vmul.f32 %v25, %v25
  %v76 = vmul.f32 %v26, %v26
  %v77 = vmul.f32 %v27, %v27
  %v78 = vmul.f32 %v28, %v28
  %v79 = vmul.f32 %v29, %v29
  %v80 = vmul.f32 %v30, %v30
  %v81 = vmul.f32 %v31, %v31
  %v82 = vmul.f32 %v32, %v32
  %v83 = vmul.f32 %v33, %v33
  %v84 = vmul.f32 %v34, %v34
  %v85 = vmul.f32 %v35, %v35
  %v86 = vmul.f32 %v36, %v36
  %v87 = vmul.f32 %v37, %v37
  %v88 = vmul.f32 %v38, %v38
  %v89 = vmul.f32 %v39, %v39
  %v90 = vmul.f32 %v40, %v40
  %v91 = vmul.f32 %v41, %v41
  %v92 = vmul.f32 %v42, %v42
  %v93 = vmul.f32 %v43, %v43
  %v94 = vmul.f32 %v44, %v44
  %v95 = vmul.f32 %v45, %v45
  %v96 = vmul.f32 %v46, %v46
  %v97 = vmul.f32 %v47, %v47
  %v98 = vmul.f32 %v48, %v48
  %v99 = vmul.f32 %v49, %v49
  %v100 = vmul.f32 %v50, %v50
  %v101 = vmul.f32 %v51, %v51
  %v102 = vmul.f32 %v52, %v52
  %v103 = vmul.f32 %v53, %v53
  %v104 = vmul.f32 %v54, %v54
  %v105 = vmul.f32 %v55, %v55
  %v106 = vmul.f32 %v56, %v56
  %v107 = vmul.f32 %v57, %v57
  %v108 = vmul.f32 %v58, %v58
  %v109 = vmul.f32 %v59, %v59
  %v110 = vmul.f32 %v60, %v60
  %v111 = vmul.f32 %v61, %v61
  %v112 = vmul.f32 %v14, %v38
  %v113 = vmul.f32 %v15, %v39
  %v114 = vmul.f32 %v16, %v40
  %v115 = vmul.f32 %v17, %v41
  %v116 = vmul.f32 %v18, %v42
  %v117 = vmul.f32 %v19, %v43
  %v118 = vmul.f32 %v20, %v44
  %v119 = vmul.f32 %v21, %v45
  %v120 = vmul.f32 %v22, %v46
  %v121 = vmul.f32 %v23, %v47
  %v122 = vmul.f32 %v24, %v48
  %v123 = vmul.f32 %v25, %v49
  %v124 = vmul.f32 %v26, %v50
  %v125 = vmul.f32 %v27, %v51
  %v126 = vmul.f32 %v28, %v52
  %v127 = vmul.f32 %v29, %v53
  %v128 = vmul.f32 %v30, %v54
  %v129 = vmul.f32 %v31, %v55
  %v130 = vmul.f32 %v32, %v56
  %v131 = vmul.f32 %v33, %v57
  %v132 = vmul.f32 %v34, %v58
  %v133 = vmul.f32 %v35, %v59
  %v134 = vmul.f32 %v36, %v60
  %v135 = vmul.f32 %v37, %v61
  %v136 = vmul.f32 %v14, 0.036632847
  %v137 = vmul.f32 %v15, 0.036632847
  %v138 = vmul.f32 %v17, 0.036632847
  %v139 = vmul.f32 %v18, 0.036632847
  %v140 = vmul.f32 %v20, 0.036632847
  %v141 = vmul.f32 %v21, 0.036632847
  %v142 = vmul.f32 %v23, 0.036632847
  %v143 = vmul.f32 %v24, 0.036632847
  %v144 = vmul.f32 %v26, 0.036632847
  %v145 = vmul.f32 %v27, 0.036632847
  %v146 = vmul.f32 %v29, 0.036632847
  %v147 = vmul.f32 %v30, 0.036632847
  %v148 = vmul.f32 %v32, 0.036632847
  %v149 = vmul.f32 %v33, 0.036632847
  %v150 = vmul.f32 %v35, 0.036632847
  %v151 = vmul.f32 %v36, 0.036632847
  %v152 = vmul.f32 %v38, 0.036632847
  %v153 = vmul.f32 %v39, 0.036632847
  %v154 = vmul.f32 %v41, 0.036632847
  %v155 = vmul.f32 %v42, 0.036632847
  %v156 = vmul.f32 %v44, 0.036632847
  %v157 = vmul.f32 %v45, 0.036632847
  %v158 = vmul.f32 %v47, 0.036632847
  %v159 = vmul.f32 %v48, 0.036632847
  %v160 = vmul.f32 %v50, 0.036632847
  %v161 = vmul.f32 %v51, 0.036632847
  %v162 = vmul.f32 %v53, 0.036632847
  %v163 = vmul.f32 %v54, 0.036632847
  %v164 = vmul.f32 %v56, 0.036632847
  %v165 = vmul.f32 %v57, 0.036632847
  %v166 = vmul.f32 %v59, 0.036632847
  %v167 = vmul.f32 %v60, 0.036632847
  %v168 = vmul.f32 %v64, 0.036632847
  %v169 = vmul.f32 %v65, 0.036632847
  %v170 = vmul.f32 %v67, 0.036632847
  %v171 = vmul.f32 %v68, 0.036632847
  %v172 = vmul.f32 %v70, 0.036632847
  %v173 = vmul.f32 %v71, 0.036632847
  %v174 = vmul.f32 %v73, 0.036632847
  %v175 = vmul.f32 %v74, 0.036632847
  %v176 = vmul.f32 %v76, 0.036632847
  %v177 = vmul.f32 %v77, 0.036632847
  %v178 = vmul.f32 %v79, 0.036632847
  %v179 = vmul.f32 %v80, 0.036632847
  %v180 = vmul.f32 %v82, 0.036632847
  %v181 = vmul.f32 %v83, 0.036632847
  %v182 = vmul.f32 %v85, 0.036632847
  %v183 = vmul.f32 %v86, 0.036632847
  %v184 = vmul.f32 %v88, 0.036632847
  %v185 = vmul.f32 %v89, 0.036632847
  %v186 = vmul.f32 %v91, 0.036632847
  %v187 = vmul.f32 %v92, 0.036632847
  %v188 = vmul.f32 %v94, 0.036632847
  %v189 = vmul.f32 %v95, 0.036632847
  %v190 = vmul.f32 %v97, 0.036632847
  %v191 = vmul.f32 %v98, 0.036632847
  %v192 = vmul.f32 %v100, 0.036632847
  %v193 = vmul.f32 %v101, 0.036632847
  %v194 = vmul.f32 %v103, 0.036632847
  %v195 = vmul.f32 %v104, 0.036632847
  %v196 = vmul.f32 %v106, 0.036632847
  %v197 = vmul.f32 %v107, 0.036632847
  %v198 = vmul.f32 %v109, 0.036632847
  %v199 = vmul.f32 %v110, 0.036632847
  %v200 = vmul.f32 %v112, 0.036632847
  %v201 = vmul.f32 %v113, 0.036632847
  %v202 = vmul.f32 %v115, 0.036632847
  %v203 = vmul.f32 %v116, 0.036632847
  %v204 = vmul.f32 %v118, 0.036632847
  %v205 = vmul.f32 %v119, 0.036632847
  %v206 = vmul.f32 %v121, 0.036632847
  %v207 = vmul.f32 %v122, 0.036632847
  %v208 = vmul.f32 %v124, 0.036632847
  %v209 = vmul.f32 %v125, 0.036632847
  %v210 = vmul.f32 %v127, 0.036632847
  %v211 = vmul.f32 %v128, 0.036632847
  %v212 = vmul.f32 %v130, 0.036632847
  %v213 = vmul.f32 %v131, 0.036632847
  %v214 = vmul.f32 %v133, 0.036632847
  %v215 = vmul.f32 %v134, 0.036632847
  %v216 = vmul.f32 %v14, 0.11128076
  %v217 = vmul.f32 %v15, 0.11128076
  %v218 = vmul.f32 %v16, 0.11128076
  %v219 = vmul.f32 %v17, 0.11128076
  %v220 = vmul.f32 %v18, 0.11128076
  %v221 = vmul.f32 %v19, 0.11128076
  %v222 = vmul.f32 %v20, 0.11128076
  %v223 = vmul.f32 %v21, 0.11128076
  %v224 = vmul.f32 %v22, 0.11128076
  %v225 = vmul.f32 %v23, 0.11128076
  %v226 = vmul.f32 %v24, 0.11128076
  %v227 = vmul.f32 %v25, 0.11128076
  %v228 = vmul.f32 %v26, 0.11128076
  %v229 = vmul.f32 %v27, 0.11128076
  %v230 = vmul.f32 %v28, 0.11128076
  %v231 = vmul.f32 %v29, 0.11128076
  %v232 = vmul.f32 %v30, 0.11128076
  %v233 = vmul.f32 %v31, 0.11128076
  %v234 = vmul.f32 %v32, 0.11128076
  %v235 = vmul.f32 %v33, 0.11128076
  %v236 = vmul.f32 %v34, 0.11128076
  %v237 = vmul.f32 %v35, 0.11128076
  %v238 = vmul.f32 %v36, 0.11128076
  %v239 = vmul.f32 %v37, 0.11128076
  %v240 = vmul.f32 %v38, 0.11128076
  %v241 = vmul.f32 %v39, 0.11128076
  %v242 = vmul.f32 %v40, 0.11128076
  %v243 = vmul.f32 %v41, 0.11128076
  %v244 = vmul.f32 %v42, 0.11128076
  %v245 = vmul.f32 %v43, 0.11128076
  %v246 = vmul.f32 %v44, 0.11128076
  %v247 = vmul.f32 %v45, 0.11128076
  %v248 = vmul.f32 %v46, 0.11128076
  %v249 = vmul.f32 %v47, 0.11128076
  %v250 = vmul.f32 %v48, 0.11128076
  %v251 = vmul.f32 %v49, 0.11128076
  %v252 = vmul.f32 %v50, 0.11128076
  %v253 = vmul.f32 %v51, 0.11128076
  %v254 = vmul.f32 %v52, 0.11128076
  %v255 = vmul.f32 %v53, 0.11128076
  %v256 = vmul.f32 %v54, 0.11128076
  %v257 = vmul.f32 %v55, 0.11128076
  %v258 = vmul.f32 %v56, 0.11128076
  %v259 = vmul.f32 %v57, 0.11128076
  %v260 = vmul.f32 %v58, 0.11128076
  %v261 = vmul.f32 %v59, 0.11128076
  %v262 = vmul.f32 %v60, 0.11128076
  %v263 = vmul.f32 %v61, 0.11128076
  %v264 = vmul.f32 %v64, 0.11128076
  %v265 = vmul.f32 %v65, 0.11128076
  %v266 = vmul.f32 %v66, 0.11128076
  %v267 = vmul.f32 %v67, 0.11128076
  %v268 = vmul.f32 %v68, 0.11128076
  %v269 = vmul.f32 %v69, 0.11128076
  %v270 = vmul.f32 %v70, 0.11128076
  %v271 = vmul.f32 %v71, 0.11128076
  %v272 = vmul.f32 %v72, 0.11128076
  %v273 = vmul.f32 %v73, 0.11128076
  %v274 = vmul.f32 %v74, 0.11128076
  %v275 = vmul.f32 %v75, 0.11128076
  %v276 = vmul.f32 %v76, 0.11128076
  %v277 = vmul.f32 %v77, 0.11128076
  %v278 = vmul.f32 %v78, 0.11128076
  %v279 = vmul.f32 %v79, 0.11128076
  %v280 = vmul.f32 %v80, 0.11128076
  %v281 = vmul.f32 %v81, 0.11128076
  %v282 = vmul.f32 %v82, 0.11128076
  %v283 = vmul.f32 %v83, 0.11128076
  %v284 = vmul.f32 %v84, 0.11128076
  %v285 = vmul.f32 %v85, 0.11128076
  %v286 = vmul.f32 %v86, 0.11128076
  %v287 = vmul.f32 %v87, 0.11128076
  %v288 = vmul.f32 %v88, 0.11128076
  %v289 = vmul.f32 %v89, 0.11128076
  %v290 = vmul.f32 %v90, 0.11128076
  %v291 = vmul.f32 %v91, 0.11128076
  %v292 = vmul.f32 %v92, 0.11128076
  %v293 = vmul.f32 %v93, 0.11128076
  %v294 = vmul.f32 %v94, 0.11128076
  %v295 = vmul.f32 %v95, 0.11128076
  %v296 = vmul.f32 %v96, 0.11128076
  %v297 = vmul.f32 %v97, 0.11128076
  %v298 = vmul.f32 %v98, 0.11128076
  %v299 = vmul.f32 %v99, 0.11128076
  %v300 = vmul.f32 %v100, 0.11128076
  %v301 = vmul.f32 %v101, 0.11128076
  %v302 = vmul.f32 %v102, 0.11128076
  %v303 = vmul.f32 %v103, 0.11128076
  %v304 = vmul.f32 %v104, 0.11128076
  %v305 = vmul.f32 %v105, 0.11128076
  %v306 = vmul.f32 %v106, 0.11128076
  %v307 = vmul.f32 %v107, 0.11128076
  %v308 = vmul.f32 %v108, 0.11128076
  %v309 = vmul.f32 %v109, 0.11128076
  %v310 = vmul.f32 %v110, 0.11128076
  %v311 = vmul.f32 %v111, 0.11128076
  %v312 = vmul.f32 %v112, 0.11128076
  %v313 = vmul.f32 %v113, 0.11128076
  %v314 = vmul.f32 %v114, 0.11128076
  %v315 = vmul.f32 %v115, 0.11128076
  %v316 = vmul.f32 %v116, 0.11128076
  %v317 = vmul.f32 %v117, 0.11128076
  %v318 = vmul.f32 %v118, 0.11128076
  %v319 = vmul.f32 %v119, 0.11128076
  %v320 = vmul.f32 %v120, 0.11128076
  %v321 = vmul.f32 %v121, 0.11128076
  %v322 = vmul.f32 %v122, 0.11128076
  %v323 = vmul.f32 %v123, 0.11128076
  %v324 = vmul.f32 %v124, 0.11128076
  %v325 = vmul.f32 %v125, 0.11128076
  %v326 = vmul.f32 %v126, 0.11128076
  %v327 = vmul.f32 %v127, 0.11128076
  %v328 = vmul.f32 %v128, 0.11128076
  %v329 = vmul.f32 %v129, 0.11128076
  %v330 = vmul.f32 %v130, 0.11128076
  %v331 = vmul.f32 %v131, 0.11128076
  %v332 = vmul.f32 %v132, 0.11128076
  %v333 = vmul.f32 %v133, 0.11128076
  %v334 = vmul.f32 %v134, 0.11128076
  %v335 = vmul.f32 %v135, 0.11128076
  %vm456 = vcmask 1046528
  %v457 = vrot.slane %v216, 1
  %v458 = vrot.slane %v217, 1
  %v459 = vsel %vm456, %v457, %v458
  %v460 = vrot.slane %v218, 1
  %v461 = vsel %vm456, %v458, %v460
  %v462 = vrot.slane %v219, 1
  %v463 = vrot.slane %v220, 1
  %v464 = vsel %vm456, %v462, %v463
  %v465 = vrot.slane %v221, 1
  %v466 = vsel %vm456, %v463, %v465
  %v467 = vrot.slane %v222, 1
  %v468 = vrot.slane %v223, 1
  %v469 = vsel %vm456, %v467, %v468
  %v470 = vrot.slane %v224, 1
  %v471 = vsel %vm456, %v468, %v470
  %v472 = vrot.slane %v225, 1
  %v473 = vrot.slane %v226, 1
  %v474 = vsel %vm456, %v472, %v473
  %v475 = vrot.slane %v227, 1
  %v476 = vsel %vm456, %v473, %v475
  %v477 = vrot.slane %v228, 1
  %v478 = vrot.slane %v229, 1
  %v479 = vsel %vm456, %v477, %v478
  %v480 = vrot.slane %v230, 1
  %v481 = vsel %vm456, %v478, %v480
  %v482 = vrot.slane %v231, 1
  %v483 = vrot.slane %v232, 1
  %v484 = vsel %vm456, %v482, %v483
  %v485 = vrot.slane %v233, 1
  %v486 = vsel %vm456, %v483, %v485
  %v487 = vrot.slane %v234, 1
  %v488 = vrot.slane %v235, 1
  %v489 = vsel %vm456, %v487, %v488
  %v490 = vrot.slane %v236, 1
  %v491 = vsel %vm456, %v488, %v490
  %v492 = vrot.slane %v237, 1
  %v493 = vrot.slane %v238, 1
  %v494 = vsel %vm456, %v492, %v493
  %v495 = vrot.slane %v239, 1
  %v496 = vsel %vm456, %v493, %v495
  %v497 = vrot.slane %v240, 1
  %v498 = vrot.slane %v241, 1
  %v499 = vsel %vm456, %v497, %v498
  %v500 = vrot.slane %v242, 1
  %v501 = vsel %vm456, %v498, %v500
  %v502 = vrot.slane %v243, 1
  %v503 = vrot.slane %v244, 1
  %v504 = vsel %vm456, %v502, %v503
  %v505 = vrot.slane %v245, 1
  %v506 = vsel %vm456, %v503, %v505
  %v507 = vrot.slane %v246, 1
  %v508 = vrot.slane %v247, 1
  %v509 = vsel %vm456, %v507, %v508
  %v510 = vrot.slane %v248, 1
  %v511 = vsel %vm456, %v508, %v510
  %v512 = vrot.slane %v249, 1
  %v513 = vrot.slane %v250, 1
  %v514 = vsel %vm456, %v512, %v513
  %v515 = vrot.slane %v251, 1
  %v516 = vsel %vm456, %v513, %v515
  %v517 = vrot.slane %v252, 1
  %v518 = vrot.slane %v253, 1
  %v519 = vsel %vm456, %v517, %v518
  %v520 = vrot.slane %v254, 1
  %v521 = vsel %vm456, %v518, %v520
  %v522 = vrot.slane %v255, 1
  %v523 = vrot.slane %v256, 1
  %v524 = vsel %vm456, %v522, %v523
  %v525 = vrot.slane %v257, 1
  %v526 = vsel %vm456, %v523, %v525
  %v527 = vrot.slane %v258, 1
  %v528 = vrot.slane %v259, 1
  %v529 = vsel %vm456, %v527, %v528
  %v530 = vrot.slane %v260, 1
  %v531 = vsel %vm456, %v528, %v530
  %v532 = vrot.slane %v261, 1
  %v533 = vrot.slane %v262, 1
  %v534 = vsel %vm456, %v532, %v533
  %v535 = vrot.slane %v263, 1
  %v536 = vsel %vm456, %v533, %v535
  %v537 = vrot.slane %v264, 1
  %v538 = vrot.slane %v265, 1
  %v539 = vsel %vm456, %v537, %v538
  %v540 = vrot.slane %v266, 1
  %v541 = vsel %vm456, %v538, %v540
  %v542 = vrot.slane %v267, 1
  %v543 = vrot.slane %v268, 1
  %v544 = vsel %vm456, %v542, %v543
  %v545 = vrot.slane %v269, 1
  %v546 = vsel %vm456, %v543, %v545
  %v547 = vrot.slane %v270, 1
  %v548 = vrot.slane %v271, 1
  %v549 = vsel %vm456, %v547, %v548
  %v550 = vrot.slane %v272, 1
  %v551 = vsel %vm456, %v548, %v550
  %v552 = vrot.slane %v273, 1
  %v553 = vrot.slane %v274, 1
  %v554 = vsel %vm456, %v552, %v553
  %v555 = vrot.slane %v275, 1
  %v556 = vsel %vm456, %v553, %v555
  %v557 = vrot.slane %v276, 1
  %v558 = vrot.slane %v277, 1
  %v559 = vsel %vm456, %v557, %v558
  %v560 = vrot.slane %v278, 1
  %v561 = vsel %vm456, %v558, %v560
  %v562 = vrot.slane %v279, 1
  %v563 = vrot.slane %v280, 1
  %v564 = vsel %vm456, %v562, %v563
  %v565 = vrot.slane %v281, 1
  %v566 = vsel %vm456, %v563, %v565
  %v567 = vrot.slane %v282, 1
  %v568 = vrot.slane %v283, 1
  %v569 = vsel %vm456, %v567, %v568
  %v570 = vrot.slane %v284, 1
  %v571 = vsel %vm456, %v568, %v570
  %v572 = vrot.slane %v285, 1
  %v573 = vrot.slane %v286, 1
  %v574 = vsel %vm456, %v572, %v573
  %v575 = vrot.slane %v287, 1
  %v576 = vsel %vm456, %v573, %v575
  %v577 = vrot.slane %v288, 1
  %v578 = vrot.slane %v289, 1
  %v579 = vsel %vm456, %v577, %v578
  %v580 = vrot.slane %v290, 1
  %v581 = vsel %vm456, %v578, %v580
  %v582 = vrot.slane %v291, 1
  %v583 = vrot.slane %v292, 1
  %v584 = vsel %vm456, %v582, %v583
  %v585 = vrot.slane %v293, 1
  %v586 = vsel %vm456, %v583, %v585
  %v587 = vrot.slane %v294, 1
  %v588 = vrot.slane %v295, 1
  %v589 = vsel %vm456, %v587, %v588
  %v590 = vrot.slane %v296, 1
  %v591 = vsel %vm456, %v588, %v590
  %v592 = vrot.slane %v297, 1
  %v593 = vrot.slane %v298, 1
  %v594 = vsel %vm456, %v592, %v593
  %v595 = vrot.slane %v299, 1
  %v596 = vsel %vm456, %v593, %v595
  %v597 = vrot.slane %v300, 1
  %v598 = vrot.slane %v301, 1
  %v599 = vsel %vm456, %v597, %v598
  %v600 = vrot.slane %v302, 1
  %v601 = vsel %vm456, %v598, %v600
  %v602 = vrot.slane %v303, 1
  %v603 = vrot.slane %v304, 1
  %v604 = vsel %vm456, %v602, %v603
  %v605 = vrot.slane %v305, 1
  %v606 = vsel %vm456, %v603, %v605
  %v607 = vrot.slane %v306, 1
  %v608 = vrot.slane %v307, 1
  %v609 = vsel %vm456, %v607, %v608
  %v610 = vrot.slane %v308, 1
  %v611 = vsel %vm456, %v608, %v610
  %v612 = vrot.slane %v309, 1
  %v613 = vrot.slane %v310, 1
  %v614 = vsel %vm456, %v612, %v613
  %v615 = vrot.slane %v311, 1
  %v616 = vsel %vm456, %v613, %v615
  %v617 = vrot.slane %v312, 1
  %v618 = vrot.slane %v313, 1
  %v619 = vsel %vm456, %v617, %v618
  %v620 = vrot.slane %v314, 1
  %v621 = vsel %vm456, %v618, %v620
  %v622 = vrot.slane %v315, 1
  %v623 = vrot.slane %v316, 1
  %v624 = vsel %vm456, %v622, %v623
  %v625 = vrot.slane %v317, 1
  %v626 = vsel %vm456, %v623, %v625
  %v627 = vrot.slane %v318, 1
  %v628 = vrot.slane %v319, 1
  %v629 = vsel %vm456, %v627, %v628
  %v630 = vrot.slane %v320, 1
  %v631 = vsel %vm456, %v628, %v630
  %v632 = vrot.slane %v321, 1
  %v633 = vrot.slane %v322, 1
  %v634 = vsel %vm456, %v632, %v633
  %v635 = vrot.slane %v323, 1
  %v636 = vsel %vm456, %v633, %v635
  %v637 = vrot.slane %v324, 1
  %v638 = vrot.slane %v325, 1
  %v639 = vsel %vm456, %v637, %v638
  %v640 = vrot.slane %v326, 1
  %v641 = vsel %vm456, %v638, %v640
  %v642 = vrot.slane %v327, 1
  %v643 = vrot.slane %v328, 1
  %v644 = vsel %vm456, %v642, %v643
  %v645 = vrot.slane %v329, 1
  %v646 = vsel %vm456, %v643, %v645
  %v647 = vrot.slane %v330, 1
  %v648 = vrot.slane %v331, 1
  %v649 = vsel %vm456, %v647, %v648
  %v650 = vrot.slane %v332, 1
  %v651 = vsel %vm456, %v648, %v650
  %v652 = vrot.slane %v333, 1
  %v653 = vrot.slane %v334, 1
  %v654 = vsel %vm456, %v652, %v653
  %v655 = vrot.slane %v335, 1
  %v656 = vsel %vm456, %v653, %v655
  %v737 = vadd.f32 %v136, %v459
  %v738 = vadd.f32 %v137, %v461
  %v739 = vadd.f32 %v138, %v464
  %v740 = vadd.f32 %v139, %v466
  %v741 = vadd.f32 %v140, %v469
  %v742 = vadd.f32 %v141, %v471
  %v743 = vadd.f32 %v142, %v474
  %v744 = vadd.f32 %v143, %v476
  %v745 = vadd.f32 %v144, %v479
  %v746 = vadd.f32 %v145, %v481
  %v747 = vadd.f32 %v146, %v484
  %v748 = vadd.f32 %v147, %v486
  %v749 = vadd.f32 %v148, %v489
  %v750 = vadd.f32 %v149, %v491
  %v751 = vadd.f32 %v150, %v494
  %v752 = vadd.f32 %v151, %v496
  %v753 = vadd.f32 %v152, %v499
  %v754 = vadd.f32 %v153, %v501
  %v755 = vadd.f32 %v154, %v504
  %v756 = vadd.f32 %v155, %v506
  %v757 = vadd.f32 %v156, %v509
  %v758 = vadd.f32 %v157, %v511
  %v759 = vadd.f32 %v158, %v514
  %v760 = vadd.f32 %v159, %v516
  %v761 = vadd.f32 %v160, %v519
  %v762 = vadd.f32 %v161, %v521
  %v763 = vadd.f32 %v162, %v524
  %v764 = vadd.f32 %v163, %v526
  %v765 = vadd.f32 %v164, %v529
  %v766 = vadd.f32 %v165, %v531
  %v767 = vadd.f32 %v166, %v534
  %v768 = vadd.f32 %v167, %v536
  %v769 = vadd.f32 %v168, %v539
  %v770 = vadd.f32 %v169, %v541
  %v771 = vadd.f32 %v170, %v544
  %v772 = vadd.f32 %v171, %v546
  %v773 = vadd.f32 %v172, %v549
  %v774 = vadd.f32 %v173, %v551
  %v775 = vadd.f32 %v174, %v554
  %v776 = vadd.f32 %v175, %v556
  %v777 = vadd.f32 %v176, %v559
  %v778 = vadd.f32 %v177, %v561
  %v779 = vadd.f32 %v178, %v564
  %v780 = vadd.f32 %v179, %v566
  %v781 = vadd.f32 %v180, %v569
  %v782 = vadd.f32 %v181, %v571
  %v783 = vadd.f32 %v182, %v574
  %v784 = vadd.f32 %v183, %v576
  %v785 = vadd.f32 %v184, %v579
  %v786 = vadd.f32 %v185, %v581
  %v787 = vadd.f32 %v186, %v584
  %v788 = vadd.f32 %v187, %v586
  %v789 = vadd.f32 %v188, %v589
  %v790 = vadd.f32 %v189, %v591
  %v791 = vadd.f32 %v190, %v594
  %v792 = vadd.f32 %v191, %v596
  %v793 = vadd.f32 %v192, %v599
  %v794 = vadd.f32 %v193, %v601
  %v795 = vadd.f32 %v194, %v604
  %v796 = vadd.f32 %v195, %v606
  %v797 = vadd.f32 %v196, %v609
  %v798 = vadd.f32 %v197, %v611
  %v799 = vadd.f32 %v198, %v614
  %v800 = vadd.f32 %v199, %v616
  %v801 = vadd.f32 %v200, %v619
  %v802 = vadd.f32 %v201, %v621
  %v803 = vadd.f32 %v202, %v624
  %v804 = vadd.f32 %v203, %v626
  %v805 = vadd.f32 %v204, %v629
  %v806 = vadd.f32 %v205, %v631
  %v807 = vadd.f32 %v206, %v634
  %v808 = vadd.f32 %v207, %v636
  %v809 = vadd.f32 %v208, %v639
  %v810 = vadd.f32 %v209, %v641
  %v811 = vadd.f32 %v210, %v644
  %v812 = vadd.f32 %v211, %v646
  %v813 = vadd.f32 %v212, %v649
  %v814 = vadd.f32 %v213, %v651
  %v815 = vadd.f32 %v214, %v654
  %v816 = vadd.f32 %v215, %v656
  %v817 = vmul.f32 %v14, 0.21674532
  %v818 = vmul.f32 %v15, 0.21674532
  %v819 = vmul.f32 %v16, 0.21674532
  %v820 = vmul.f32 %v17, 0.21674532
  %v821 = vmul.f32 %v18, 0.21674532
  %v822 = vmul.f32 %v19, 0.21674532
  %v823 = vmul.f32 %v20, 0.21674532
  %v824 = vmul.f32 %v21, 0.21674532
  %v825 = vmul.f32 %v22, 0.21674532
  %v826 = vmul.f32 %v23, 0.21674532
  %v827 = vmul.f32 %v24, 0.21674532
  %v828 = vmul.f32 %v25, 0.21674532
  %v829 = vmul.f32 %v26, 0.21674532
  %v830 = vmul.f32 %v27, 0.21674532
  %v831 = vmul.f32 %v28, 0.21674532
  %v832 = vmul.f32 %v29, 0.21674532
  %v833 = vmul.f32 %v30, 0.21674532
  %v834 = vmul.f32 %v31, 0.21674532
  %v835 = vmul.f32 %v32, 0.21674532
  %v836 = vmul.f32 %v33, 0.21674532
  %v837 = vmul.f32 %v34, 0.21674532
  %v838 = vmul.f32 %v35, 0.21674532
  %v839 = vmul.f32 %v36, 0.21674532
  %v840 = vmul.f32 %v37, 0.21674532
  %v841 = vmul.f32 %v38, 0.21674532
  %v842 = vmul.f32 %v39, 0.21674532
  %v843 = vmul.f32 %v40, 0.21674532
  %v844 = vmul.f32 %v41, 0.21674532
  %v845 = vmul.f32 %v42, 0.21674532
  %v846 = vmul.f32 %v43, 0.21674532
  %v847 = vmul.f32 %v44, 0.21674532
  %v848 = vmul.f32 %v45, 0.21674532
  %v849 = vmul.f32 %v46, 0.21674532
  %v850 = vmul.f32 %v47, 0.21674532
  %v851 = vmul.f32 %v48, 0.21674532
  %v852 = vmul.f32 %v49, 0.21674532
  %v853 = vmul.f32 %v50, 0.21674532
  %v854 = vmul.f32 %v51, 0.21674532
  %v855 = vmul.f32 %v52, 0.21674532
  %v856 = vmul.f32 %v53, 0.21674532
  %v857 = vmul.f32 %v54, 0.21674532
  %v858 = vmul.f32 %v55, 0.21674532
  %v859 = vmul.f32 %v56, 0.21674532
  %v860 = vmul.f32 %v57, 0.21674532
  %v861 = vmul.f32 %v58, 0.21674532
  %v862 = vmul.f32 %v59, 0.21674532
  %v863 = vmul.f32 %v60, 0.21674532
  %v864 = vmul.f32 %v61, 0.21674532
  %v865 = vmul.f32 %v64, 0.21674532
  %v866 = vmul.f32 %v65, 0.21674532
  %v867 = vmul.f32 %v66, 0.21674532
  %v868 = vmul.f32 %v67, 0.21674532
  %v869 = vmul.f32 %v68, 0.21674532
  %v870 = vmul.f32 %v69, 0.21674532
  %v871 = vmul.f32 %v70, 0.21674532
  %v872 = vmul.f32 %v71, 0.21674532
  %v873 = vmul.f32 %v72, 0.21674532
  %v874 = vmul.f32 %v73, 0.21674532
  %v875 = vmul.f32 %v74, 0.21674532
  %v876 = vmul.f32 %v75, 0.21674532
  %v877 = vmul.f32 %v76, 0.21674532
  %v878 = vmul.f32 %v77, 0.21674532
  %v879 = vmul.f32 %v78, 0.21674532
  %v880 = vmul.f32 %v79, 0.21674532
  %v881 = vmul.f32 %v80, 0.21674532
  %v882 = vmul.f32 %v81, 0.21674532
  %v883 = vmul.f32 %v82, 0.21674532
  %v884 = vmul.f32 %v83, 0.21674532
  %v885 = vmul.f32 %v84, 0.21674532
  %v886 = vmul.f32 %v85, 0.21674532
  %v887 = vmul.f32 %v86, 0.21674532
  %v888 = vmul.f32 %v87, 0.21674532
  %v889 = vmul.f32 %v88, 0.21674532
  %v890 = vmul.f32 %v89, 0.21674532
  %v891 = vmul.f32 %v90, 0.21674532
  %v892 = vmul.f32 %v91, 0.21674532
  %v893 = vmul.f32 %v92, 0.21674532
  %v894 = vmul.f32 %v93, 0.21674532
  %v895 = vmul.f32 %v94, 0.21674532
  %v896 = vmul.f32 %v95, 0.21674532
  %v897 = vmul.f32 %v96, 0.21674532
  %v898 = vmul.f32 %v97, 0.21674532
  %v899 = vmul.f32 %v98, 0.21674532
  %v900 = vmul.f32 %v99, 0.21674532
  %v901 = vmul.f32 %v100, 0.21674532
  %v902 = vmul.f32 %v101, 0.21674532
  %v903 = vmul.f32 %v102, 0.21674532
  %v904 = vmul.f32 %v103, 0.21674532
  %v905 = vmul.f32 %v104, 0.21674532
  %v906 = vmul.f32 %v105, 0.21674532
  %v907 = vmul.f32 %v106, 0.21674532
  %v908 = vmul.f32 %v107, 0.21674532
  %v909 = vmul.f32 %v108, 0.21674532
  %v910 = vmul.f32 %v109, 0.21674532
  %v911 = vmul.f32 %v110, 0.21674532
  %v912 = vmul.f32 %v111, 0.21674532
  %v913 = vmul.f32 %v112, 0.21674532
  %v914 = vmul.f32 %v113, 0.21674532
  %v915 = vmul.f32 %v114, 0.21674532
  %v916 = vmul.f32 %v115, 0.21674532
  %v917 = vmul.f32 %v116, 0.21674532
  %v918 = vmul.f32 %v117, 0.21674532
  %v919 = vmul.f32 %v118, 0.21674532
  %v920 = vmul.f32 %v119, 0.21674532
  %v921 = vmul.f32 %v120, 0.21674532
  %v922 = vmul.f32 %v121, 0.21674532
  %v923 = vmul.f32 %v122, 0.21674532
  %v924 = vmul.f32 %v123, 0.21674532
  %v925 = vmul.f32 %v124, 0.21674532
  %v926 = vmul.f32 %v125, 0.21674532
  %v927 = vmul.f32 %v126, 0.21674532
  %v928 = vmul.f32 %v127, 0.21674532
  %v929 = vmul.f32 %v128, 0.21674532
  %v930 = vmul.f32 %v129, 0.21674532
  %v931 = vmul.f32 %v130, 0.21674532
  %v932 = vmul.f32 %v131, 0.21674532
  %v933 = vmul.f32 %v132, 0.21674532
  %v934 = vmul.f32 %v133, 0.21674532
  %v935 = vmul.f32 %v134, 0.21674532
  %v936 = vmul.f32 %v135, 0.21674532
  %vm1057 = vcmask 1045504
  %v1058 = vrot.slane %v817, 2
  %v1059 = vrot.slane %v818, 2
  %v1060 = vsel %vm1057, %v1058, %v1059
  %v1061 = vrot.slane %v819, 2
  %v1062 = vsel %vm1057, %v1059, %v1061
  %v1063 = vrot.slane %v820, 2
  %v1064 = vrot.slane %v821, 2
  %v1065 = vsel %vm1057, %v1063, %v1064
  %v1066 = vrot.slane %v822, 2
  %v1067 = vsel %vm1057, %v1064, %v1066
  %v1068 = vrot.slane %v823, 2
  %v1069 = vrot.slane %v824, 2
  %v1070 = vsel %vm1057, %v1068, %v1069
  %v1071 = vrot.slane %v825, 2
  %v1072 = vsel %vm1057, %v1069, %v1071
  %v1073 = vrot.slane %v826, 2
  %v1074 = vrot.slane %v827, 2
  %v1075 = vsel %vm1057, %v1073, %v1074
  %v1076 = vrot.slane %v828, 2
  %v1077 = vsel %vm1057, %v1074, %v1076
  %v1078 = vrot.slane %v829, 2
  %v1079 = vrot.slane %v830, 2
  %v1080 = vsel %vm1057, %v1078, %v1079
  %v1081 = vrot.slane %v831, 2
  %v1082 = vsel %vm1057, %v1079, %v1081
  %v1083 = vrot.slane %v832, 2
  %v1084 = vrot.slane %v833, 2
  %v1085 = vsel %vm1057, %v1083, %v1084
  %v1086 = vrot.slane %v834, 2
  %v1087 = vsel %vm1057, %v1084, %v1086
  %v1088 = vrot.slane %v835, 2
  %v1089 = vrot.slane %v836, 2
  %v1090 = vsel %vm1057, %v1088, %v1089
  %v1091 = vrot.slane %v837, 2
  %v1092 = vsel %vm1057, %v1089, %v1091
  %v1093 = vrot.slane %v838, 2
  %v1094 = vrot.slane %v839, 2
  %v1095 = vsel %vm1057, %v1093, %v1094
  %v1096 = vrot.slane %v840, 2
  %v1097 = vsel %vm1057, %v1094, %v1096
  %v1098 = vrot.slane %v841, 2
  %v1099 = vrot.slane %v842, 2
  %v1100 = vsel %vm1057, %v1098, %v1099
  %v1101 = vrot.slane %v843, 2
  %v1102 = vsel %vm1057, %v1099, %v1101
  %v1103 = vrot.slane %v844, 2
  %v1104 = vrot.slane %v845, 2
  %v1105 = vsel %vm1057, %v1103, %v1104
  %v1106 = vrot.slane %v846, 2
  %v1107 = vsel %vm1057, %v1104, %v1106
  %v1108 = vrot.slane %v847, 2
  %v1109 = vrot.slane %v848, 2
  %v1110 = vsel %vm1057, %v1108, %v1109
  %v1111 = vrot.slane %v849, 2
  %v1112 = vsel %vm1057, %v1109, %v1111
  %v1113 = vrot.slane %v850, 2
  %v1114 = vrot.slane %v851, 2
  %v1115 = vsel %vm1057, %v1113, %v1114
  %v1116 = vrot.slane %v852, 2
  %v1117 = vsel %vm1057, %v1114, %v1116
  %v1118 = vrot.slane %v853, 2
  %v1119 = vrot.slane %v854, 2
  %v1120 = vsel %vm1057, %v1118, %v1119
  %v1121 = vrot.slane %v855, 2
  %v1122 = vsel %vm1057, %v1119, %v1121
  %v1123 = vrot.slane %v856, 2
  %v1124 = vrot.slane %v857, 2
  %v1125 = vsel %vm1057, %v1123, %v1124
  %v1126 = vrot.slane %v858, 2
  %v1127 = vsel %vm1057, %v1124, %v1126
  %v1128 = vrot.slane %v859, 2
  %v1129 = vrot.slane %v860, 2
  %v1130 = vsel %vm1057, %v1128, %v1129
  %v1131 = vrot.slane %v861, 2
  %v1132 = vsel %vm1057, %v1129, %v1131
  %v1133 = vrot.slane %v862, 2
  %v1134 = vrot.slane %v863, 2
  %v1135 = vsel %vm1057, %v1133, %v1134
  %v1136 = vrot.slane %v864, 2
  %v1137 = vsel %vm1057, %v1134, %v1136
  %v1138 = vrot.slane %v865, 2
  %v1139 = vrot.slane %v866, 2
  %v1140 = vsel %vm1057, %v1138, %v1139
  %v1141 = vrot.slane %v867, 2
  %v1142 = vsel %vm1057, %v1139, %v1141
  %v1143 = vrot.slane %v868, 2
  %v1144 = vrot.slane %v869, 2
  %v1145 = vsel %vm1057, %v1143, %v1144
  %v1146 = vrot.slane %v870, 2
  %v1147 = vsel %vm1057, %v1144, %v1146
  %v1148 = vrot.slane %v871, 2
  %v1149 = vrot.slane %v872, 2
  %v1150 = vsel %vm1057, %v1148, %v1149
  %v1151 = vrot.slane %v873, 2
  %v1152 = vsel %vm1057, %v1149, %v1151
  %v1153 = vrot.slane %v874, 2
  %v1154 = vrot.slane %v875, 2
  %v1155 = vsel %vm1057, %v1153, %v1154
  %v1156 = vrot.slane %v876, 2
  %v1157 = vsel %vm1057, %v1154, %v1156
  %v1158 = vrot.slane %v877, 2
  %v1159 = vrot.slane %v878, 2
  %v1160 = vsel %vm1057, %v1158, %v1159
  %v1161 = vrot.slane %v879, 2
  %v1162 = vsel %vm1057, %v1159, %v1161
  %v1163 = vrot.slane %v880, 2
  %v1164 = vrot.slane %v881, 2
  %v1165 = vsel %vm1057, %v1163, %v1164
  %v1166 = vrot.slane %v882, 2
  %v1167 = vsel %vm1057, %v1164, %v1166
  %v1168 = vrot.slane %v883, 2
  %v1169 = vrot.slane %v884, 2
  %v1170 = vsel %vm1057, %v1168, %v1169
  %v1171 = vrot.slane %v885, 2
  %v1172 = vsel %vm1057, %v1169, %v1171
  %v1173 = vrot.slane %v886, 2
  %v1174 = vrot.slane %v887, 2
  %v1175 = vsel %vm1057, %v1173, %v1174
  %v1176 = vrot.slane %v888, 2
  %v1177 = vsel %vm1057, %v1174, %v1176
  %v1178 = vrot.slane %v889, 2
  %v1179 = vrot.slane %v890, 2
  %v1180 = vsel %vm1057, %v1178, %v1179
  %v1181 = vrot.slane %v891, 2
  %v1182 = vsel %vm1057, %v1179, %v1181
  %v1183 = vrot.slane %v892, 2
  %v1184 = vrot.slane %v893, 2
  %v1185 = vsel %vm1057, %v1183, %v1184
  %v1186 = vrot.slane %v894, 2
  %v1187 = vsel %vm1057, %v1184, %v1186
  %v1188 = vrot.slane %v895, 2
  %v1189 = vrot.slane %v896, 2
  %v1190 = vsel %vm1057, %v1188, %v1189
  %v1191 = vrot.slane %v897, 2
  %v1192 = vsel %vm1057, %v1189, %v1191
  %v1193 = vrot.slane %v898, 2
  %v1194 = vrot.slane %v899, 2
  %v1195 = vsel %vm1057, %v1193, %v1194
  %v1196 = vrot.slane %v900, 2
  %v1197 = vsel %vm1057, %v1194, %v1196
  %v1198 = vrot.slane %v901, 2
  %v1199 = vrot.slane %v902, 2
  %v1200 = vsel %vm1057, %v1198, %v1199
  %v1201 = vrot.slane %v903, 2
  %v1202 = vsel %vm1057, %v1199, %v1201
  %v1203 = vrot.slane %v904, 2
  %v1204 = vrot.slane %v905, 2
  %v1205 = vsel %vm1057, %v1203, %v1204
  %v1206 = vrot.slane %v906, 2
  %v1207 = vsel %vm1057, %v1204, %v1206
  %v1208 = vrot.slane %v907, 2
  %v1209 = vrot.slane %v908, 2
  %v1210 = vsel %vm1057, %v1208, %v1209
  %v1211 = vrot.slane %v909, 2
  %v1212 = vsel %vm1057, %v1209, %v1211
  %v1213 = vrot.slane %v910, 2
  %v1214 = vrot.slane %v911, 2
  %v1215 = vsel %vm1057, %v1213, %v1214
  %v1216 = vrot.slane %v912, 2
  %v1217 = vsel %vm1057, %v1214, %v1216
  %v1218 = vrot.slane %v913, 2
  %v1219 = vrot.slane %v914, 2
  %v1220 = vsel %vm1057, %v1218, %v1219
  %v1221 = vrot.slane %v915, 2
  %v1222 = vsel %vm1057, %v1219, %v1221
  %v1223 = vrot.slane %v916, 2
  %v1224 = vrot.slane %v917, 2
  %v1225 = vsel %vm1057, %v1223, %v1224
  %v1226 = vrot.slane %v918, 2
  %v1227 = vsel %vm1057, %v1224, %v1226
  %v1228 = vrot.slane %v919, 2
  %v1229 = vrot.slane %v920, 2
  %v1230 = vsel %vm1057, %v1228, %v1229
  %v1231 = vrot.slane %v921, 2
  %v1232 = vsel %vm1057, %v1229, %v1231
  %v1233 = vrot.slane %v922, 2
  %v1234 = vrot.slane %v923, 2
  %v1235 = vsel %vm1057, %v1233, %v1234
  %v1236 = vrot.slane %v924, 2
  %v1237 = vsel %vm1057, %v1234, %v1236
  %v1238 = vrot.slane %v925, 2
  %v1239 = vrot.slane %v926, 2
  %v1240 = vsel %vm1057, %v1238, %v1239
  %v1241 = vrot.slane %v927, 2
  %v1242 = vsel %vm1057, %v1239, %v1241
  %v1243 = vrot.slane %v928, 2
  %v1244 = vrot.slane %v929, 2
  %v1245 = vsel %vm1057, %v1243, %v1244
  %v1246 = vrot.slane %v930, 2
  %v1247 = vsel %vm1057, %v1244, %v1246
  %v1248 = vrot.slane %v931, 2
  %v1249 = vrot.slane %v932, 2
  %v1250 = vsel %vm1057, %v1248, %v1249
  %v1251 = vrot.slane %v933, 2
  %v1252 = vsel %vm1057, %v1249, %v1251
  %v1253 = vrot.slane %v934, 2
  %v1254 = vrot.slane %v935, 2
  %v1255 = vsel %vm1057, %v1253, %v1254
  %v1256 = vrot.slane %v936, 2
  %v1257 = vsel %vm1057, %v1254, %v1256
  %v1338 = vadd.f32 %v737, %v1060
  %v1339 = vadd.f32 %v738, %v1062
  %v1340 = vadd.f32 %v739, %v1065
  %v1341 = vadd.f32 %v740, %v1067
  %v1342 = vadd.f32 %v741, %v1070
  %v1343 = vadd.f32 %v742, %v1072
  %v1344 = vadd.f32 %v743, %v1075
  %v1345 = vadd.f32 %v744, %v1077
  %v1346 = vadd.f32 %v745, %v1080
  %v1347 = vadd.f32 %v746, %v1082
  %v1348 = vadd.f32 %v747, %v1085
  %v1349 = vadd.f32 %v748, %v1087
  %v1350 = vadd.f32 %v749, %v1090
  %v1351 = vadd.f32 %v750, %v1092
  %v1352 = vadd.f32 %v751, %v1095
  %v1353 = vadd.f32 %v752, %v1097
  %v1354 = vadd.f32 %v753, %v1100
  %v1355 = vadd.f32 %v754, %v1102
  %v1356 = vadd.f32 %v755, %v1105
  %v1357 = vadd.f32 %v756, %v1107
  %v1358 = vadd.f32 %v757, %v1110
  %v1359 = vadd.f32 %v758, %v1112
  %v1360 = vadd.f32 %v759, %v1115
  %v1361 = vadd.f32 %v760, %v1117
  %v1362 = vadd.f32 %v761, %v1120
  %v1363 = vadd.f32 %v762, %v1122
  %v1364 = vadd.f32 %v763, %v1125
  %v1365 = vadd.f32 %v764, %v1127
  %v1366 = vadd.f32 %v765, %v1130
  %v1367 = vadd.f32 %v766, %v1132
  %v1368 = vadd.f32 %v767, %v1135
  %v1369 = vadd.f32 %v768, %v1137
  %v1370 = vadd.f32 %v769, %v1140
  %v1371 = vadd.f32 %v770, %v1142
  %v1372 = vadd.f32 %v771, %v1145
  %v1373 = vadd.f32 %v772, %v1147
  %v1374 = vadd.f32 %v773, %v1150
  %v1375 = vadd.f32 %v774, %v1152
  %v1376 = vadd.f32 %v775, %v1155
  %v1377 = vadd.f32 %v776, %v1157
  %v1378 = vadd.f32 %v777, %v1160
  %v1379 = vadd.f32 %v778, %v1162
  %v1380 = vadd.f32 %v779, %v1165
  %v1381 = vadd.f32 %v780, %v1167
  %v1382 = vadd.f32 %v781, %v1170
  %v1383 = vadd.f32 %v782, %v1172
  %v1384 = vadd.f32 %v783, %v1175
  %v1385 = vadd.f32 %v784, %v1177
  %v1386 = vadd.f32 %v785, %v1180
  %v1387 = vadd.f32 %v786, %v1182
  %v1388 = vadd.f32 %v787, %v1185
  %v1389 = vadd.f32 %v788, %v1187
  %v1390 = vadd.f32 %v789, %v1190
  %v1391 = vadd.f32 %v790, %v1192
  %v1392 = vadd.f32 %v791, %v1195
  %v1393 = vadd.f32 %v792, %v1197
  %v1394 = vadd.f32 %v793, %v1200
  %v1395 = vadd.f32 %v794, %v1202
  %v1396 = vadd.f32 %v795, %v1205
  %v1397 = vadd.f32 %v796, %v1207
  %v1398 = vadd.f32 %v797, %v1210
  %v1399 = vadd.f32 %v798, %v1212
  %v1400 = vadd.f32 %v799, %v1215
  %v1401 = vadd.f32 %v800, %v1217
  %v1402 = vadd.f32 %v801, %v1220
  %v1403 = vadd.f32 %v802, %v1222
  %v1404 = vadd.f32 %v803, %v1225
  %v1405 = vadd.f32 %v804, %v1227
  %v1406 = vadd.f32 %v805, %v1230
  %v1407 = vadd.f32 %v806, %v1232
  %v1408 = vadd.f32 %v807, %v1235
  %v1409 = vadd.f32 %v808, %v1237
  %v1410 = vadd.f32 %v809, %v1240
  %v1411 = vadd.f32 %v810, %v1242
  %v1412 = vadd.f32 %v811, %v1245
  %v1413 = vadd.f32 %v812, %v1247
  %v1414 = vadd.f32 %v813, %v1250
  %v1415 = vadd.f32 %v814, %v1252
  %v1416 = vadd.f32 %v815, %v1255
  %v1417 = vadd.f32 %v816, %v1257
  %v1418 = vmul.f32 %v14, 0.27068216
  %v1419 = vmul.f32 %v15, 0.27068216
  %v1420 = vmul.f32 %v16, 0.27068216
  %v1421 = vmul.f32 %v17, 0.27068216
  %v1422 = vmul.f32 %v18, 0.27068216
  %v1423 = vmul.f32 %v19, 0.27068216
  %v1424 = vmul.f32 %v20, 0.27068216
  %v1425 = vmul.f32 %v21, 0.27068216
  %v1426 = vmul.f32 %v22, 0.27068216
  %v1427 = vmul.f32 %v23, 0.27068216
  %v1428 = vmul.f32 %v24, 0.27068216
  %v1429 = vmul.f32 %v25, 0.27068216
  %v1430 = vmul.f32 %v26, 0.27068216
  %v1431 = vmul.f32 %v27, 0.27068216
  %v1432 = vmul.f32 %v28, 0.27068216
  %v1433 = vmul.f32 %v29, 0.27068216
  %v1434 = vmul.f32 %v30, 0.27068216
  %v1435 = vmul.f32 %v31, 0.27068216
  %v1436 = vmul.f32 %v32, 0.27068216
  %v1437 = vmul.f32 %v33, 0.27068216
  %v1438 = vmul.f32 %v34, 0.27068216
  %v1439 = vmul.f32 %v35, 0.27068216
  %v1440 = vmul.f32 %v36, 0.27068216
  %v1441 = vmul.f32 %v37, 0.27068216
  %v1442 = vmul.f32 %v38, 0.27068216
  %v1443 = vmul.f32 %v39, 0.27068216
  %v1444 = vmul.f32 %v40, 0.27068216
  %v1445 = vmul.f32 %v41, 0.27068216
  %v1446 = vmul.f32 %v42, 0.27068216
  %v1447 = vmul.f32 %v43, 0.27068216
  %v1448 = vmul.f32 %v44, 0.27068216
  %v1449 = vmul.f32 %v45, 0.27068216
  %v1450 = vmul.f32 %v46, 0.27068216
  %v1451 = vmul.f32 %v47, 0.27068216
  %v1452 = vmul.f32 %v48, 0.27068216
  %v1453 = vmul.f32 %v49, 0.27068216
  %v1454 = vmul.f32 %v50, 0.27068216
  %v1455 = vmul.f32 %v51, 0.27068216
  %v1456 = vmul.f32 %v52, 0.27068216
  %v1457 = vmul.f32 %v53, 0.27068216
  %v1458 = vmul.f32 %v54, 0.27068216
  %v1459 = vmul.f32 %v55, 0.27068216
  %v1460 = vmul.f32 %v56, 0.27068216
  %v1461 = vmul.f32 %v57, 0.27068216
  %v1462 = vmul.f32 %v58, 0.27068216
  %v1463 = vmul.f32 %v59, 0.27068216
  %v1464 = vmul.f32 %v60, 0.27068216
  %v1465 = vmul.f32 %v61, 0.27068216
  %v1466 = vmul.f32 %v64, 0.27068216
  %v1467 = vmul.f32 %v65, 0.27068216
  %v1468 = vmul.f32 %v66, 0.27068216
  %v1469 = vmul.f32 %v67, 0.27068216
  %v1470 = vmul.f32 %v68, 0.27068216
  %v1471 = vmul.f32 %v69, 0.27068216
  %v1472 = vmul.f32 %v70, 0.27068216
  %v1473 = vmul.f32 %v71, 0.27068216
  %v1474 = vmul.f32 %v72, 0.27068216
  %v1475 = vmul.f32 %v73, 0.27068216
  %v1476 = vmul.f32 %v74, 0.27068216
  %v1477 = vmul.f32 %v75, 0.27068216
  %v1478 = vmul.f32 %v76, 0.27068216
  %v1479 = vmul.f32 %v77, 0.27068216
  %v1480 = vmul.f32 %v78, 0.27068216
  %v1481 = vmul.f32 %v79, 0.27068216
  %v1482 = vmul.f32 %v80, 0.27068216
  %v1483 = vmul.f32 %v81, 0.27068216
  %v1484 = vmul.f32 %v82, 0.27068216
  %v1485 = vmul.f32 %v83, 0.27068216
  %v1486 = vmul.f32 %v84, 0.27068216
  %v1487 = vmul.f32 %v85, 0.27068216
  %v1488 = vmul.f32 %v86, 0.27068216
  %v1489 = vmul.f32 %v87, 0.27068216
  %v1490 = vmul.f32 %v88, 0.27068216
  %v1491 = vmul.f32 %v89, 0.27068216
  %v1492 = vmul.f32 %v90, 0.27068216
  %v1493 = vmul.f32 %v91, 0.27068216
  %v1494 = vmul.f32 %v92, 0.27068216
  %v1495 = vmul.f32 %v93, 0.27068216
  %v1496 = vmul.f32 %v94, 0.27068216
  %v1497 = vmul.f32 %v95, 0.27068216
  %v1498 = vmul.f32 %v96, 0.27068216
  %v1499 = vmul.f32 %v97, 0.27068216
  %v1500 = vmul.f32 %v98, 0.27068216
  %v1501 = vmul.f32 %v99, 0.27068216
  %v1502 = vmul.f32 %v100, 0.27068216
  %v1503 = vmul.f32 %v101, 0.27068216
  %v1504 = vmul.f32 %v102, 0.27068216
  %v1505 = vmul.f32 %v103, 0.27068216
  %v1506 = vmul.f32 %v104, 0.27068216
  %v1507 = vmul.f32 %v105, 0.27068216
  %v1508 = vmul.f32 %v106, 0.27068216
  %v1509 = vmul.f32 %v107, 0.27068216
  %v1510 = vmul.f32 %v108, 0.27068216
  %v1511 = vmul.f32 %v109, 0.27068216
  %v1512 = vmul.f32 %v110, 0.27068216
  %v1513 = vmul.f32 %v111, 0.27068216
  %v1514 = vmul.f32 %v112, 0.27068216
  %v1515 = vmul.f32 %v113, 0.27068216
  %v1516 = vmul.f32 %v114, 0.27068216
  %v1517 = vmul.f32 %v115, 0.27068216
  %v1518 = vmul.f32 %v116, 0.27068216
  %v1519 = vmul.f32 %v117, 0.27068216
  %v1520 = vmul.f32 %v118, 0.27068216
  %v1521 = vmul.f32 %v119, 0.27068216
  %v1522 = vmul.f32 %v120, 0.27068216
  %v1523 = vmul.f32 %v121, 0.27068216
  %v1524 = vmul.f32 %v122, 0.27068216
  %v1525 = vmul.f32 %v123, 0.27068216
  %v1526 = vmul.f32 %v124, 0.27068216
  %v1527 = vmul.f32 %v125, 0.27068216
  %v1528 = vmul.f32 %v126, 0.27068216
  %v1529 = vmul.f32 %v127, 0.27068216
  %v1530 = vmul.f32 %v128, 0.27068216
  %v1531 = vmul.f32 %v129, 0.27068216
  %v1532 = vmul.f32 %v130, 0.27068216
  %v1533 = vmul.f32 %v131, 0.27068216
  %v1534 = vmul.f32 %v132, 0.27068216
  %v1535 = vmul.f32 %v133, 0.27068216
  %v1536 = vmul.f32 %v134, 0.27068216
  %v1537 = vmul.f32 %v135, 0.27068216
  %vm1658 = vcmask 1044480
  %v1659 = vrot.slane %v1418, 3
  %v1660 = vrot.slane %v1419, 3
  %v1661 = vsel %vm1658, %v1659, %v1660
  %v1662 = vrot.slane %v1420, 3
  %v1663 = vsel %vm1658, %v1660, %v1662
  %v1664 = vrot.slane %v1421, 3
  %v1665 = vrot.slane %v1422, 3
  %v1666 = vsel %vm1658, %v1664, %v1665
  %v1667 = vrot.slane %v1423, 3
  %v1668 = vsel %vm1658, %v1665, %v1667
  %v1669 = vrot.slane %v1424, 3
  %v1670 = vrot.slane %v1425, 3
  %v1671 = vsel %vm1658, %v1669, %v1670
  %v1672 = vrot.slane %v1426, 3
  %v1673 = vsel %vm1658, %v1670, %v1672
  %v1674 = vrot.slane %v1427, 3
  %v1675 = vrot.slane %v1428, 3
  %v1676 = vsel %vm1658, %v1674, %v1675
  %v1677 = vrot.slane %v1429, 3
  %v1678 = vsel %vm1658, %v1675, %v1677
  %v1679 = vrot.slane %v1430, 3
  %v1680 = vrot.slane %v1431, 3
  %v1681 = vsel %vm1658, %v1679, %v1680
  %v1682 = vrot.slane %v1432, 3
  %v1683 = vsel %vm1658, %v1680, %v1682
  %v1684 = vrot.slane %v1433, 3
  %v1685 = vrot.slane %v1434, 3
  %v1686 = vsel %vm1658, %v1684, %v1685
  %v1687 = vrot.slane %v1435, 3
  %v1688 = vsel %vm1658, %v1685, %v1687
  %v1689 = vrot.slane %v1436, 3
  %v1690 = vrot.slane %v1437, 3
  %v1691 = vsel %vm1658, %v1689, %v1690
  %v1692 = vrot.slane %v1438, 3
  %v1693 = vsel %vm1658, %v1690, %v1692
  %v1694 = vrot.slane %v1439, 3
  %v1695 = vrot.slane %v1440, 3
  %v1696 = vsel %vm1658, %v1694, %v1695
  %v1697 = vrot.slane %v1441, 3
  %v1698 = vsel %vm1658, %v1695, %v1697
  %v1699 = vrot.slane %v1442, 3
  %v1700 = vrot.slane %v1443, 3
  %v1701 = vsel %vm1658, %v1699, %v1700
  %v1702 = vrot.slane %v1444, 3
  %v1703 = vsel %vm1658, %v1700, %v1702
  %v1704 = vrot.slane %v1445, 3
  %v1705 = vrot.slane %v1446, 3
  %v1706 = vsel %vm1658, %v1704, %v1705
  %v1707 = vrot.slane %v1447, 3
  %v1708 = vsel %vm1658, %v1705, %v1707
  %v1709 = vrot.slane %v1448, 3
  %v1710 = vrot.slane %v1449, 3
  %v1711 = vsel %vm1658, %v1709, %v1710
  %v1712 = vrot.slane %v1450, 3
  %v1713 = vsel %vm1658, %v1710, %v1712
  %v1714 = vrot.slane %v1451, 3
  %v1715 = vrot.slane %v1452, 3
  %v1716 = vsel %vm1658, %v1714, %v1715
  %v1717 = vrot.slane %v1453, 3
  %v1718 = vsel %vm1658, %v1715, %v1717
  %v1719 = vrot.slane %v1454, 3
  %v1720 = vrot.slane %v1455, 3
  %v1721 = vsel %vm1658, %v1719, %v1720
  %v1722 = vrot.slane %v1456, 3
  %v1723 = vsel %vm1658, %v1720, %v1722
  %v1724 = vrot.slane %v1457, 3
  %v1725 = vrot.slane %v1458, 3
  %v1726 = vsel %vm1658, %v1724, %v1725
  %v1727 = vrot.slane %v1459, 3
  %v1728 = vsel %vm1658, %v1725, %v1727
  %v1729 = vrot.slane %v1460, 3
  %v1730 = vrot.slane %v1461, 3
  %v1731 = vsel %vm1658, %v1729, %v1730
  %v1732 = vrot.slane %v1462, 3
  %v1733 = vsel %vm1658, %v1730, %v1732
  %v1734 = vrot.slane %v1463, 3
  %v1735 = vrot.slane %v1464, 3
  %v1736 = vsel %vm1658, %v1734, %v1735
  %v1737 = vrot.slane %v1465, 3
  %v1738 = vsel %vm1658, %v1735, %v1737
  %v1739 = vrot.slane %v1466, 3
  %v1740 = vrot.slane %v1467, 3
  %v1741 = vsel %vm1658, %v1739, %v1740
  %v1742 = vrot.slane %v1468, 3
  %v1743 = vsel %vm1658, %v1740, %v1742
  %v1744 = vrot.slane %v1469, 3
  %v1745 = vrot.slane %v1470, 3
  %v1746 = vsel %vm1658, %v1744, %v1745
  %v1747 = vrot.slane %v1471, 3
  %v1748 = vsel %vm1658, %v1745, %v1747
  %v1749 = vrot.slane %v1472, 3
  %v1750 = vrot.slane %v1473, 3
  %v1751 = vsel %vm1658, %v1749, %v1750
  %v1752 = vrot.slane %v1474, 3
  %v1753 = vsel %vm1658, %v1750, %v1752
  %v1754 = vrot.slane %v1475, 3
  %v1755 = vrot.slane %v1476, 3
  %v1756 = vsel %vm1658, %v1754, %v1755
  %v1757 = vrot.slane %v1477, 3
  %v1758 = vsel %vm1658, %v1755, %v1757
  %v1759 = vrot.slane %v1478, 3
  %v1760 = vrot.slane %v1479, 3
  %v1761 = vsel %vm1658, %v1759, %v1760
  %v1762 = vrot.slane %v1480, 3
  %v1763 = vsel %vm1658, %v1760, %v1762
  %v1764 = vrot.slane %v1481, 3
  %v1765 = vrot.slane %v1482, 3
  %v1766 = vsel %vm1658, %v1764, %v1765
  %v1767 = vrot.slane %v1483, 3
  %v1768 = vsel %vm1658, %v1765, %v1767
  %v1769 = vrot.slane %v1484, 3
  %v1770 = vrot.slane %v1485, 3
  %v1771 = vsel %vm1658, %v1769, %v1770
  %v1772 = vrot.slane %v1486, 3
  %v1773 = vsel %vm1658, %v1770, %v1772
  %v1774 = vrot.slane %v1487, 3
  %v1775 = vrot.slane %v1488, 3
  %v1776 = vsel %vm1658, %v1774, %v1775
  %v1777 = vrot.slane %v1489, 3
  %v1778 = vsel %vm1658, %v1775, %v1777
  %v1779 = vrot.slane %v1490, 3
  %v1780 = vrot.slane %v1491, 3
  %v1781 = vsel %vm1658, %v1779, %v1780
  %v1782 = vrot.slane %v1492, 3
  %v1783 = vsel %vm1658, %v1780, %v1782
  %v1784 = vrot.slane %v1493, 3
  %v1785 = vrot.slane %v1494, 3
  %v1786 = vsel %vm1658, %v1784, %v1785
  %v1787 = vrot.slane %v1495, 3
  %v1788 = vsel %vm1658, %v1785, %v1787
  %v1789 = vrot.slane %v1496, 3
  %v1790 = vrot.slane %v1497, 3
  %v1791 = vsel %vm1658, %v1789, %v1790
  %v1792 = vrot.slane %v1498, 3
  %v1793 = vsel %vm1658, %v1790, %v1792
  %v1794 = vrot.slane %v1499, 3
  %v1795 = vrot.slane %v1500, 3
  %v1796 = vsel %vm1658, %v1794, %v1795
  %v1797 = vrot.slane %v1501, 3
  %v1798 = vsel %vm1658, %v1795, %v1797
  %v1799 = vrot.slane %v1502, 3
  %v1800 = vrot.slane %v1503, 3
  %v1801 = vsel %vm1658, %v1799, %v1800
  %v1802 = vrot.slane %v1504, 3
  %v1803 = vsel %vm1658, %v1800, %v1802
  %v1804 = vrot.slane %v1505, 3
  %v1805 = vrot.slane %v1506, 3
  %v1806 = vsel %vm1658, %v1804, %v1805
  %v1807 = vrot.slane %v1507, 3
  %v1808 = vsel %vm1658, %v1805, %v1807
  %v1809 = vrot.slane %v1508, 3
  %v1810 = vrot.slane %v1509, 3
  %v1811 = vsel %vm1658, %v1809, %v1810
  %v1812 = vrot.slane %v1510, 3
  %v1813 = vsel %vm1658, %v1810, %v1812
  %v1814 = vrot.slane %v1511, 3
  %v1815 = vrot.slane %v1512, 3
  %v1816 = vsel %vm1658, %v1814, %v1815
  %v1817 = vrot.slane %v1513, 3
  %v1818 = vsel %vm1658, %v1815, %v1817
  %v1819 = vrot.slane %v1514, 3
  %v1820 = vrot.slane %v1515, 3
  %v1821 = vsel %vm1658, %v1819, %v1820
  %v1822 = vrot.slane %v1516, 3
  %v1823 = vsel %vm1658, %v1820, %v1822
  %v1824 = vrot.slane %v1517, 3
  %v1825 = vrot.slane %v1518, 3
  %v1826 = vsel %vm1658, %v1824, %v1825
  %v1827 = vrot.slane %v1519, 3
  %v1828 = vsel %vm1658, %v1825, %v1827
  %v1829 = vrot.slane %v1520, 3
  %v1830 = vrot.slane %v1521, 3
  %v1831 = vsel %vm1658, %v1829, %v1830
  %v1832 = vrot.slane %v1522, 3
  %v1833 = vsel %vm1658, %v1830, %v1832
  %v1834 = vrot.slane %v1523, 3
  %v1835 = vrot.slane %v1524, 3
  %v1836 = vsel %vm1658, %v1834, %v1835
  %v1837 = vrot.slane %v1525, 3
  %v1838 = vsel %vm1658, %v1835, %v1837
  %v1839 = vrot.slane %v1526, 3
  %v1840 = vrot.slane %v1527, 3
  %v1841 = vsel %vm1658, %v1839, %v1840
  %v1842 = vrot.slane %v1528, 3
  %v1843 = vsel %vm1658, %v1840, %v1842
  %v1844 = vrot.slane %v1529, 3
  %v1845 = vrot.slane %v1530, 3
  %v1846 = vsel %vm1658, %v1844, %v1845
  %v1847 = vrot.slane %v1531, 3
  %v1848 = vsel %vm1658, %v1845, %v1847
  %v1849 = vrot.slane %v1532, 3
  %v1850 = vrot.slane %v1533, 3
  %v1851 = vsel %vm1658, %v1849, %v1850
  %v1852 = vrot.slane %v1534, 3
  %v1853 = vsel %vm1658, %v1850, %v1852
  %v1854 = vrot.slane %v1535, 3
  %v1855 = vrot.slane %v1536, 3
  %v1856 = vsel %vm1658, %v1854, %v1855
  %v1857 = vrot.slane %v1537, 3
  %v1858 = vsel %vm1658, %v1855, %v1857
  %v1939 = vadd.f32 %v1338, %v1661
  %v1940 = vadd.f32 %v1339, %v1663
  %v1941 = vadd.f32 %v1340, %v1666
  %v1942 = vadd.f32 %v1341, %v1668
  %v1943 = vadd.f32 %v1342, %v1671
  %v1944 = vadd.f32 %v1343, %v1673
  %v1945 = vadd.f32 %v1344, %v1676
  %v1946 = vadd.f32 %v1345, %v1678
  %v1947 = vadd.f32 %v1346, %v1681
  %v1948 = vadd.f32 %v1347, %v1683
  %v1949 = vadd.f32 %v1348, %v1686
  %v1950 = vadd.f32 %v1349, %v1688
  %v1951 = vadd.f32 %v1350, %v1691
  %v1952 = vadd.f32 %v1351, %v1693
  %v1953 = vadd.f32 %v1352, %v1696
  %v1954 = vadd.f32 %v1353, %v1698
  %v1955 = vadd.f32 %v1354, %v1701
  %v1956 = vadd.f32 %v1355, %v1703
  %v1957 = vadd.f32 %v1356, %v1706
  %v1958 = vadd.f32 %v1357, %v1708
  %v1959 = vadd.f32 %v1358, %v1711
  %v1960 = vadd.f32 %v1359, %v1713
  %v1961 = vadd.f32 %v1360, %v1716
  %v1962 = vadd.f32 %v1361, %v1718
  %v1963 = vadd.f32 %v1362, %v1721
  %v1964 = vadd.f32 %v1363, %v1723
  %v1965 = vadd.f32 %v1364, %v1726
  %v1966 = vadd.f32 %v1365, %v1728
  %v1967 = vadd.f32 %v1366, %v1731
  %v1968 = vadd.f32 %v1367, %v1733
  %v1969 = vadd.f32 %v1368, %v1736
  %v1970 = vadd.f32 %v1369, %v1738
  %v1971 = vadd.f32 %v1370, %v1741
  %v1972 = vadd.f32 %v1371, %v1743
  %v1973 = vadd.f32 %v1372, %v1746
  %v1974 = vadd.f32 %v1373, %v1748
  %v1975 = vadd.f32 %v1374, %v1751
  %v1976 = vadd.f32 %v1375, %v1753
  %v1977 = vadd.f32 %v1376, %v1756
  %v1978 = vadd.f32 %v1377, %v1758
  %v1979 = vadd.f32 %v1378, %v1761
  %v1980 = vadd.f32 %v1379, %v1763
  %v1981 = vadd.f32 %v1380, %v1766
  %v1982 = vadd.f32 %v1381, %v1768
  %v1983 = vadd.f32 %v1382, %v1771
  %v1984 = vadd.f32 %v1383, %v1773
  %v1985 = vadd.f32 %v1384, %v1776
  %v1986 = vadd.f32 %v1385, %v1778
  %v1987 = vadd.f32 %v1386, %v1781
  %v1988 = vadd.f32 %v1387, %v1783
  %v1989 = vadd.f32 %v1388, %v1786
  %v1990 = vadd.f32 %v1389, %v1788
  %v1991 = vadd.f32 %v1390, %v1791
  %v1992 = vadd.f32 %v1391, %v1793
  %v1993 = vadd.f32 %v1392, %v1796
  %v1994 = vadd.f32 %v1393, %v1798
  %v1995 = vadd.f32 %v1394, %v1801
  %v1996 = vadd.f32 %v1395, %v1803
  %v1997 = vadd.f32 %v1396, %v1806
  %v1998 = vadd.f32 %v1397, %v1808
  %v1999 = vadd.f32 %v1398, %v1811
  %v2000 = vadd.f32 %v1399, %v1813
  %v2001 = vadd.f32 %v1400, %v1816
  %v2002 = vadd.f32 %v1401, %v1818
  %v2003 = vadd.f32 %v1402, %v1821
  %v2004 = vadd.f32 %v1403, %v1823
  %v2005 = vadd.f32 %v1404, %v1826
  %v2006 = vadd.f32 %v1405, %v1828
  %v2007 = vadd.f32 %v1406, %v1831
  %v2008 = vadd.f32 %v1407, %v1833
  %v2009 = vadd.f32 %v1408, %v1836
  %v2010 = vadd.f32 %v1409, %v1838
  %v2011 = vadd.f32 %v1410, %v1841
  %v2012 = vadd.f32 %v1411, %v1843
  %v2013 = vadd.f32 %v1412, %v1846
  %v2014 = vadd.f32 %v1413, %v1848
  %v2015 = vadd.f32 %v1414, %v1851
  %v2016 = vadd.f32 %v1415, %v1853
  %v2017 = vadd.f32 %v1416, %v1856
  %v2018 = vadd.f32 %v1417, %v1858
  %vm2019 = vcmask 1043456
  %v2020 = vrot.slane %v817, 4
  %v2021 = vrot.slane %v818, 4
  %v2022 = vsel %vm2019, %v2020, %v2021
  %v2023 = vrot.slane %v819, 4
  %v2024 = vsel %vm2019, %v2021, %v2023
  %v2025 = vrot.slane %v820, 4
  %v2026 = vrot.slane %v821, 4
  %v2027 = vsel %vm2019, %v2025, %v2026
  %v2028 = vrot.slane %v822, 4
  %v2029 = vsel %vm2019, %v2026, %v2028
  %v2030 = vrot.slane %v823, 4
  %v2031 = vrot.slane %v824, 4
  %v2032 = vsel %vm2019, %v2030, %v2031
  %v2033 = vrot.slane %v825, 4
  %v2034 = vsel %vm2019, %v2031, %v2033
  %v2035 = vrot.slane %v826, 4
  %v2036 = vrot.slane %v827, 4
  %v2037 = vsel %vm2019, %v2035, %v2036
  %v2038 = vrot.slane %v828, 4
  %v2039 = vsel %vm2019, %v2036, %v2038
  %v2040 = vrot.slane %v829, 4
  %v2041 = vrot.slane %v830, 4
  %v2042 = vsel %vm2019, %v2040, %v2041
  %v2043 = vrot.slane %v831, 4
  %v2044 = vsel %vm2019, %v2041, %v2043
  %v2045 = vrot.slane %v832, 4
  %v2046 = vrot.slane %v833, 4
  %v2047 = vsel %vm2019, %v2045, %v2046
  %v2048 = vrot.slane %v834, 4
  %v2049 = vsel %vm2019, %v2046, %v2048
  %v2050 = vrot.slane %v835, 4
  %v2051 = vrot.slane %v836, 4
  %v2052 = vsel %vm2019, %v2050, %v2051
  %v2053 = vrot.slane %v837, 4
  %v2054 = vsel %vm2019, %v2051, %v2053
  %v2055 = vrot.slane %v838, 4
  %v2056 = vrot.slane %v839, 4
  %v2057 = vsel %vm2019, %v2055, %v2056
  %v2058 = vrot.slane %v840, 4
  %v2059 = vsel %vm2019, %v2056, %v2058
  %v2060 = vrot.slane %v841, 4
  %v2061 = vrot.slane %v842, 4
  %v2062 = vsel %vm2019, %v2060, %v2061
  %v2063 = vrot.slane %v843, 4
  %v2064 = vsel %vm2019, %v2061, %v2063
  %v2065 = vrot.slane %v844, 4
  %v2066 = vrot.slane %v845, 4
  %v2067 = vsel %vm2019, %v2065, %v2066
  %v2068 = vrot.slane %v846, 4
  %v2069 = vsel %vm2019, %v2066, %v2068
  %v2070 = vrot.slane %v847, 4
  %v2071 = vrot.slane %v848, 4
  %v2072 = vsel %vm2019, %v2070, %v2071
  %v2073 = vrot.slane %v849, 4
  %v2074 = vsel %vm2019, %v2071, %v2073
  %v2075 = vrot.slane %v850, 4
  %v2076 = vrot.slane %v851, 4
  %v2077 = vsel %vm2019, %v2075, %v2076
  %v2078 = vrot.slane %v852, 4
  %v2079 = vsel %vm2019, %v2076, %v2078
  %v2080 = vrot.slane %v853, 4
  %v2081 = vrot.slane %v854, 4
  %v2082 = vsel %vm2019, %v2080, %v2081
  %v2083 = vrot.slane %v855, 4
  %v2084 = vsel %vm2019, %v2081, %v2083
  %v2085 = vrot.slane %v856, 4
  %v2086 = vrot.slane %v857, 4
  %v2087 = vsel %vm2019, %v2085, %v2086
  %v2088 = vrot.slane %v858, 4
  %v2089 = vsel %vm2019, %v2086, %v2088
  %v2090 = vrot.slane %v859, 4
  %v2091 = vrot.slane %v860, 4
  %v2092 = vsel %vm2019, %v2090, %v2091
  %v2093 = vrot.slane %v861, 4
  %v2094 = vsel %vm2019, %v2091, %v2093
  %v2095 = vrot.slane %v862, 4
  %v2096 = vrot.slane %v863, 4
  %v2097 = vsel %vm2019, %v2095, %v2096
  %v2098 = vrot.slane %v864, 4
  %v2099 = vsel %vm2019, %v2096, %v2098
  %v2100 = vrot.slane %v865, 4
  %v2101 = vrot.slane %v866, 4
  %v2102 = vsel %vm2019, %v2100, %v2101
  %v2103 = vrot.slane %v867, 4
  %v2104 = vsel %vm2019, %v2101, %v2103
  %v2105 = vrot.slane %v868, 4
  %v2106 = vrot.slane %v869, 4
  %v2107 = vsel %vm2019, %v2105, %v2106
  %v2108 = vrot.slane %v870, 4
  %v2109 = vsel %vm2019, %v2106, %v2108
  %v2110 = vrot.slane %v871, 4
  %v2111 = vrot.slane %v872, 4
  %v2112 = vsel %vm2019, %v2110, %v2111
  %v2113 = vrot.slane %v873, 4
  %v2114 = vsel %vm2019, %v2111, %v2113
  %v2115 = vrot.slane %v874, 4
  %v2116 = vrot.slane %v875, 4
  %v2117 = vsel %vm2019, %v2115, %v2116
  %v2118 = vrot.slane %v876, 4
  %v2119 = vsel %vm2019, %v2116, %v2118
  %v2120 = vrot.slane %v877, 4
  %v2121 = vrot.slane %v878, 4
  %v2122 = vsel %vm2019, %v2120, %v2121
  %v2123 = vrot.slane %v879, 4
  %v2124 = vsel %vm2019, %v2121, %v2123
  %v2125 = vrot.slane %v880, 4
  %v2126 = vrot.slane %v881, 4
  %v2127 = vsel %vm2019, %v2125, %v2126
  %v2128 = vrot.slane %v882, 4
  %v2129 = vsel %vm2019, %v2126, %v2128
  %v2130 = vrot.slane %v883, 4
  %v2131 = vrot.slane %v884, 4
  %v2132 = vsel %vm2019, %v2130, %v2131
  %v2133 = vrot.slane %v885, 4
  %v2134 = vsel %vm2019, %v2131, %v2133
  %v2135 = vrot.slane %v886, 4
  %v2136 = vrot.slane %v887, 4
  %v2137 = vsel %vm2019, %v2135, %v2136
  %v2138 = vrot.slane %v888, 4
  %v2139 = vsel %vm2019, %v2136, %v2138
  %v2140 = vrot.slane %v889, 4
  %v2141 = vrot.slane %v890, 4
  %v2142 = vsel %vm2019, %v2140, %v2141
  %v2143 = vrot.slane %v891, 4
  %v2144 = vsel %vm2019, %v2141, %v2143
  %v2145 = vrot.slane %v892, 4
  %v2146 = vrot.slane %v893, 4
  %v2147 = vsel %vm2019, %v2145, %v2146
  %v2148 = vrot.slane %v894, 4
  %v2149 = vsel %vm2019, %v2146, %v2148
  %v2150 = vrot.slane %v895, 4
  %v2151 = vrot.slane %v896, 4
  %v2152 = vsel %vm2019, %v2150, %v2151
  %v2153 = vrot.slane %v897, 4
  %v2154 = vsel %vm2019, %v2151, %v2153
  %v2155 = vrot.slane %v898, 4
  %v2156 = vrot.slane %v899, 4
  %v2157 = vsel %vm2019, %v2155, %v2156
  %v2158 = vrot.slane %v900, 4
  %v2159 = vsel %vm2019, %v2156, %v2158
  %v2160 = vrot.slane %v901, 4
  %v2161 = vrot.slane %v902, 4
  %v2162 = vsel %vm2019, %v2160, %v2161
  %v2163 = vrot.slane %v903, 4
  %v2164 = vsel %vm2019, %v2161, %v2163
  %v2165 = vrot.slane %v904, 4
  %v2166 = vrot.slane %v905, 4
  %v2167 = vsel %vm2019, %v2165, %v2166
  %v2168 = vrot.slane %v906, 4
  %v2169 = vsel %vm2019, %v2166, %v2168
  %v2170 = vrot.slane %v907, 4
  %v2171 = vrot.slane %v908, 4
  %v2172 = vsel %vm2019, %v2170, %v2171
  %v2173 = vrot.slane %v909, 4
  %v2174 = vsel %vm2019, %v2171, %v2173
  %v2175 = vrot.slane %v910, 4
  %v2176 = vrot.slane %v911, 4
  %v2177 = vsel %vm2019, %v2175, %v2176
  %v2178 = vrot.slane %v912, 4
  %v2179 = vsel %vm2019, %v2176, %v2178
  %v2180 = vrot.slane %v913, 4
  %v2181 = vrot.slane %v914, 4
  %v2182 = vsel %vm2019, %v2180, %v2181
  %v2183 = vrot.slane %v915, 4
  %v2184 = vsel %vm2019, %v2181, %v2183
  %v2185 = vrot.slane %v916, 4
  %v2186 = vrot.slane %v917, 4
  %v2187 = vsel %vm2019, %v2185, %v2186
  %v2188 = vrot.slane %v918, 4
  %v2189 = vsel %vm2019, %v2186, %v2188
  %v2190 = vrot.slane %v919, 4
  %v2191 = vrot.slane %v920, 4
  %v2192 = vsel %vm2019, %v2190, %v2191
  %v2193 = vrot.slane %v921, 4
  %v2194 = vsel %vm2019, %v2191, %v2193
  %v2195 = vrot.slane %v922, 4
  %v2196 = vrot.slane %v923, 4
  %v2197 = vsel %vm2019, %v2195, %v2196
  %v2198 = vrot.slane %v924, 4
  %v2199 = vsel %vm2019, %v2196, %v2198
  %v2200 = vrot.slane %v925, 4
  %v2201 = vrot.slane %v926, 4
  %v2202 = vsel %vm2019, %v2200, %v2201
  %v2203 = vrot.slane %v927, 4
  %v2204 = vsel %vm2019, %v2201, %v2203
  %v2205 = vrot.slane %v928, 4
  %v2206 = vrot.slane %v929, 4
  %v2207 = vsel %vm2019, %v2205, %v2206
  %v2208 = vrot.slane %v930, 4
  %v2209 = vsel %vm2019, %v2206, %v2208
  %v2210 = vrot.slane %v931, 4
  %v2211 = vrot.slane %v932, 4
  %v2212 = vsel %vm2019, %v2210, %v2211
  %v2213 = vrot.slane %v933, 4
  %v2214 = vsel %vm2019, %v2211, %v2213
  %v2215 = vrot.slane %v934, 4
  %v2216 = vrot.slane %v935, 4
  %v2217 = vsel %vm2019, %v2215, %v2216
  %v2218 = vrot.slane %v936, 4
  %v2219 = vsel %vm2019, %v2216, %v2218
  %v2300 = vadd.f32 %v1939, %v2022
  %v2301 = vadd.f32 %v1940, %v2024
  %v2302 = vadd.f32 %v1941, %v2027
  %v2303 = vadd.f32 %v1942, %v2029
  %v2304 = vadd.f32 %v1943, %v2032
  %v2305 = vadd.f32 %v1944, %v2034
  %v2306 = vadd.f32 %v1945, %v2037
  %v2307 = vadd.f32 %v1946, %v2039
  %v2308 = vadd.f32 %v1947, %v2042
  %v2309 = vadd.f32 %v1948, %v2044
  %v2310 = vadd.f32 %v1949, %v2047
  %v2311 = vadd.f32 %v1950, %v2049
  %v2312 = vadd.f32 %v1951, %v2052
  %v2313 = vadd.f32 %v1952, %v2054
  %v2314 = vadd.f32 %v1953, %v2057
  %v2315 = vadd.f32 %v1954, %v2059
  %v2316 = vadd.f32 %v1955, %v2062
  %v2317 = vadd.f32 %v1956, %v2064
  %v2318 = vadd.f32 %v1957, %v2067
  %v2319 = vadd.f32 %v1958, %v2069
  %v2320 = vadd.f32 %v1959, %v2072
  %v2321 = vadd.f32 %v1960, %v2074
  %v2322 = vadd.f32 %v1961, %v2077
  %v2323 = vadd.f32 %v1962, %v2079
  %v2324 = vadd.f32 %v1963, %v2082
  %v2325 = vadd.f32 %v1964, %v2084
  %v2326 = vadd.f32 %v1965, %v2087
  %v2327 = vadd.f32 %v1966, %v2089
  %v2328 = vadd.f32 %v1967, %v2092
  %v2329 = vadd.f32 %v1968, %v2094
  %v2330 = vadd.f32 %v1969, %v2097
  %v2331 = vadd.f32 %v1970, %v2099
  %v2332 = vadd.f32 %v1971, %v2102
  %v2333 = vadd.f32 %v1972, %v2104
  %v2334 = vadd.f32 %v1973, %v2107
  %v2335 = vadd.f32 %v1974, %v2109
  %v2336 = vadd.f32 %v1975, %v2112
  %v2337 = vadd.f32 %v1976, %v2114
  %v2338 = vadd.f32 %v1977, %v2117
  %v2339 = vadd.f32 %v1978, %v2119
  %v2340 = vadd.f32 %v1979, %v2122
  %v2341 = vadd.f32 %v1980, %v2124
  %v2342 = vadd.f32 %v1981, %v2127
  %v2343 = vadd.f32 %v1982, %v2129
  %v2344 = vadd.f32 %v1983, %v2132
  %v2345 = vadd.f32 %v1984, %v2134
  %v2346 = vadd.f32 %v1985, %v2137
  %v2347 = vadd.f32 %v1986, %v2139
  %v2348 = vadd.f32 %v1987, %v2142
  %v2349 = vadd.f32 %v1988, %v2144
  %v2350 = vadd.f32 %v1989, %v2147
  %v2351 = vadd.f32 %v1990, %v2149
  %v2352 = vadd.f32 %v1991, %v2152
  %v2353 = vadd.f32 %v1992, %v2154
  %v2354 = vadd.f32 %v1993, %v2157
  %v2355 = vadd.f32 %v1994, %v2159
  %v2356 = vadd.f32 %v1995, %v2162
  %v2357 = vadd.f32 %v1996, %v2164
  %v2358 = vadd.f32 %v1997, %v2167
  %v2359 = vadd.f32 %v1998, %v2169
  %v2360 = vadd.f32 %v1999, %v2172
  %v2361 = vadd.f32 %v2000, %v2174
  %v2362 = vadd.f32 %v2001, %v2177
  %v2363 = vadd.f32 %v2002, %v2179
  %v2364 = vadd.f32 %v2003, %v2182
  %v2365 = vadd.f32 %v2004, %v2184
  %v2366 = vadd.f32 %v2005, %v2187
  %v2367 = vadd.f32 %v2006, %v2189
  %v2368 = vadd.f32 %v2007, %v2192
  %v2369 = vadd.f32 %v2008, %v2194
  %v2370 = vadd.f32 %v2009, %v2197
  %v2371 = vadd.f32 %v2010, %v2199
  %v2372 = vadd.f32 %v2011, %v2202
  %v2373 = vadd.f32 %v2012, %v2204
  %v2374 = vadd.f32 %v2013, %v2207
  %v2375 = vadd.f32 %v2014, %v2209
  %v2376 = vadd.f32 %v2015, %v2212
  %v2377 = vadd.f32 %v2016, %v2214
  %v2378 = vadd.f32 %v2017, %v2217
  %v2379 = vadd.f32 %v2018, %v2219
  %vm2380 = vcmask 1042432
  %v2381 = vrot.slane %v216, 5
  %v2382 = vrot.slane %v217, 5
  %v2383 = vsel %vm2380, %v2381, %v2382
  %v2384 = vrot.slane %v218, 5
  %v2385 = vsel %vm2380, %v2382, %v2384
  %v2386 = vrot.slane %v219, 5
  %v2387 = vrot.slane %v220, 5
  %v2388 = vsel %vm2380, %v2386, %v2387
  %v2389 = vrot.slane %v221, 5
  %v2390 = vsel %vm2380, %v2387, %v2389
  %v2391 = vrot.slane %v222, 5
  %v2392 = vrot.slane %v223, 5
  %v2393 = vsel %vm2380, %v2391, %v2392
  %v2394 = vrot.slane %v224, 5
  %v2395 = vsel %vm2380, %v2392, %v2394
  %v2396 = vrot.slane %v225, 5
  %v2397 = vrot.slane %v226, 5
  %v2398 = vsel %vm2380, %v2396, %v2397
  %v2399 = vrot.slane %v227, 5
  %v2400 = vsel %vm2380, %v2397, %v2399
  %v2401 = vrot.slane %v228, 5
  %v2402 = vrot.slane %v229, 5
  %v2403 = vsel %vm2380, %v2401, %v2402
  %v2404 = vrot.slane %v230, 5
  %v2405 = vsel %vm2380, %v2402, %v2404
  %v2406 = vrot.slane %v231, 5
  %v2407 = vrot.slane %v232, 5
  %v2408 = vsel %vm2380, %v2406, %v2407
  %v2409 = vrot.slane %v233, 5
  %v2410 = vsel %vm2380, %v2407, %v2409
  %v2411 = vrot.slane %v234, 5
  %v2412 = vrot.slane %v235, 5
  %v2413 = vsel %vm2380, %v2411, %v2412
  %v2414 = vrot.slane %v236, 5
  %v2415 = vsel %vm2380, %v2412, %v2414
  %v2416 = vrot.slane %v237, 5
  %v2417 = vrot.slane %v238, 5
  %v2418 = vsel %vm2380, %v2416, %v2417
  %v2419 = vrot.slane %v239, 5
  %v2420 = vsel %vm2380, %v2417, %v2419
  %v2421 = vrot.slane %v240, 5
  %v2422 = vrot.slane %v241, 5
  %v2423 = vsel %vm2380, %v2421, %v2422
  %v2424 = vrot.slane %v242, 5
  %v2425 = vsel %vm2380, %v2422, %v2424
  %v2426 = vrot.slane %v243, 5
  %v2427 = vrot.slane %v244, 5
  %v2428 = vsel %vm2380, %v2426, %v2427
  %v2429 = vrot.slane %v245, 5
  %v2430 = vsel %vm2380, %v2427, %v2429
  %v2431 = vrot.slane %v246, 5
  %v2432 = vrot.slane %v247, 5
  %v2433 = vsel %vm2380, %v2431, %v2432
  %v2434 = vrot.slane %v248, 5
  %v2435 = vsel %vm2380, %v2432, %v2434
  %v2436 = vrot.slane %v249, 5
  %v2437 = vrot.slane %v250, 5
  %v2438 = vsel %vm2380, %v2436, %v2437
  %v2439 = vrot.slane %v251, 5
  %v2440 = vsel %vm2380, %v2437, %v2439
  %v2441 = vrot.slane %v252, 5
  %v2442 = vrot.slane %v253, 5
  %v2443 = vsel %vm2380, %v2441, %v2442
  %v2444 = vrot.slane %v254, 5
  %v2445 = vsel %vm2380, %v2442, %v2444
  %v2446 = vrot.slane %v255, 5
  %v2447 = vrot.slane %v256, 5
  %v2448 = vsel %vm2380, %v2446, %v2447
  %v2449 = vrot.slane %v257, 5
  %v2450 = vsel %vm2380, %v2447, %v2449
  %v2451 = vrot.slane %v258, 5
  %v2452 = vrot.slane %v259, 5
  %v2453 = vsel %vm2380, %v2451, %v2452
  %v2454 = vrot.slane %v260, 5
  %v2455 = vsel %vm2380, %v2452, %v2454
  %v2456 = vrot.slane %v261, 5
  %v2457 = vrot.slane %v262, 5
  %v2458 = vsel %vm2380, %v2456, %v2457
  %v2459 = vrot.slane %v263, 5
  %v2460 = vsel %vm2380, %v2457, %v2459
  %v2461 = vrot.slane %v264, 5
  %v2462 = vrot.slane %v265, 5
  %v2463 = vsel %vm2380, %v2461, %v2462
  %v2464 = vrot.slane %v266, 5
  %v2465 = vsel %vm2380, %v2462, %v2464
  %v2466 = vrot.slane %v267, 5
  %v2467 = vrot.slane %v268, 5
  %v2468 = vsel %vm2380, %v2466, %v2467
  %v2469 = vrot.slane %v269, 5
  %v2470 = vsel %vm2380, %v2467, %v2469
  %v2471 = vrot.slane %v270, 5
  %v2472 = vrot.slane %v271, 5
  %v2473 = vsel %vm2380, %v2471, %v2472
  %v2474 = vrot.slane %v272, 5
  %v2475 = vsel %vm2380, %v2472, %v2474
  %v2476 = vrot.slane %v273, 5
  %v2477 = vrot.slane %v274, 5
  %v2478 = vsel %vm2380, %v2476, %v2477
  %v2479 = vrot.slane %v275, 5
  %v2480 = vsel %vm2380, %v2477, %v2479
  %v2481 = vrot.slane %v276, 5
  %v2482 = vrot.slane %v277, 5
  %v2483 = vsel %vm2380, %v2481, %v2482
  %v2484 = vrot.slane %v278, 5
  %v2485 = vsel %vm2380, %v2482, %v2484
  %v2486 = vrot.slane %v279, 5
  %v2487 = vrot.slane %v280, 5
  %v2488 = vsel %vm2380, %v2486, %v2487
  %v2489 = vrot.slane %v281, 5
  %v2490 = vsel %vm2380, %v2487, %v2489
  %v2491 = vrot.slane %v282, 5
  %v2492 = vrot.slane %v283, 5
  %v2493 = vsel %vm2380, %v2491, %v2492
  %v2494 = vrot.slane %v284, 5
  %v2495 = vsel %vm2380, %v2492, %v2494
  %v2496 = vrot.slane %v285, 5
  %v2497 = vrot.slane %v286, 5
  %v2498 = vsel %vm2380, %v2496, %v2497
  %v2499 = vrot.slane %v287, 5
  %v2500 = vsel %vm2380, %v2497, %v2499
  %v2501 = vrot.slane %v288, 5
  %v2502 = vrot.slane %v289, 5
  %v2503 = vsel %vm2380, %v2501, %v2502
  %v2504 = vrot.slane %v290, 5
  %v2505 = vsel %vm2380, %v2502, %v2504
  %v2506 = vrot.slane %v291, 5
  %v2507 = vrot.slane %v292, 5
  %v2508 = vsel %vm2380, %v2506, %v2507
  %v2509 = vrot.slane %v293, 5
  %v2510 = vsel %vm2380, %v2507, %v2509
  %v2511 = vrot.slane %v294, 5
  %v2512 = vrot.slane %v295, 5
  %v2513 = vsel %vm2380, %v2511, %v2512
  %v2514 = vrot.slane %v296, 5
  %v2515 = vsel %vm2380, %v2512, %v2514
  %v2516 = vrot.slane %v297, 5
  %v2517 = vrot.slane %v298, 5
  %v2518 = vsel %vm2380, %v2516, %v2517
  %v2519 = vrot.slane %v299, 5
  %v2520 = vsel %vm2380, %v2517, %v2519
  %v2521 = vrot.slane %v300, 5
  %v2522 = vrot.slane %v301, 5
  %v2523 = vsel %vm2380, %v2521, %v2522
  %v2524 = vrot.slane %v302, 5
  %v2525 = vsel %vm2380, %v2522, %v2524
  %v2526 = vrot.slane %v303, 5
  %v2527 = vrot.slane %v304, 5
  %v2528 = vsel %vm2380, %v2526, %v2527
  %v2529 = vrot.slane %v305, 5
  %v2530 = vsel %vm2380, %v2527, %v2529
  %v2531 = vrot.slane %v306, 5
  %v2532 = vrot.slane %v307, 5
  %v2533 = vsel %vm2380, %v2531, %v2532
  %v2534 = vrot.slane %v308, 5
  %v2535 = vsel %vm2380, %v2532, %v2534
  %v2536 = vrot.slane %v309, 5
  %v2537 = vrot.slane %v310, 5
  %v2538 = vsel %vm2380, %v2536, %v2537
  %v2539 = vrot.slane %v311, 5
  %v2540 = vsel %vm2380, %v2537, %v2539
  %v2541 = vrot.slane %v312, 5
  %v2542 = vrot.slane %v313, 5
  %v2543 = vsel %vm2380, %v2541, %v2542
  %v2544 = vrot.slane %v314, 5
  %v2545 = vsel %vm2380, %v2542, %v2544
  %v2546 = vrot.slane %v315, 5
  %v2547 = vrot.slane %v316, 5
  %v2548 = vsel %vm2380, %v2546, %v2547
  %v2549 = vrot.slane %v317, 5
  %v2550 = vsel %vm2380, %v2547, %v2549
  %v2551 = vrot.slane %v318, 5
  %v2552 = vrot.slane %v319, 5
  %v2553 = vsel %vm2380, %v2551, %v2552
  %v2554 = vrot.slane %v320, 5
  %v2555 = vsel %vm2380, %v2552, %v2554
  %v2556 = vrot.slane %v321, 5
  %v2557 = vrot.slane %v322, 5
  %v2558 = vsel %vm2380, %v2556, %v2557
  %v2559 = vrot.slane %v323, 5
  %v2560 = vsel %vm2380, %v2557, %v2559
  %v2561 = vrot.slane %v324, 5
  %v2562 = vrot.slane %v325, 5
  %v2563 = vsel %vm2380, %v2561, %v2562
  %v2564 = vrot.slane %v326, 5
  %v2565 = vsel %vm2380, %v2562, %v2564
  %v2566 = vrot.slane %v327, 5
  %v2567 = vrot.slane %v328, 5
  %v2568 = vsel %vm2380, %v2566, %v2567
  %v2569 = vrot.slane %v329, 5
  %v2570 = vsel %vm2380, %v2567, %v2569
  %v2571 = vrot.slane %v330, 5
  %v2572 = vrot.slane %v331, 5
  %v2573 = vsel %vm2380, %v2571, %v2572
  %v2574 = vrot.slane %v332, 5
  %v2575 = vsel %vm2380, %v2572, %v2574
  %v2576 = vrot.slane %v333, 5
  %v2577 = vrot.slane %v334, 5
  %v2578 = vsel %vm2380, %v2576, %v2577
  %v2579 = vrot.slane %v335, 5
  %v2580 = vsel %vm2380, %v2577, %v2579
  %v2661 = vadd.f32 %v2300, %v2383
  %v2662 = vadd.f32 %v2301, %v2385
  %v2663 = vadd.f32 %v2302, %v2388
  %v2664 = vadd.f32 %v2303, %v2390
  %v2665 = vadd.f32 %v2304, %v2393
  %v2666 = vadd.f32 %v2305, %v2395
  %v2667 = vadd.f32 %v2306, %v2398
  %v2668 = vadd.f32 %v2307, %v2400
  %v2669 = vadd.f32 %v2308, %v2403
  %v2670 = vadd.f32 %v2309, %v2405
  %v2671 = vadd.f32 %v2310, %v2408
  %v2672 = vadd.f32 %v2311, %v2410
  %v2673 = vadd.f32 %v2312, %v2413
  %v2674 = vadd.f32 %v2313, %v2415
  %v2675 = vadd.f32 %v2314, %v2418
  %v2676 = vadd.f32 %v2315, %v2420
  %v2677 = vadd.f32 %v2316, %v2423
  %v2678 = vadd.f32 %v2317, %v2425
  %v2679 = vadd.f32 %v2318, %v2428
  %v2680 = vadd.f32 %v2319, %v2430
  %v2681 = vadd.f32 %v2320, %v2433
  %v2682 = vadd.f32 %v2321, %v2435
  %v2683 = vadd.f32 %v2322, %v2438
  %v2684 = vadd.f32 %v2323, %v2440
  %v2685 = vadd.f32 %v2324, %v2443
  %v2686 = vadd.f32 %v2325, %v2445
  %v2687 = vadd.f32 %v2326, %v2448
  %v2688 = vadd.f32 %v2327, %v2450
  %v2689 = vadd.f32 %v2328, %v2453
  %v2690 = vadd.f32 %v2329, %v2455
  %v2691 = vadd.f32 %v2330, %v2458
  %v2692 = vadd.f32 %v2331, %v2460
  %v2693 = vadd.f32 %v2332, %v2463
  %v2694 = vadd.f32 %v2333, %v2465
  %v2695 = vadd.f32 %v2334, %v2468
  %v2696 = vadd.f32 %v2335, %v2470
  %v2697 = vadd.f32 %v2336, %v2473
  %v2698 = vadd.f32 %v2337, %v2475
  %v2699 = vadd.f32 %v2338, %v2478
  %v2700 = vadd.f32 %v2339, %v2480
  %v2701 = vadd.f32 %v2340, %v2483
  %v2702 = vadd.f32 %v2341, %v2485
  %v2703 = vadd.f32 %v2342, %v2488
  %v2704 = vadd.f32 %v2343, %v2490
  %v2705 = vadd.f32 %v2344, %v2493
  %v2706 = vadd.f32 %v2345, %v2495
  %v2707 = vadd.f32 %v2346, %v2498
  %v2708 = vadd.f32 %v2347, %v2500
  %v2709 = vadd.f32 %v2348, %v2503
  %v2710 = vadd.f32 %v2349, %v2505
  %v2711 = vadd.f32 %v2350, %v2508
  %v2712 = vadd.f32 %v2351, %v2510
  %v2713 = vadd.f32 %v2352, %v2513
  %v2714 = vadd.f32 %v2353, %v2515
  %v2715 = vadd.f32 %v2354, %v2518
  %v2716 = vadd.f32 %v2355, %v2520
  %v2717 = vadd.f32 %v2356, %v2523
  %v2718 = vadd.f32 %v2357, %v2525
  %v2719 = vadd.f32 %v2358, %v2528
  %v2720 = vadd.f32 %v2359, %v2530
  %v2721 = vadd.f32 %v2360, %v2533
  %v2722 = vadd.f32 %v2361, %v2535
  %v2723 = vadd.f32 %v2362, %v2538
  %v2724 = vadd.f32 %v2363, %v2540
  %v2725 = vadd.f32 %v2364, %v2543
  %v2726 = vadd.f32 %v2365, %v2545
  %v2727 = vadd.f32 %v2366, %v2548
  %v2728 = vadd.f32 %v2367, %v2550
  %v2729 = vadd.f32 %v2368, %v2553
  %v2730 = vadd.f32 %v2369, %v2555
  %v2731 = vadd.f32 %v2370, %v2558
  %v2732 = vadd.f32 %v2371, %v2560
  %v2733 = vadd.f32 %v2372, %v2563
  %v2734 = vadd.f32 %v2373, %v2565
  %v2735 = vadd.f32 %v2374, %v2568
  %v2736 = vadd.f32 %v2375, %v2570
  %v2737 = vadd.f32 %v2376, %v2573
  %v2738 = vadd.f32 %v2377, %v2575
  %v2739 = vadd.f32 %v2378, %v2578
  %v2740 = vadd.f32 %v2379, %v2580
  %v2741 = vmul.f32 %v16, 0.036632847
  %v2742 = vmul.f32 %v19, 0.036632847
  %v2743 = vmul.f32 %v22, 0.036632847
  %v2744 = vmul.f32 %v25, 0.036632847
  %v2745 = vmul.f32 %v28, 0.036632847
  %v2746 = vmul.f32 %v31, 0.036632847
  %v2747 = vmul.f32 %v34, 0.036632847
  %v2748 = vmul.f32 %v37, 0.036632847
  %v2749 = vmul.f32 %v40, 0.036632847
  %v2750 = vmul.f32 %v43, 0.036632847
  %v2751 = vmul.f32 %v46, 0.036632847
  %v2752 = vmul.f32 %v49, 0.036632847
  %v2753 = vmul.f32 %v52, 0.036632847
  %v2754 = vmul.f32 %v55, 0.036632847
  %v2755 = vmul.f32 %v58, 0.036632847
  %v2756 = vmul.f32 %v61, 0.036632847
  %v2757 = vmul.f32 %v66, 0.036632847
  %v2758 = vmul.f32 %v69, 0.036632847
  %v2759 = vmul.f32 %v72, 0.036632847
  %v2760 = vmul.f32 %v75, 0.036632847
  %v2761 = vmul.f32 %v78, 0.036632847
  %v2762 = vmul.f32 %v81, 0.036632847
  %v2763 = vmul.f32 %v84, 0.036632847
  %v2764 = vmul.f32 %v87, 0.036632847
  %v2765 = vmul.f32 %v90, 0.036632847
  %v2766 = vmul.f32 %v93, 0.036632847
  %v2767 = vmul.f32 %v96, 0.036632847
  %v2768 = vmul.f32 %v99, 0.036632847
  %v2769 = vmul.f32 %v102, 0.036632847
  %v2770 = vmul.f32 %v105, 0.036632847
  %v2771 = vmul.f32 %v108, 0.036632847
  %v2772 = vmul.f32 %v111, 0.036632847
  %v2773 = vmul.f32 %v114, 0.036632847
  %v2774 = vmul.f32 %v117, 0.036632847
  %v2775 = vmul.f32 %v120, 0.036632847
  %v2776 = vmul.f32 %v123, 0.036632847
  %v2777 = vmul.f32 %v126, 0.036632847
  %v2778 = vmul.f32 %v129, 0.036632847
  %v2779 = vmul.f32 %v132, 0.036632847
  %v2780 = vmul.f32 %v135, 0.036632847
  %vm2901 = vcmask 1041408
  %v2902 = vrot.slane %v136, 6
  %v2903 = vrot.slane %v137, 6
  %v2904 = vsel %vm2901, %v2902, %v2903
  %v2905 = vrot.slane %v2741, 6
  %v2906 = vsel %vm2901, %v2903, %v2905
  %v2907 = vrot.slane %v138, 6
  %v2908 = vrot.slane %v139, 6
  %v2909 = vsel %vm2901, %v2907, %v2908
  %v2910 = vrot.slane %v2742, 6
  %v2911 = vsel %vm2901, %v2908, %v2910
  %v2912 = vrot.slane %v140, 6
  %v2913 = vrot.slane %v141, 6
  %v2914 = vsel %vm2901, %v2912, %v2913
  %v2915 = vrot.slane %v2743, 6
  %v2916 = vsel %vm2901, %v2913, %v2915
  %v2917 = vrot.slane %v142, 6
  %v2918 = vrot.slane %v143, 6
  %v2919 = vsel %vm2901, %v2917, %v2918
  %v2920 = vrot.slane %v2744, 6
  %v2921 = vsel %vm2901, %v2918, %v2920
  %v2922 = vrot.slane %v144, 6
  %v2923 = vrot.slane %v145, 6
  %v2924 = vsel %vm2901, %v2922, %v2923
  %v2925 = vrot.slane %v2745, 6
  %v2926 = vsel %vm2901, %v2923, %v2925
  %v2927 = vrot.slane %v146, 6
  %v2928 = vrot.slane %v147, 6
  %v2929 = vsel %vm2901, %v2927, %v2928
  %v2930 = vrot.slane %v2746, 6
  %v2931 = vsel %vm2901, %v2928, %v2930
  %v2932 = vrot.slane %v148, 6
  %v2933 = vrot.slane %v149, 6
  %v2934 = vsel %vm2901, %v2932, %v2933
  %v2935 = vrot.slane %v2747, 6
  %v2936 = vsel %vm2901, %v2933, %v2935
  %v2937 = vrot.slane %v150, 6
  %v2938 = vrot.slane %v151, 6
  %v2939 = vsel %vm2901, %v2937, %v2938
  %v2940 = vrot.slane %v2748, 6
  %v2941 = vsel %vm2901, %v2938, %v2940
  %v2942 = vrot.slane %v152, 6
  %v2943 = vrot.slane %v153, 6
  %v2944 = vsel %vm2901, %v2942, %v2943
  %v2945 = vrot.slane %v2749, 6
  %v2946 = vsel %vm2901, %v2943, %v2945
  %v2947 = vrot.slane %v154, 6
  %v2948 = vrot.slane %v155, 6
  %v2949 = vsel %vm2901, %v2947, %v2948
  %v2950 = vrot.slane %v2750, 6
  %v2951 = vsel %vm2901, %v2948, %v2950
  %v2952 = vrot.slane %v156, 6
  %v2953 = vrot.slane %v157, 6
  %v2954 = vsel %vm2901, %v2952, %v2953
  %v2955 = vrot.slane %v2751, 6
  %v2956 = vsel %vm2901, %v2953, %v2955
  %v2957 = vrot.slane %v158, 6
  %v2958 = vrot.slane %v159, 6
  %v2959 = vsel %vm2901, %v2957, %v2958
  %v2960 = vrot.slane %v2752, 6
  %v2961 = vsel %vm2901, %v2958, %v2960
  %v2962 = vrot.slane %v160, 6
  %v2963 = vrot.slane %v161, 6
  %v2964 = vsel %vm2901, %v2962, %v2963
  %v2965 = vrot.slane %v2753, 6
  %v2966 = vsel %vm2901, %v2963, %v2965
  %v2967 = vrot.slane %v162, 6
  %v2968 = vrot.slane %v163, 6
  %v2969 = vsel %vm2901, %v2967, %v2968
  %v2970 = vrot.slane %v2754, 6
  %v2971 = vsel %vm2901, %v2968, %v2970
  %v2972 = vrot.slane %v164, 6
  %v2973 = vrot.slane %v165, 6
  %v2974 = vsel %vm2901, %v2972, %v2973
  %v2975 = vrot.slane %v2755, 6
  %v2976 = vsel %vm2901, %v2973, %v2975
  %v2977 = vrot.slane %v166, 6
  %v2978 = vrot.slane %v167, 6
  %v2979 = vsel %vm2901, %v2977, %v2978
  %v2980 = vrot.slane %v2756, 6
  %v2981 = vsel %vm2901, %v2978, %v2980
  %v2982 = vrot.slane %v168, 6
  %v2983 = vrot.slane %v169, 6
  %v2984 = vsel %vm2901, %v2982, %v2983
  %v2985 = vrot.slane %v2757, 6
  %v2986 = vsel %vm2901, %v2983, %v2985
  %v2987 = vrot.slane %v170, 6
  %v2988 = vrot.slane %v171, 6
  %v2989 = vsel %vm2901, %v2987, %v2988
  %v2990 = vrot.slane %v2758, 6
  %v2991 = vsel %vm2901, %v2988, %v2990
  %v2992 = vrot.slane %v172, 6
  %v2993 = vrot.slane %v173, 6
  %v2994 = vsel %vm2901, %v2992, %v2993
  %v2995 = vrot.slane %v2759, 6
  %v2996 = vsel %vm2901, %v2993, %v2995
  %v2997 = vrot.slane %v174, 6
  %v2998 = vrot.slane %v175, 6
  %v2999 = vsel %vm2901, %v2997, %v2998
  %v3000 = vrot.slane %v2760, 6
  %v3001 = vsel %vm2901, %v2998, %v3000
  %v3002 = vrot.slane %v176, 6
  %v3003 = vrot.slane %v177, 6
  %v3004 = vsel %vm2901, %v3002, %v3003
  %v3005 = vrot.slane %v2761, 6
  %v3006 = vsel %vm2901, %v3003, %v3005
  %v3007 = vrot.slane %v178, 6
  %v3008 = vrot.slane %v179, 6
  %v3009 = vsel %vm2901, %v3007, %v3008
  %v3010 = vrot.slane %v2762, 6
  %v3011 = vsel %vm2901, %v3008, %v3010
  %v3012 = vrot.slane %v180, 6
  %v3013 = vrot.slane %v181, 6
  %v3014 = vsel %vm2901, %v3012, %v3013
  %v3015 = vrot.slane %v2763, 6
  %v3016 = vsel %vm2901, %v3013, %v3015
  %v3017 = vrot.slane %v182, 6
  %v3018 = vrot.slane %v183, 6
  %v3019 = vsel %vm2901, %v3017, %v3018
  %v3020 = vrot.slane %v2764, 6
  %v3021 = vsel %vm2901, %v3018, %v3020
  %v3022 = vrot.slane %v184, 6
  %v3023 = vrot.slane %v185, 6
  %v3024 = vsel %vm2901, %v3022, %v3023
  %v3025 = vrot.slane %v2765, 6
  %v3026 = vsel %vm2901, %v3023, %v3025
  %v3027 = vrot.slane %v186, 6
  %v3028 = vrot.slane %v187, 6
  %v3029 = vsel %vm2901, %v3027, %v3028
  %v3030 = vrot.slane %v2766, 6
  %v3031 = vsel %vm2901, %v3028, %v3030
  %v3032 = vrot.slane %v188, 6
  %v3033 = vrot.slane %v189, 6
  %v3034 = vsel %vm2901, %v3032, %v3033
  %v3035 = vrot.slane %v2767, 6
  %v3036 = vsel %vm2901, %v3033, %v3035
  %v3037 = vrot.slane %v190, 6
  %v3038 = vrot.slane %v191, 6
  %v3039 = vsel %vm2901, %v3037, %v3038
  %v3040 = vrot.slane %v2768, 6
  %v3041 = vsel %vm2901, %v3038, %v3040
  %v3042 = vrot.slane %v192, 6
  %v3043 = vrot.slane %v193, 6
  %v3044 = vsel %vm2901, %v3042, %v3043
  %v3045 = vrot.slane %v2769, 6
  %v3046 = vsel %vm2901, %v3043, %v3045
  %v3047 = vrot.slane %v194, 6
  %v3048 = vrot.slane %v195, 6
  %v3049 = vsel %vm2901, %v3047, %v3048
  %v3050 = vrot.slane %v2770, 6
  %v3051 = vsel %vm2901, %v3048, %v3050
  %v3052 = vrot.slane %v196, 6
  %v3053 = vrot.slane %v197, 6
  %v3054 = vsel %vm2901, %v3052, %v3053
  %v3055 = vrot.slane %v2771, 6
  %v3056 = vsel %vm2901, %v3053, %v3055
  %v3057 = vrot.slane %v198, 6
  %v3058 = vrot.slane %v199, 6
  %v3059 = vsel %vm2901, %v3057, %v3058
  %v3060 = vrot.slane %v2772, 6
  %v3061 = vsel %vm2901, %v3058, %v3060
  %v3062 = vrot.slane %v200, 6
  %v3063 = vrot.slane %v201, 6
  %v3064 = vsel %vm2901, %v3062, %v3063
  %v3065 = vrot.slane %v2773, 6
  %v3066 = vsel %vm2901, %v3063, %v3065
  %v3067 = vrot.slane %v202, 6
  %v3068 = vrot.slane %v203, 6
  %v3069 = vsel %vm2901, %v3067, %v3068
  %v3070 = vrot.slane %v2774, 6
  %v3071 = vsel %vm2901, %v3068, %v3070
  %v3072 = vrot.slane %v204, 6
  %v3073 = vrot.slane %v205, 6
  %v3074 = vsel %vm2901, %v3072, %v3073
  %v3075 = vrot.slane %v2775, 6
  %v3076 = vsel %vm2901, %v3073, %v3075
  %v3077 = vrot.slane %v206, 6
  %v3078 = vrot.slane %v207, 6
  %v3079 = vsel %vm2901, %v3077, %v3078
  %v3080 = vrot.slane %v2776, 6
  %v3081 = vsel %vm2901, %v3078, %v3080
  %v3082 = vrot.slane %v208, 6
  %v3083 = vrot.slane %v209, 6
  %v3084 = vsel %vm2901, %v3082, %v3083
  %v3085 = vrot.slane %v2777, 6
  %v3086 = vsel %vm2901, %v3083, %v3085
  %v3087 = vrot.slane %v210, 6
  %v3088 = vrot.slane %v211, 6
  %v3089 = vsel %vm2901, %v3087, %v3088
  %v3090 = vrot.slane %v2778, 6
  %v3091 = vsel %vm2901, %v3088, %v3090
  %v3092 = vrot.slane %v212, 6
  %v3093 = vrot.slane %v213, 6
  %v3094 = vsel %vm2901, %v3092, %v3093
  %v3095 = vrot.slane %v2779, 6
  %v3096 = vsel %vm2901, %v3093, %v3095
  %v3097 = vrot.slane %v214, 6
  %v3098 = vrot.slane %v215, 6
  %v3099 = vsel %vm2901, %v3097, %v3098
  %v3100 = vrot.slane %v2780, 6
  %v3101 = vsel %vm2901, %v3098, %v3100
  %v3182 = vadd.f32 %v2661, %v2904
  %v3183 = vadd.f32 %v2662, %v2906
  %v3184 = vadd.f32 %v2663, %v2909
  %v3185 = vadd.f32 %v2664, %v2911
  %v3186 = vadd.f32 %v2665, %v2914
  %v3187 = vadd.f32 %v2666, %v2916
  %v3188 = vadd.f32 %v2667, %v2919
  %v3189 = vadd.f32 %v2668, %v2921
  %v3190 = vadd.f32 %v2669, %v2924
  %v3191 = vadd.f32 %v2670, %v2926
  %v3192 = vadd.f32 %v2671, %v2929
  %v3193 = vadd.f32 %v2672, %v2931
  %v3194 = vadd.f32 %v2673, %v2934
  %v3195 = vadd.f32 %v2674, %v2936
  %v3196 = vadd.f32 %v2675, %v2939
  %v3197 = vadd.f32 %v2676, %v2941
  %v3198 = vadd.f32 %v2677, %v2944
  %v3199 = vadd.f32 %v2678, %v2946
  %v3200 = vadd.f32 %v2679, %v2949
  %v3201 = vadd.f32 %v2680, %v2951
  %v3202 = vadd.f32 %v2681, %v2954
  %v3203 = vadd.f32 %v2682, %v2956
  %v3204 = vadd.f32 %v2683, %v2959
  %v3205 = vadd.f32 %v2684, %v2961
  %v3206 = vadd.f32 %v2685, %v2964
  %v3207 = vadd.f32 %v2686, %v2966
  %v3208 = vadd.f32 %v2687, %v2969
  %v3209 = vadd.f32 %v2688, %v2971
  %v3210 = vadd.f32 %v2689, %v2974
  %v3211 = vadd.f32 %v2690, %v2976
  %v3212 = vadd.f32 %v2691, %v2979
  %v3213 = vadd.f32 %v2692, %v2981
  %v3214 = vadd.f32 %v2693, %v2984
  %v3215 = vadd.f32 %v2694, %v2986
  %v3216 = vadd.f32 %v2695, %v2989
  %v3217 = vadd.f32 %v2696, %v2991
  %v3218 = vadd.f32 %v2697, %v2994
  %v3219 = vadd.f32 %v2698, %v2996
  %v3220 = vadd.f32 %v2699, %v2999
  %v3221 = vadd.f32 %v2700, %v3001
  %v3222 = vadd.f32 %v2701, %v3004
  %v3223 = vadd.f32 %v2702, %v3006
  %v3224 = vadd.f32 %v2703, %v3009
  %v3225 = vadd.f32 %v2704, %v3011
  %v3226 = vadd.f32 %v2705, %v3014
  %v3227 = vadd.f32 %v2706, %v3016
  %v3228 = vadd.f32 %v2707, %v3019
  %v3229 = vadd.f32 %v2708, %v3021
  %v3230 = vadd.f32 %v2709, %v3024
  %v3231 = vadd.f32 %v2710, %v3026
  %v3232 = vadd.f32 %v2711, %v3029
  %v3233 = vadd.f32 %v2712, %v3031
  %v3234 = vadd.f32 %v2713, %v3034
  %v3235 = vadd.f32 %v2714, %v3036
  %v3236 = vadd.f32 %v2715, %v3039
  %v3237 = vadd.f32 %v2716, %v3041
  %v3238 = vadd.f32 %v2717, %v3044
  %v3239 = vadd.f32 %v2718, %v3046
  %v3240 = vadd.f32 %v2719, %v3049
  %v3241 = vadd.f32 %v2720, %v3051
  %v3242 = vadd.f32 %v2721, %v3054
  %v3243 = vadd.f32 %v2722, %v3056
  %v3244 = vadd.f32 %v2723, %v3059
  %v3245 = vadd.f32 %v2724, %v3061
  %v3246 = vadd.f32 %v2725, %v3064
  %v3247 = vadd.f32 %v2726, %v3066
  %v3248 = vadd.f32 %v2727, %v3069
  %v3249 = vadd.f32 %v2728, %v3071
  %v3250 = vadd.f32 %v2729, %v3074
  %v3251 = vadd.f32 %v2730, %v3076
  %v3252 = vadd.f32 %v2731, %v3079
  %v3253 = vadd.f32 %v2732, %v3081
  %v3254 = vadd.f32 %v2733, %v3084
  %v3255 = vadd.f32 %v2734, %v3086
  %v3256 = vadd.f32 %v2735, %v3089
  %v3257 = vadd.f32 %v2736, %v3091
  %v3258 = vadd.f32 %v2737, %v3094
  %v3259 = vadd.f32 %v2738, %v3096
  %v3260 = vadd.f32 %v2739, %v3099
  %v3261 = vadd.f32 %v2740, %v3101
  %vm3262 = vcmask 130048
  %v3264 = vsel %vm3262, %v3182, 0
  %v3267 = vsel %vm3262, %v3183, 0
  %v3270 = vsel %vm3262, %v3184, 0
  %v3273 = vsel %vm3262, %v3185, 0
  %v3276 = vsel %vm3262, %v3186, 0
  %v3279 = vsel %vm3262, %v3187, 0
  %v3282 = vsel %vm3262, %v3188, 0
  %v3285 = vsel %vm3262, %v3189, 0
  %v3288 = vsel %vm3262, %v3190, 0
  %v3291 = vsel %vm3262, %v3191, 0
  %v3294 = vsel %vm3262, %v3192, 0
  %v3297 = vsel %vm3262, %v3193, 0
  %v3300 = vsel %vm3262, %v3194, 0
  %v3303 = vsel %vm3262, %v3195, 0
  %v3306 = vsel %vm3262, %v3196, 0
  %v3309 = vsel %vm3262, %v3197, 0
  %v3312 = vsel %vm3262, %v3198, 0
  %v3315 = vsel %vm3262, %v3199, 0
  %v3318 = vsel %vm3262, %v3200, 0
  %v3321 = vsel %vm3262, %v3201, 0
  %v3324 = vsel %vm3262, %v3202, 0
  %v3327 = vsel %vm3262, %v3203, 0
  %v3330 = vsel %vm3262, %v3204, 0
  %v3333 = vsel %vm3262, %v3205, 0
  %v3336 = vsel %vm3262, %v3206, 0
  %v3339 = vsel %vm3262, %v3207, 0
  %v3342 = vsel %vm3262, %v3208, 0
  %v3345 = vsel %vm3262, %v3209, 0
  %v3348 = vsel %vm3262, %v3210, 0
  %v3351 = vsel %vm3262, %v3211, 0
  %v3354 = vsel %vm3262, %v3212, 0
  %v3357 = vsel %vm3262, %v3213, 0
  %v3360 = vsel %vm3262, %v3214, 0
  %v3363 = vsel %vm3262, %v3215, 0
  %v3366 = vsel %vm3262, %v3216, 0
  %v3369 = vsel %vm3262, %v3217, 0
  %v3372 = vsel %vm3262, %v3218, 0
  %v3375 = vsel %vm3262, %v3219, 0
  %v3378 = vsel %vm3262, %v3220, 0
  %v3381 = vsel %vm3262, %v3221, 0
  %v3384 = vsel %vm3262, %v3222, 0
  %v3387 = vsel %vm3262, %v3223, 0
  %v3390 = vsel %vm3262, %v3224, 0
  %v3393 = vsel %vm3262, %v3225, 0
  %v3396 = vsel %vm3262, %v3226, 0
  %v3399 = vsel %vm3262, %v3227, 0
  %v3402 = vsel %vm3262, %v3228, 0
  %v3405 = vsel %vm3262, %v3229, 0
  %v3408 = vsel %vm3262, %v3230, 0
  %v3411 = vsel %vm3262, %v3231, 0
  %v3414 = vsel %vm3262, %v3232, 0
  %v3417 = vsel %vm3262, %v3233, 0
  %v3420 = vsel %vm3262, %v3234, 0
  %v3423 = vsel %vm3262, %v3235, 0
  %v3426 = vsel %vm3262, %v3236, 0
  %v3429 = vsel %vm3262, %v3237, 0
  %v3432 = vsel %vm3262, %v3238, 0
  %v3435 = vsel %vm3262, %v3239, 0
  %v3438 = vsel %vm3262, %v3240, 0
  %v3441 = vsel %vm3262, %v3241, 0
  %v3444 = vsel %vm3262, %v3242, 0
  %v3447 = vsel %vm3262, %v3243, 0
  %v3450 = vsel %vm3262, %v3244, 0
  %v3453 = vsel %vm3262, %v3245, 0
  %v3456 = vsel %vm3262, %v3246, 0
  %v3459 = vsel %vm3262, %v3247, 0
  %v3462 = vsel %vm3262, %v3248, 0
  %v3465 = vsel %vm3262, %v3249, 0
  %v3468 = vsel %vm3262, %v3250, 0
  %v3471 = vsel %vm3262, %v3251, 0
  %v3474 = vsel %vm3262, %v3252, 0
  %v3477 = vsel %vm3262, %v3253, 0
  %v3480 = vsel %vm3262, %v3254, 0
  %v3483 = vsel %vm3262, %v3255, 0
  %v3486 = vsel %vm3262, %v3256, 0
  %v3489 = vsel %vm3262, %v3257, 0
  %v3492 = vsel %vm3262, %v3258, 0
  %v3495 = vsel %vm3262, %v3259, 0
  %v3498 = vsel %vm3262, %v3260, 0
  %v3501 = vsel %vm3262, %v3261, 0
  %3503 = vmatprep.subr.mxu0 0.0
  %3504 = vmatpush1.msra.mxu0 %v62
  %3505 = vmatprep.subr.mxu0 0.0
  %3506 = vmatpush1.msra.mxu0 %v63
  %3507 = vmatprep.subr.mxu0 0.0
  %3508 = vmatpush1.msra.mxu0 0.0
  %3509 = vmatprep.subr.mxu0 0.0
  %3510 = vmatpush1.msra.mxu0 0.0
  %3511 = vmatprep.subr.mxu0 0.0
  %3512 = vmatpush1.msra.mxu0 0.0
  %3513 = vmatprep.subr.mxu0 0.0
  %3514 = vmatpush1.msra.mxu0 0.0
  %3515 = vmatprep.subr.mxu0 0.0
  %3516 = vmatpush1.msra.mxu0 0.0
  %3517 = vmatprep.subr.mxu0 0.0
  %3518 = vmatpush1.msra.mxu0 0.0
  %3519 = vmatprep.subr.mxu0 0.0
  %3520 = vmatpush1.msra.mxu0 0.0
  %3521 = vmatprep.subr.mxu0 0.0
  %3522 = vmatpush1.msra.mxu0 0.0
  %3523 = vmatprep.subr.mxu0 0.0
  %3524 = vmatpush1.msra.mxu0 0.0
  %3525 = vmatprep.subr.mxu0 0.0
  %3526 = vmatpush1.msra.mxu0 0.0
  %3527 = vmatprep.subr.mxu0 0.0
  %3528 = vmatpush1.msra.mxu0 0.0
  %3529 = vmatprep.subr.mxu0 0.0
  %3530 = vmatpush1.msra.mxu0 0.0
  %3531 = vmatprep.subr.mxu0 0.0
  %3532 = vmatpush1.msra.mxu0 0.0
  %3533 = vmatprep.subr.mxu0 0.0
  %3534 = vmatpush1.msra.mxu0 0.0
  %3535 = vmatprep.subr.mxu0 0.0
  %3536 = vmatpush1.msra.mxu0 0.0
  %3537 = vmatprep.subr.mxu0 0.0
  %3538 = vmatpush1.msra.mxu0 0.0
  %3539 = vmatprep.subr.mxu0 0.0
  %3540 = vmatpush1.msra.mxu0 0.0
  %3541 = vmatprep.subr.mxu0 0.0
  %3542 = vmatpush1.msra.mxu0 0.0
  %3543 = vmatprep.subr.mxu0 0.0
  %3544 = vmatpush1.msra.mxu0 0.0
  %3545 = vmatprep.subr.mxu0 0.0
  %3546 = vmatpush1.msra.mxu0 0.0
  %3547 = vmatprep.subr.mxu0 0.0
  %3548 = vmatpush1.msra.mxu0 0.0
  %3549 = vmatprep.subr.mxu0 0.0
  %3550 = vmatpush1.msra.mxu0 0.0
  %3551 = vmatprep.subr.mxu0 0.0
  %3552 = vmatpush1.msra.mxu0 0.0
  %3553 = vmatprep.subr.mxu0 0.0
  %3554 = vmatpush1.msra.mxu0 0.0
  %3555 = vmatprep.subr.mxu0 0.0
  %3556 = vmatpush1.msra.mxu0 0.0
  %3557 = vmatprep.subr.mxu0 0.0
  %3558 = vmatpush1.msra.mxu0 0.0
  %3559 = vmatprep.subr.mxu0 0.0
  %3560 = vmatpush1.msra.mxu0 0.0
  %3561 = vmatprep.subr.mxu0 0.0
  %3562 = vmatpush1.msra.mxu0 0.0
  %3563 = vmatprep.subr.mxu0 0.0
  %3564 = vmatpush1.msra.mxu0 0.0
  %3565 = vmatprep.subr.mxu0 0.0
  %3566 = vmatpush1.msra.mxu0 0.0
  %3567 = vmatprep.mubr.f32.mxu0 0.0
  %3568 = vmatmul.mubr.f32.gmra.mrb[0].mxu0 %v3264
  %v3569 = vpop.f32.mrb[0].mxu0
  %v3570 = vadd.f32 0.0, %v3569
  %v3571 = vpop.f32.mrb[0].mxu0
  %3572 = vmatprep.mubr.f32.mxu0 0.0
  %3573 = vmatmul.mubr.f32.gmra.mrb[0].mxu0 %v3267
  %v3574 = vpop.f32.mrb[0].mxu0
  %v3575 = vadd.f32 0.0, %v3574
  %v3576 = vpop.f32.mrb[0].mxu0
  %3577 = vmatprep.mubr.f32.mxu0 0.0
  %3578 = vmatmul.mubr.f32.gmra.mrb[0].mxu0 %v3270
  %v3579 = vpop.f32.mrb[0].mxu0
  %v3580 = vadd.f32 0.0, %v3579
  %v3581 = vpop.f32.mrb[0].mxu0
  %3582 = vmatprep.mubr.f32.mxu0 0.0
  %3583 = vmatmul.mubr.f32.gmra.mrb[0].mxu0 %v3273
  %v3584 = vpop.f32.mrb[0].mxu0
  %v3585 = vadd.f32 0.0, %v3584
  %v3586 = vpop.f32.mrb[0].mxu0
  %3587 = vmatprep.mubr.f32.mxu0 0.0
  %3588 = vmatmul.mubr.f32.gmra.mrb[0].mxu0 %v3276
  %v3589 = vpop.f32.mrb[0].mxu0
  %v3590 = vadd.f32 0.0, %v3589
  %v3591 = vpop.f32.mrb[0].mxu0
  %3592 = vmatprep.mubr.f32.mxu0 0.0
  %3593 = vmatmul.mubr.f32.gmra.mrb[0].mxu0 %v3279
  %v3594 = vpop.f32.mrb[0].mxu0
  %v3595 = vadd.f32 0.0, %v3594
  %v3596 = vpop.f32.mrb[0].mxu0
  %3597 = vmatprep.mubr.f32.mxu0 0.0
  %3598 = vmatmul.mubr.f32.gmra.mrb[0].mxu0 %v3282
  %v3599 = vpop.f32.mrb[0].mxu0
  %v3600 = vadd.f32 0.0, %v3599
  %v3601 = vpop.f32.mrb[0].mxu0
  %3602 = vmatprep.mubr.f32.mxu0 0.0
  %3603 = vmatmul.mubr.f32.gmra.mrb[0].mxu0 %v3285
  %v3604 = vpop.f32.mrb[0].mxu0
  %v3605 = vadd.f32 0.0, %v3604
  %v3606 = vpop.f32.mrb[0].mxu0
  %3607 = vmatprep.mubr.f32.mxu0 0.0
  %3608 = vmatmul.mubr.f32.gmra.mrb[0].mxu0 %v3288
  %v3609 = vpop.f32.mrb[0].mxu0
  %v3610 = vadd.f32 0.0, %v3609
  %v3611 = vpop.f32.mrb[0].mxu0
  %3612 = vmatprep.mubr.f32.mxu0 0.0
  %3613 = vmatmul.mubr.f32.gmra.mrb[0].mxu0 %v3291
  %v3614 = vpop.f32.mrb[0].mxu0
  %v3615 = vadd.f32 0.0, %v3614
  %v3616 = vpop.f32.mrb[0].mxu0
  %3617 = vmatprep.mubr.f32.mxu0 0.0
  %3618 = vmatmul.mubr.f32.gmra.mrb[0].mxu0 %v3294
  %v3619 = vpop.f32.mrb[0].mxu0
  %v3620 = vadd.f32 0.0, %v3619
  %v3621 = vpop.f32.mrb[0].mxu0
  %3622 = vmatprep.mubr.f32.mxu0 0.0
  %3623 = vmatmul.mubr.f32.gmra.mrb[0].mxu0 %v3297
  %v3624 = vpop.f32.mrb[0].mxu0
  %v3625 = vadd.f32 0.0, %v3624
  %v3626 = vpop.f32.mrb[0].mxu0
  %3627 = vmatprep.mubr.f32.mxu0 0.0
  %3628 = vmatmul.mubr.f32.gmra.mrb[0].mxu0 %v3300
  %v3629 = vpop.f32.mrb[0].mxu0
  %v3630 = vadd.f32 0.0, %v3629
  %v3631 = vpop.f32.mrb[0].mxu0
  %3632 = vmatprep.mubr.f32.mxu0 0.0
  %3633 = vmatmul.mubr.f32.gmra.mrb[0].mxu0 %v3303
  %v3634 = vpop.f32.mrb[0].mxu0
  %v3635 = vadd.f32 0.0, %v3634
  %v3636 = vpop.f32.mrb[0].mxu0
  %3637 = vmatprep.mubr.f32.mxu0 0.0
  %3638 = vmatmul.mubr.f32.gmra.mrb[0].mxu0 %v3306
  %v3639 = vpop.f32.mrb[0].mxu0
  %v3640 = vadd.f32 0.0, %v3639
  %v3641 = vpop.f32.mrb[0].mxu0
  %3642 = vmatprep.mubr.f32.mxu0 0.0
  %3643 = vmatmul.mubr.f32.gmra.mrb[0].mxu0 %v3309
  %v3644 = vpop.f32.mrb[0].mxu0
  %v3645 = vadd.f32 0.0, %v3644
  %v3646 = vpop.f32.mrb[0].mxu0
  %3647 = vmatprep.mubr.f32.mxu0 0.0
  %3648 = vmatmul.mubr.f32.gmra.mrb[0].mxu0 %v3312
  %v3649 = vpop.f32.mrb[0].mxu0
  %v3650 = vadd.f32 0.0, %v3649
  %v3651 = vpop.f32.mrb[0].mxu0
  %3652 = vmatprep.mubr.f32.mxu0 0.0
  %3653 = vmatmul.mubr.f32.gmra.mrb[0].mxu0 %v3315
  %v3654 = vpop.f32.mrb[0].mxu0
  %v3655 = vadd.f32 0.0, %v3654
  %v3656 = vpop.f32.mrb[0].mxu0
  %3657 = vmatprep.mubr.f32.mxu0 0.0
  %3658 = vmatmul.mubr.f32.gmra.mrb[0].mxu0 %v3318
  %v3659 = vpop.f32.mrb[0].mxu0
  %v3660 = vadd.f32 0.0, %v3659
  %v3661 = vpop.f32.mrb[0].mxu0
  %3662 = vmatprep.mubr.f32.mxu0 0.0
  %3663 = vmatmul.mubr.f32.gmra.mrb[0].mxu0 %v3321
  %v3664 = vpop.f32.mrb[0].mxu0
  %v3665 = vadd.f32 0.0, %v3664
  %v3666 = vpop.f32.mrb[0].mxu0
  %3667 = vmatprep.mubr.f32.mxu0 0.0
  %3668 = vmatmul.mubr.f32.gmra.mrb[0].mxu0 %v3324
  %v3669 = vpop.f32.mrb[0].mxu0
  %v3670 = vadd.f32 0.0, %v3669
  %v3671 = vpop.f32.mrb[0].mxu0
  %3672 = vmatprep.mubr.f32.mxu0 0.0
  %3673 = vmatmul.mubr.f32.gmra.mrb[0].mxu0 %v3327
  %v3674 = vpop.f32.mrb[0].mxu0
  %v3675 = vadd.f32 0.0, %v3674
  %v3676 = vpop.f32.mrb[0].mxu0
  %3677 = vmatprep.mubr.f32.mxu0 0.0
  %3678 = vmatmul.mubr.f32.gmra.mrb[0].mxu0 %v3330
  %v3679 = vpop.f32.mrb[0].mxu0
  %v3680 = vadd.f32 0.0, %v3679
  %v3681 = vpop.f32.mrb[0].mxu0
  %3682 = vmatprep.mubr.f32.mxu0 0.0
  %3683 = vmatmul.mubr.f32.gmra.mrb[0].mxu0 %v3333
  %v3684 = vpop.f32.mrb[0].mxu0
  %v3685 = vadd.f32 0.0, %v3684
  %v3686 = vpop.f32.mrb[0].mxu0
  %3687 = vmatprep.mubr.f32.mxu0 0.0
  %3688 = vmatmul.mubr.f32.gmra.mrb[0].mxu0 %v3336
  %v3689 = vpop.f32.mrb[0].mxu0
  %v3690 = vadd.f32 0.0, %v3689
  %v3691 = vpop.f32.mrb[0].mxu0
  %3692 = vmatprep.mubr.f32.mxu0 0.0
  %3693 = vmatmul.mubr.f32.gmra.mrb[0].mxu0 %v3339
  %v3694 = vpop.f32.mrb[0].mxu0
  %v3695 = vadd.f32 0.0, %v3694
  %v3696 = vpop.f32.mrb[0].mxu0
  %3697 = vmatprep.mubr.f32.mxu0 0.0
  %3698 = vmatmul.mubr.f32.gmra.mrb[0].mxu0 %v3342
  %v3699 = vpop.f32.mrb[0].mxu0
  %v3700 = vadd.f32 0.0, %v3699
  %v3701 = vpop.f32.mrb[0].mxu0
  %3702 = vmatprep.mubr.f32.mxu0 0.0
  %3703 = vmatmul.mubr.f32.gmra.mrb[0].mxu0 %v3345
  %v3704 = vpop.f32.mrb[0].mxu0
  %v3705 = vadd.f32 0.0, %v3704
  %v3706 = vpop.f32.mrb[0].mxu0
  %3707 = vmatprep.mubr.f32.mxu0 0.0
  %3708 = vmatmul.mubr.f32.gmra.mrb[0].mxu0 %v3348
  %v3709 = vpop.f32.mrb[0].mxu0
  %v3710 = vadd.f32 0.0, %v3709
  %v3711 = vpop.f32.mrb[0].mxu0
  %3712 = vmatprep.mubr.f32.mxu0 0.0
  %3713 = vmatmul.mubr.f32.gmra.mrb[0].mxu0 %v3351
  %v3714 = vpop.f32.mrb[0].mxu0
  %v3715 = vadd.f32 0.0, %v3714
  %v3716 = vpop.f32.mrb[0].mxu0
  %3717 = vmatprep.mubr.f32.mxu0 0.0
  %3718 = vmatmul.mubr.f32.gmra.mrb[0].mxu0 %v3354
  %v3719 = vpop.f32.mrb[0].mxu0
  %v3720 = vadd.f32 0.0, %v3719
  %v3721 = vpop.f32.mrb[0].mxu0
  %3722 = vmatprep.mubr.f32.mxu0 0.0
  %3723 = vmatmul.mubr.f32.gmra.mrb[0].mxu0 %v3357
  %v3724 = vpop.f32.mrb[0].mxu0
  %v3725 = vadd.f32 0.0, %v3724
  %v3726 = vpop.f32.mrb[0].mxu0
  %3727 = vmatprep.mubr.f32.mxu0 0.0
  %3728 = vmatmul.mubr.f32.gmra.mrb[0].mxu0 %v3360
  %v3729 = vpop.f32.mrb[0].mxu0
  %v3730 = vadd.f32 0.0, %v3729
  %v3731 = vpop.f32.mrb[0].mxu0
  %3732 = vmatprep.mubr.f32.mxu0 0.0
  %3733 = vmatmul.mubr.f32.gmra.mrb[0].mxu0 %v3363
  %v3734 = vpop.f32.mrb[0].mxu0
  %v3735 = vadd.f32 0.0, %v3734
  %v3736 = vpop.f32.mrb[0].mxu0
  %3737 = vmatprep.mubr.f32.mxu0 0.0
  %3738 = vmatmul.mubr.f32.gmra.mrb[0].mxu0 %v3366
  %v3739 = vpop.f32.mrb[0].mxu0
  %v3740 = vadd.f32 0.0, %v3739
  %v3741 = vpop.f32.mrb[0].mxu0
  %3742 = vmatprep.mubr.f32.mxu0 0.0
  %3743 = vmatmul.mubr.f32.gmra.mrb[0].mxu0 %v3369
  %v3744 = vpop.f32.mrb[0].mxu0
  %v3745 = vadd.f32 0.0, %v3744
  %v3746 = vpop.f32.mrb[0].mxu0
  %3747 = vmatprep.mubr.f32.mxu0 0.0
  %3748 = vmatmul.mubr.f32.gmra.mrb[0].mxu0 %v3372
  %v3749 = vpop.f32.mrb[0].mxu0
  %v3750 = vadd.f32 0.0, %v3749
  %v3751 = vpop.f32.mrb[0].mxu0
  %3752 = vmatprep.mubr.f32.mxu0 0.0
  %3753 = vmatmul.mubr.f32.gmra.mrb[0].mxu0 %v3375
  %v3754 = vpop.f32.mrb[0].mxu0
  %v3755 = vadd.f32 0.0, %v3754
  %v3756 = vpop.f32.mrb[0].mxu0
  %3757 = vmatprep.mubr.f32.mxu0 0.0
  %3758 = vmatmul.mubr.f32.gmra.mrb[0].mxu0 %v3378
  %v3759 = vpop.f32.mrb[0].mxu0
  %v3760 = vadd.f32 0.0, %v3759
  %v3761 = vpop.f32.mrb[0].mxu0
  %3762 = vmatprep.mubr.f32.mxu0 0.0
  %3763 = vmatmul.mubr.f32.gmra.mrb[0].mxu0 %v3381
  %v3764 = vpop.f32.mrb[0].mxu0
  %v3765 = vadd.f32 0.0, %v3764
  %v3766 = vpop.f32.mrb[0].mxu0
  %3767 = vmatprep.mubr.f32.mxu0 0.0
  %3768 = vmatmul.mubr.f32.gmra.mrb[0].mxu0 %v3384
  %v3769 = vpop.f32.mrb[0].mxu0
  %v3770 = vadd.f32 0.0, %v3769
  %v3771 = vpop.f32.mrb[0].mxu0
  %3772 = vmatprep.mubr.f32.mxu0 0.0
  %3773 = vmatmul.mubr.f32.gmra.mrb[0].mxu0 %v3387
  %v3774 = vpop.f32.mrb[0].mxu0
  %v3775 = vadd.f32 0.0, %v3774
  %v3776 = vpop.f32.mrb[0].mxu0
  %3777 = vmatprep.mubr.f32.mxu0 0.0
  %3778 = vmatmul.mubr.f32.gmra.mrb[0].mxu0 %v3390
  %v3779 = vpop.f32.mrb[0].mxu0
  %v3780 = vadd.f32 0.0, %v3779
  %v3781 = vpop.f32.mrb[0].mxu0
  %3782 = vmatprep.mubr.f32.mxu0 0.0
  %3783 = vmatmul.mubr.f32.gmra.mrb[0].mxu0 %v3393
  %v3784 = vpop.f32.mrb[0].mxu0
  %v3785 = vadd.f32 0.0, %v3784
  %v3786 = vpop.f32.mrb[0].mxu0
  %3787 = vmatprep.mubr.f32.mxu0 0.0
  %3788 = vmatmul.mubr.f32.gmra.mrb[0].mxu0 %v3396
  %v3789 = vpop.f32.mrb[0].mxu0
  %v3790 = vadd.f32 0.0, %v3789
  %v3791 = vpop.f32.mrb[0].mxu0
  %3792 = vmatprep.mubr.f32.mxu0 0.0
  %3793 = vmatmul.mubr.f32.gmra.mrb[0].mxu0 %v3399
  %v3794 = vpop.f32.mrb[0].mxu0
  %v3795 = vadd.f32 0.0, %v3794
  %v3796 = vpop.f32.mrb[0].mxu0
  %3797 = vmatprep.mubr.f32.mxu0 0.0
  %3798 = vmatmul.mubr.f32.gmra.mrb[0].mxu0 %v3402
  %v3799 = vpop.f32.mrb[0].mxu0
  %v3800 = vadd.f32 0.0, %v3799
  %v3801 = vpop.f32.mrb[0].mxu0
  %3802 = vmatprep.mubr.f32.mxu0 0.0
  %3803 = vmatmul.mubr.f32.gmra.mrb[0].mxu0 %v3405
  %v3804 = vpop.f32.mrb[0].mxu0
  %v3805 = vadd.f32 0.0, %v3804
  %v3806 = vpop.f32.mrb[0].mxu0
  %3807 = vmatprep.mubr.f32.mxu0 0.0
  %3808 = vmatmul.mubr.f32.gmra.mrb[0].mxu0 %v3408
  %v3809 = vpop.f32.mrb[0].mxu0
  %v3810 = vadd.f32 0.0, %v3809
  %v3811 = vpop.f32.mrb[0].mxu0
  %3812 = vmatprep.mubr.f32.mxu0 0.0
  %3813 = vmatmul.mubr.f32.gmra.mrb[0].mxu0 %v3411
  %v3814 = vpop.f32.mrb[0].mxu0
  %v3815 = vadd.f32 0.0, %v3814
  %v3816 = vpop.f32.mrb[0].mxu0
  %3817 = vmatprep.mubr.f32.mxu0 0.0
  %3818 = vmatmul.mubr.f32.gmra.mrb[0].mxu0 %v3414
  %v3819 = vpop.f32.mrb[0].mxu0
  %v3820 = vadd.f32 0.0, %v3819
  %v3821 = vpop.f32.mrb[0].mxu0
  %3822 = vmatprep.mubr.f32.mxu0 0.0
  %3823 = vmatmul.mubr.f32.gmra.mrb[0].mxu0 %v3417
  %v3824 = vpop.f32.mrb[0].mxu0
  %v3825 = vadd.f32 0.0, %v3824
  %v3826 = vpop.f32.mrb[0].mxu0
  %3827 = vmatprep.mubr.f32.mxu0 0.0
  %3828 = vmatmul.mubr.f32.gmra.mrb[0].mxu0 %v3420
  %v3829 = vpop.f32.mrb[0].mxu0
  %v3830 = vadd.f32 0.0, %v3829
  %v3831 = vpop.f32.mrb[0].mxu0
  %3832 = vmatprep.mubr.f32.mxu0 0.0
  %3833 = vmatmul.mubr.f32.gmra.mrb[0].mxu0 %v3423
  %v3834 = vpop.f32.mrb[0].mxu0
  %v3835 = vadd.f32 0.0, %v3834
  %v3836 = vpop.f32.mrb[0].mxu0
  %3837 = vmatprep.mubr.f32.mxu0 0.0
  %3838 = vmatmul.mubr.f32.gmra.mrb[0].mxu0 %v3426
  %v3839 = vpop.f32.mrb[0].mxu0
  %v3840 = vadd.f32 0.0, %v3839
  %v3841 = vpop.f32.mrb[0].mxu0
  %3842 = vmatprep.mubr.f32.mxu0 0.0
  %3843 = vmatmul.mubr.f32.gmra.mrb[0].mxu0 %v3429
  %v3844 = vpop.f32.mrb[0].mxu0
  %v3845 = vadd.f32 0.0, %v3844
  %v3846 = vpop.f32.mrb[0].mxu0
  %3847 = vmatprep.mubr.f32.mxu0 0.0
  %3848 = vmatmul.mubr.f32.gmra.mrb[0].mxu0 %v3432
  %v3849 = vpop.f32.mrb[0].mxu0
  %v3850 = vadd.f32 0.0, %v3849
  %v3851 = vpop.f32.mrb[0].mxu0
  %3852 = vmatprep.mubr.f32.mxu0 0.0
  %3853 = vmatmul.mubr.f32.gmra.mrb[0].mxu0 %v3435
  %v3854 = vpop.f32.mrb[0].mxu0
  %v3855 = vadd.f32 0.0, %v3854
  %v3856 = vpop.f32.mrb[0].mxu0
  %3857 = vmatprep.mubr.f32.mxu0 0.0
  %3858 = vmatmul.mubr.f32.gmra.mrb[0].mxu0 %v3438
  %v3859 = vpop.f32.mrb[0].mxu0
  %v3860 = vadd.f32 0.0, %v3859
  %v3861 = vpop.f32.mrb[0].mxu0
  %3862 = vmatprep.mubr.f32.mxu0 0.0
  %3863 = vmatmul.mubr.f32.gmra.mrb[0].mxu0 %v3441
  %v3864 = vpop.f32.mrb[0].mxu0
  %v3865 = vadd.f32 0.0, %v3864
  %v3866 = vpop.f32.mrb[0].mxu0
  %3867 = vmatprep.mubr.f32.mxu0 0.0
  %3868 = vmatmul.mubr.f32.gmra.mrb[0].mxu0 %v3444
  %v3869 = vpop.f32.mrb[0].mxu0
  %v3870 = vadd.f32 0.0, %v3869
  %v3871 = vpop.f32.mrb[0].mxu0
  %3872 = vmatprep.mubr.f32.mxu0 0.0
  %3873 = vmatmul.mubr.f32.gmra.mrb[0].mxu0 %v3447
  %v3874 = vpop.f32.mrb[0].mxu0
  %v3875 = vadd.f32 0.0, %v3874
  %v3876 = vpop.f32.mrb[0].mxu0
  %3877 = vmatprep.mubr.f32.mxu0 0.0
  %3878 = vmatmul.mubr.f32.gmra.mrb[0].mxu0 %v3450
  %v3879 = vpop.f32.mrb[0].mxu0
  %v3880 = vadd.f32 0.0, %v3879
  %v3881 = vpop.f32.mrb[0].mxu0
  %3882 = vmatprep.mubr.f32.mxu0 0.0
  %3883 = vmatmul.mubr.f32.gmra.mrb[0].mxu0 %v3453
  %v3884 = vpop.f32.mrb[0].mxu0
  %v3885 = vadd.f32 0.0, %v3884
  %v3886 = vpop.f32.mrb[0].mxu0
  %3887 = vmatprep.mubr.f32.mxu0 0.0
  %3888 = vmatmul.mubr.f32.gmra.mrb[0].mxu0 %v3456
  %v3889 = vpop.f32.mrb[0].mxu0
  %v3890 = vadd.f32 0.0, %v3889
  %v3891 = vpop.f32.mrb[0].mxu0
  %3892 = vmatprep.mubr.f32.mxu0 0.0
  %3893 = vmatmul.mubr.f32.gmra.mrb[0].mxu0 %v3459
  %v3894 = vpop.f32.mrb[0].mxu0
  %v3895 = vadd.f32 0.0, %v3894
  %v3896 = vpop.f32.mrb[0].mxu0
  %3897 = vmatprep.mubr.f32.mxu0 0.0
  %3898 = vmatmul.mubr.f32.gmra.mrb[0].mxu0 %v3462
  %v3899 = vpop.f32.mrb[0].mxu0
  %v3900 = vadd.f32 0.0, %v3899
  %v3901 = vpop.f32.mrb[0].mxu0
  %3902 = vmatprep.mubr.f32.mxu0 0.0
  %3903 = vmatmul.mubr.f32.gmra.mrb[0].mxu0 %v3465
  %v3904 = vpop.f32.mrb[0].mxu0
  %v3905 = vadd.f32 0.0, %v3904
  %v3906 = vpop.f32.mrb[0].mxu0
  %3907 = vmatprep.mubr.f32.mxu0 0.0
  %3908 = vmatmul.mubr.f32.gmra.mrb[0].mxu0 %v3468
  %v3909 = vpop.f32.mrb[0].mxu0
  %v3910 = vadd.f32 0.0, %v3909
  %v3911 = vpop.f32.mrb[0].mxu0
  %3912 = vmatprep.mubr.f32.mxu0 0.0
  %3913 = vmatmul.mubr.f32.gmra.mrb[0].mxu0 %v3471
  %v3914 = vpop.f32.mrb[0].mxu0
  %v3915 = vadd.f32 0.0, %v3914
  %v3916 = vpop.f32.mrb[0].mxu0
  %3917 = vmatprep.mubr.f32.mxu0 0.0
  %3918 = vmatmul.mubr.f32.gmra.mrb[0].mxu0 %v3474
  %v3919 = vpop.f32.mrb[0].mxu0
  %v3920 = vadd.f32 0.0, %v3919
  %v3921 = vpop.f32.mrb[0].mxu0
  %3922 = vmatprep.mubr.f32.mxu0 0.0
  %3923 = vmatmul.mubr.f32.gmra.mrb[0].mxu0 %v3477
  %v3924 = vpop.f32.mrb[0].mxu0
  %v3925 = vadd.f32 0.0, %v3924
  %v3926 = vpop.f32.mrb[0].mxu0
  %3927 = vmatprep.mubr.f32.mxu0 0.0
  %3928 = vmatmul.mubr.f32.gmra.mrb[0].mxu0 %v3480
  %v3929 = vpop.f32.mrb[0].mxu0
  %v3930 = vadd.f32 0.0, %v3929
  %v3931 = vpop.f32.mrb[0].mxu0
  %3932 = vmatprep.mubr.f32.mxu0 0.0
  %3933 = vmatmul.mubr.f32.gmra.mrb[0].mxu0 %v3483
  %v3934 = vpop.f32.mrb[0].mxu0
  %v3935 = vadd.f32 0.0, %v3934
  %v3936 = vpop.f32.mrb[0].mxu0
  %3937 = vmatprep.mubr.f32.mxu0 0.0
  %3938 = vmatmul.mubr.f32.gmra.mrb[0].mxu0 %v3486
  %v3939 = vpop.f32.mrb[0].mxu0
  %v3940 = vadd.f32 0.0, %v3939
  %v3941 = vpop.f32.mrb[0].mxu0
  %3942 = vmatprep.mubr.f32.mxu0 0.0
  %3943 = vmatmul.mubr.f32.gmra.mrb[0].mxu0 %v3489
  %v3944 = vpop.f32.mrb[0].mxu0
  %v3945 = vadd.f32 0.0, %v3944
  %v3946 = vpop.f32.mrb[0].mxu0
  %3947 = vmatprep.mubr.f32.mxu0 0.0
  %3948 = vmatmul.mubr.f32.gmra.mrb[0].mxu0 %v3492
  %v3949 = vpop.f32.mrb[0].mxu0
  %v3950 = vadd.f32 0.0, %v3949
  %v3951 = vpop.f32.mrb[0].mxu0
  %3952 = vmatprep.mubr.f32.mxu0 0.0
  %3953 = vmatmul.mubr.f32.gmra.mrb[0].mxu0 %v3495
  %v3954 = vpop.f32.mrb[0].mxu0
  %v3955 = vadd.f32 0.0, %v3954
  %v3956 = vpop.f32.mrb[0].mxu0
  %3957 = vmatprep.mubr.f32.mxu0 0.0
  %3958 = vmatmul.mubr.f32.gmra.mrb[0].mxu0 %v3498
  %v3959 = vpop.f32.mrb[0].mxu0
  %v3960 = vadd.f32 0.0, %v3959
  %v3961 = vpop.f32.mrb[0].mxu0
  %3962 = vmatprep.mubr.f32.mxu0 0.0
  %3963 = vmatmul.mubr.f32.gmra.mrb[0].mxu0 %v3501
  %v3964 = vpop.f32.mrb[0].mxu0
  %v3965 = vadd.f32 0.0, %v3964
  %v3966 = vpop.f32.mrb[0].mxu0
  %3967 = vdwg.mxu0
  %v3968 = vmul.f32 %v3570, %v3570
  %v3969 = vmul.f32 %v3575, %v3575
  %v3970 = vmul.f32 %v3580, %v3580
  %v3971 = vmul.f32 %v3585, %v3585
  %v3972 = vmul.f32 %v3590, %v3590
  %v3973 = vmul.f32 %v3595, %v3595
  %v3974 = vmul.f32 %v3600, %v3600
  %v3975 = vmul.f32 %v3605, %v3605
  %v3976 = vmul.f32 %v3610, %v3610
  %v3977 = vmul.f32 %v3615, %v3615
  %v3978 = vmul.f32 %v3620, %v3620
  %v3979 = vmul.f32 %v3625, %v3625
  %v3980 = vmul.f32 %v3630, %v3630
  %v3981 = vmul.f32 %v3635, %v3635
  %v3982 = vmul.f32 %v3640, %v3640
  %v3983 = vmul.f32 %v3645, %v3645
  %v3984 = vmul.f32 %v3650, %v3650
  %v3985 = vmul.f32 %v3655, %v3655
  %v3986 = vmul.f32 %v3660, %v3660
  %v3987 = vmul.f32 %v3665, %v3665
  %v3988 = vmul.f32 %v3670, %v3670
  %v3989 = vmul.f32 %v3675, %v3675
  %v3990 = vmul.f32 %v3680, %v3680
  %v3991 = vmul.f32 %v3685, %v3685
  %v3992 = vmul.f32 %v3690, %v3690
  %v3993 = vmul.f32 %v3695, %v3695
  %v3994 = vmul.f32 %v3700, %v3700
  %v3995 = vmul.f32 %v3705, %v3705
  %v3996 = vmul.f32 %v3710, %v3710
  %v3997 = vmul.f32 %v3715, %v3715
  %v3998 = vmul.f32 %v3720, %v3720
  %v3999 = vmul.f32 %v3725, %v3725
  %v4000 = vmul.f32 %v3570, %v3650
  %v4001 = vmul.f32 %v3575, %v3655
  %v4002 = vmul.f32 %v3580, %v3660
  %v4003 = vmul.f32 %v3585, %v3665
  %v4004 = vmul.f32 %v3590, %v3670
  %v4005 = vmul.f32 %v3595, %v3675
  %v4006 = vmul.f32 %v3600, %v3680
  %v4007 = vmul.f32 %v3605, %v3685
  %v4008 = vmul.f32 %v3610, %v3690
  %v4009 = vmul.f32 %v3615, %v3695
  %v4010 = vmul.f32 %v3620, %v3700
  %v4011 = vmul.f32 %v3625, %v3705
  %v4012 = vmul.f32 %v3630, %v3710
  %v4013 = vmul.f32 %v3635, %v3715
  %v4014 = vmul.f32 %v3640, %v3720
  %v4015 = vmul.f32 %v3645, %v3725
  %v4016 = vsub.f32 %v3730, %v3968
  %v4017 = vsub.f32 %v3735, %v3969
  %v4018 = vsub.f32 %v3740, %v3970
  %v4019 = vsub.f32 %v3745, %v3971
  %v4020 = vsub.f32 %v3750, %v3972
  %v4021 = vsub.f32 %v3755, %v3973
  %v4022 = vsub.f32 %v3760, %v3974
  %v4023 = vsub.f32 %v3765, %v3975
  %v4024 = vsub.f32 %v3770, %v3976
  %v4025 = vsub.f32 %v3775, %v3977
  %v4026 = vsub.f32 %v3780, %v3978
  %v4027 = vsub.f32 %v3785, %v3979
  %v4028 = vsub.f32 %v3790, %v3980
  %v4029 = vsub.f32 %v3795, %v3981
  %v4030 = vsub.f32 %v3800, %v3982
  %v4031 = vsub.f32 %v3805, %v3983
  %v4032 = vsub.f32 %v3810, %v3984
  %v4033 = vsub.f32 %v3815, %v3985
  %v4034 = vsub.f32 %v3820, %v3986
  %v4035 = vsub.f32 %v3825, %v3987
  %v4036 = vsub.f32 %v3830, %v3988
  %v4037 = vsub.f32 %v3835, %v3989
  %v4038 = vsub.f32 %v3840, %v3990
  %v4039 = vsub.f32 %v3845, %v3991
  %v4040 = vsub.f32 %v3850, %v3992
  %v4041 = vsub.f32 %v3855, %v3993
  %v4042 = vsub.f32 %v3860, %v3994
  %v4043 = vsub.f32 %v3865, %v3995
  %v4044 = vsub.f32 %v3870, %v3996
  %v4045 = vsub.f32 %v3875, %v3997
  %v4046 = vsub.f32 %v3880, %v3998
  %v4047 = vsub.f32 %v3885, %v3999
  %v4048 = vsub.f32 %v3890, %v4000
  %v4049 = vsub.f32 %v3895, %v4001
  %v4050 = vsub.f32 %v3900, %v4002
  %v4051 = vsub.f32 %v3905, %v4003
  %v4052 = vsub.f32 %v3910, %v4004
  %v4053 = vsub.f32 %v3915, %v4005
  %v4054 = vsub.f32 %v3920, %v4006
  %v4055 = vsub.f32 %v3925, %v4007
  %v4056 = vsub.f32 %v3930, %v4008
  %v4057 = vsub.f32 %v3935, %v4009
  %v4058 = vsub.f32 %v3940, %v4010
  %v4059 = vsub.f32 %v3945, %v4011
  %v4060 = vsub.f32 %v3950, %v4012
  %v4061 = vsub.f32 %v3955, %v4013
  %v4062 = vsub.f32 %v3960, %v4014
  %v4063 = vsub.f32 %v3965, %v4015
  %v4064 = vmul.f32 %v4000, 2.0
  %v4065 = vmul.f32 %v4001, 2.0
  %v4066 = vmul.f32 %v4002, 2.0
  %v4067 = vmul.f32 %v4003, 2.0
  %v4068 = vmul.f32 %v4004, 2.0
  %v4069 = vmul.f32 %v4005, 2.0
  %v4070 = vmul.f32 %v4006, 2.0
  %v4071 = vmul.f32 %v4007, 2.0
  %v4072 = vmul.f32 %v4008, 2.0
  %v4073 = vmul.f32 %v4009, 2.0
  %v4074 = vmul.f32 %v4010, 2.0
  %v4075 = vmul.f32 %v4011, 2.0
  %v4076 = vmul.f32 %v4012, 2.0
  %v4077 = vmul.f32 %v4013, 2.0
  %v4078 = vmul.f32 %v4014, 2.0
  %v4079 = vmul.f32 %v4015, 2.0
  %v4080 = vadd.f32 %v4064, 0.0001
  %v4081 = vadd.f32 %v4065, 0.0001
  %v4082 = vadd.f32 %v4066, 0.0001
  %v4083 = vadd.f32 %v4067, 0.0001
  %v4084 = vadd.f32 %v4068, 0.0001
  %v4085 = vadd.f32 %v4069, 0.0001
  %v4086 = vadd.f32 %v4070, 0.0001
  %v4087 = vadd.f32 %v4071, 0.0001
  %v4088 = vadd.f32 %v4072, 0.0001
  %v4089 = vadd.f32 %v4073, 0.0001
  %v4090 = vadd.f32 %v4074, 0.0001
  %v4091 = vadd.f32 %v4075, 0.0001
  %v4092 = vadd.f32 %v4076, 0.0001
  %v4093 = vadd.f32 %v4077, 0.0001
  %v4094 = vadd.f32 %v4078, 0.0001
  %v4095 = vadd.f32 %v4079, 0.0001
  %v4096 = vmul.f32 %v4048, 2.0
  %v4097 = vmul.f32 %v4049, 2.0
  %v4098 = vmul.f32 %v4050, 2.0
  %v4099 = vmul.f32 %v4051, 2.0
  %v4100 = vmul.f32 %v4052, 2.0
  %v4101 = vmul.f32 %v4053, 2.0
  %v4102 = vmul.f32 %v4054, 2.0
  %v4103 = vmul.f32 %v4055, 2.0
  %v4104 = vmul.f32 %v4056, 2.0
  %v4105 = vmul.f32 %v4057, 2.0
  %v4106 = vmul.f32 %v4058, 2.0
  %v4107 = vmul.f32 %v4059, 2.0
  %v4108 = vmul.f32 %v4060, 2.0
  %v4109 = vmul.f32 %v4061, 2.0
  %v4110 = vmul.f32 %v4062, 2.0
  %v4111 = vmul.f32 %v4063, 2.0
  %v4112 = vadd.f32 %v4096, 0.0009
  %v4113 = vadd.f32 %v4097, 0.0009
  %v4114 = vadd.f32 %v4098, 0.0009
  %v4115 = vadd.f32 %v4099, 0.0009
  %v4116 = vadd.f32 %v4100, 0.0009
  %v4117 = vadd.f32 %v4101, 0.0009
  %v4118 = vadd.f32 %v4102, 0.0009
  %v4119 = vadd.f32 %v4103, 0.0009
  %v4120 = vadd.f32 %v4104, 0.0009
  %v4121 = vadd.f32 %v4105, 0.0009
  %v4122 = vadd.f32 %v4106, 0.0009
  %v4123 = vadd.f32 %v4107, 0.0009
  %v4124 = vadd.f32 %v4108, 0.0009
  %v4125 = vadd.f32 %v4109, 0.0009
  %v4126 = vadd.f32 %v4110, 0.0009
  %v4127 = vadd.f32 %v4111, 0.0009
  %v4128 = vmul.f32 %v4080, %v4112
  %v4129 = vmul.f32 %v4081, %v4113
  %v4130 = vmul.f32 %v4082, %v4114
  %v4131 = vmul.f32 %v4083, %v4115
  %v4132 = vmul.f32 %v4084, %v4116
  %v4133 = vmul.f32 %v4085, %v4117
  %v4134 = vmul.f32 %v4086, %v4118
  %v4135 = vmul.f32 %v4087, %v4119
  %v4136 = vmul.f32 %v4088, %v4120
  %v4137 = vmul.f32 %v4089, %v4121
  %v4138 = vmul.f32 %v4090, %v4122
  %v4139 = vmul.f32 %v4091, %v4123
  %v4140 = vmul.f32 %v4092, %v4124
  %v4141 = vmul.f32 %v4093, %v4125
  %v4142 = vmul.f32 %v4094, %v4126
  %v4143 = vmul.f32 %v4095, %v4127
  %v4144 = vadd.f32 %v3968, %v3984
  %v4145 = vadd.f32 %v3969, %v3985
  %v4146 = vadd.f32 %v3970, %v3986
  %v4147 = vadd.f32 %v3971, %v3987
  %v4148 = vadd.f32 %v3972, %v3988
  %v4149 = vadd.f32 %v3973, %v3989
  %v4150 = vadd.f32 %v3974, %v3990
  %v4151 = vadd.f32 %v3975, %v3991
  %v4152 = vadd.f32 %v3976, %v3992
  %v4153 = vadd.f32 %v3977, %v3993
  %v4154 = vadd.f32 %v3978, %v3994
  %v4155 = vadd.f32 %v3979, %v3995
  %v4156 = vadd.f32 %v3980, %v3996
  %v4157 = vadd.f32 %v3981, %v3997
  %v4158 = vadd.f32 %v3982, %v3998
  %v4159 = vadd.f32 %v3983, %v3999
  %v4160 = vadd.f32 %v4144, 0.0001
  %v4161 = vadd.f32 %v4145, 0.0001
  %v4162 = vadd.f32 %v4146, 0.0001
  %v4163 = vadd.f32 %v4147, 0.0001
  %v4164 = vadd.f32 %v4148, 0.0001
  %v4165 = vadd.f32 %v4149, 0.0001
  %v4166 = vadd.f32 %v4150, 0.0001
  %v4167 = vadd.f32 %v4151, 0.0001
  %v4168 = vadd.f32 %v4152, 0.0001
  %v4169 = vadd.f32 %v4153, 0.0001
  %v4170 = vadd.f32 %v4154, 0.0001
  %v4171 = vadd.f32 %v4155, 0.0001
  %v4172 = vadd.f32 %v4156, 0.0001
  %v4173 = vadd.f32 %v4157, 0.0001
  %v4174 = vadd.f32 %v4158, 0.0001
  %v4175 = vadd.f32 %v4159, 0.0001
  %v4176 = vadd.f32 %v4016, %v4032
  %v4177 = vadd.f32 %v4017, %v4033
  %v4178 = vadd.f32 %v4018, %v4034
  %v4179 = vadd.f32 %v4019, %v4035
  %v4180 = vadd.f32 %v4020, %v4036
  %v4181 = vadd.f32 %v4021, %v4037
  %v4182 = vadd.f32 %v4022, %v4038
  %v4183 = vadd.f32 %v4023, %v4039
  %v4184 = vadd.f32 %v4024, %v4040
  %v4185 = vadd.f32 %v4025, %v4041
  %v4186 = vadd.f32 %v4026, %v4042
  %v4187 = vadd.f32 %v4027, %v4043
  %v4188 = vadd.f32 %v4028, %v4044
  %v4189 = vadd.f32 %v4029, %v4045
  %v4190 = vadd.f32 %v4030, %v4046
  %v4191 = vadd.f32 %v4031, %v4047
  %v4192 = vadd.f32 %v4176, 0.0009
  %v4193 = vadd.f32 %v4177, 0.0009
  %v4194 = vadd.f32 %v4178, 0.0009
  %v4195 = vadd.f32 %v4179, 0.0009
  %v4196 = vadd.f32 %v4180, 0.0009
  %v4197 = vadd.f32 %v4181, 0.0009
  %v4198 = vadd.f32 %v4182, 0.0009
  %v4199 = vadd.f32 %v4183, 0.0009
  %v4200 = vadd.f32 %v4184, 0.0009
  %v4201 = vadd.f32 %v4185, 0.0009
  %v4202 = vadd.f32 %v4186, 0.0009
  %v4203 = vadd.f32 %v4187, 0.0009
  %v4204 = vadd.f32 %v4188, 0.0009
  %v4205 = vadd.f32 %v4189, 0.0009
  %v4206 = vadd.f32 %v4190, 0.0009
  %v4207 = vadd.f32 %v4191, 0.0009
  %v4208 = vmul.f32 %v4160, %v4192
  %v4209 = vmul.f32 %v4161, %v4193
  %v4210 = vmul.f32 %v4162, %v4194
  %v4211 = vmul.f32 %v4163, %v4195
  %v4212 = vmul.f32 %v4164, %v4196
  %v4213 = vmul.f32 %v4165, %v4197
  %v4214 = vmul.f32 %v4166, %v4198
  %v4215 = vmul.f32 %v4167, %v4199
  %v4216 = vmul.f32 %v4168, %v4200
  %v4217 = vmul.f32 %v4169, %v4201
  %v4218 = vmul.f32 %v4170, %v4202
  %v4219 = vmul.f32 %v4171, %v4203
  %v4220 = vmul.f32 %v4172, %v4204
  %v4221 = vmul.f32 %v4173, %v4205
  %v4222 = vmul.f32 %v4174, %v4206
  %v4223 = vmul.f32 %v4175, %v4207
  %v4224 = vrcp.pop %v4208
  %v4225 = vrcp.pop %v4209
  %v4226 = vrcp.pop %v4210
  %v4227 = vrcp.pop %v4211
  %v4228 = vrcp.pop %v4212
  %v4229 = vrcp.pop %v4213
  %v4230 = vrcp.pop %v4214
  %v4231 = vrcp.pop %v4215
  %v4232 = vrcp.pop %v4216
  %v4233 = vrcp.pop %v4217
  %v4234 = vrcp.pop %v4218
  %v4235 = vrcp.pop %v4219
  %v4236 = vrcp.pop %v4220
  %v4237 = vrcp.pop %v4221
  %v4238 = vrcp.pop %v4222
  %v4239 = vrcp.pop %v4223
  %v4240 = vmul.f32 %v4128, %v4224
  %v4241 = vmul.f32 %v4129, %v4225
  %v4242 = vmul.f32 %v4130, %v4226
  %v4243 = vmul.f32 %v4131, %v4227
  %v4244 = vmul.f32 %v4132, %v4228
  %v4245 = vmul.f32 %v4133, %v4229
  %v4246 = vmul.f32 %v4134, %v4230
  %v4247 = vmul.f32 %v4135, %v4231
  %v4248 = vmul.f32 %v4136, %v4232
  %v4249 = vmul.f32 %v4137, %v4233
  %v4250 = vmul.f32 %v4138, %v4234
  %v4251 = vmul.f32 %v4139, %v4235
  %v4252 = vmul.f32 %v4140, %v4236
  %v4253 = vmul.f32 %v4141, %v4237
  %v4254 = vmul.f32 %v4142, %v4238
  %v4255 = vmul.f32 %v4143, %v4239
  %v4256 = vsel %vm3262, %v4240, 0.0
  %v4257 = vsel %vm3262, %v4241, 0.0
  %v4258 = vadd.f32 %v4256, %v4257
  %v4259 = vsel %vm3262, %v4242, 0.0
  %v4260 = vadd.f32 %v4258, %v4259
  %v4261 = vsel %vm3262, %v4243, 0.0
  %v4262 = vadd.f32 %v4260, %v4261
  %v4263 = vsel %vm3262, %v4244, 0.0
  %v4264 = vadd.f32 %v4262, %v4263
  %v4265 = vsel %vm3262, %v4245, 0.0
  %v4266 = vadd.f32 %v4264, %v4265
  %v4267 = vsel %vm3262, %v4246, 0.0
  %v4268 = vadd.f32 %v4266, %v4267
  %v4269 = vsel %vm3262, %v4247, 0.0
  %v4270 = vadd.f32 %v4268, %v4269
  %v4271 = vsel %vm3262, %v4248, 0.0
  %v4272 = vadd.f32 %v4270, %v4271
  %v4273 = vsel %vm3262, %v4249, 0.0
  %v4274 = vadd.f32 %v4272, %v4273
  %v4275 = vsel %vm3262, %v4250, 0.0
  %v4276 = vadd.f32 %v4274, %v4275
  %v4277 = vsel %vm3262, %v4251, 0.0
  %v4278 = vadd.f32 %v4276, %v4277
  %v4279 = vsel %vm3262, %v4252, 0.0
  %v4280 = vadd.f32 %v4278, %v4279
  %v4281 = vsel %vm3262, %v4253, 0.0
  %v4282 = vadd.f32 %v4280, %v4281
  %v4283 = vsel %vm3262, %v4254, 0.0
  %v4284 = vadd.f32 %v4282, %v4283
  %v4285 = vsel %vm3262, %v4255, 0.0
  %v4286 = vadd.f32 %v4284, %v4285
  %4287 = vadd.xlane.f32.xlu0 %v4286
  %v4288 = vpop.xlane.xlu0 %4287
  %v4289 = vrot.slane %v4288, 4
  %v4290 = vadd.f32 %v4288, %v4289
  %v4291 = vrot.slane %v4290, 2
  %v4292 = vadd.f32 %v4290, %v4291
  %v4293 = vrot.slane %v4292, 1
  %v4294 = vadd.f32 %v4292, %v4293
  %s4295 = vtos %v4294
  %s4296 = smul.f32 %s4295, 0.00048828125
  %v4297 = vstv %s4296
  %4298 = vst [vmem:[%s3] sm:$0xff] %v4297
  // Predicated region
  $region14: #{_lambda_.3} parent=0 // pred_check
    _
  $region15: #{_lambda_.3} parent=0 // pred_check_branch
    %4300 = sbr.rel (0) target = $region17
  $region16: #{_lambda_.3} parent=0 // pred_region
    _
  $region17: #{_lambda_.3} parent=0 // pred_fallthru
    _
  // Predicated region
  $region18: #{_lambda_.3} parent=0 // pred_check
    _
  $region19: #{_lambda_.3} parent=0 // pred_check_branch
    %4302 = sbr.rel (0) target = $region21
  $region20: #{_lambda_.3} parent=0 // pred_region
    _
  $region21: #{_lambda_.3} parent=0 // pred_fallthru
    _

</llo_original>
